<compile_context>
chip_gen: v5e
topology: v5e:2x2
jax: 0.10.0
libtpu: 0.0.40
codegen_flags: <defaults>
</compile_context>

<pallas_src>
import jax
import jax.numpy as jnp
import numpy as np
from jax.experimental import pallas as pl
from jax.experimental.pallas import tpu as pltpu

EPS = 1e-5


# ----------------------------- Pallas kernel -------------------------------

def _gtr_kernel(x_ref, w1_ref, b1_ref, w2_ref, b2_ref,
                rw_ref, rb_ref, pool_ref, pw_ref, wl_ref, bl_ref,
                out_ref):
    f32 = jnp.float32
    bf16 = jnp.bfloat16

    # x_ref: (M=TB*L, 80) bf16 rows of TB packed batch elements, channels-last.
    x = x_ref[...]

    # grouped Conv1d(80,80,1,groups=20) + BN + ReLU (block-diag weight, BN folded)
    h = jnp.maximum(
        jnp.dot(x, w1_ref[...], preferred_element_type=f32) + b1_ref[...], 0.0)
    # Conv1d(80,32,1) + BN + ReLU (BN folded)
    h = jnp.maximum(
        jnp.dot(h.astype(bf16), w2_ref[...], preferred_element_type=f32)
        + b2_ref[...], 0.0)

    def residue(h, idx):
        # rw_ref: (16, 32, 32) bf16, rb_ref: (16, 1, 32) f32 (2D bias broadcast).
        y = jnp.maximum(
            jnp.dot(h.astype(bf16), rw_ref[2 * idx], preferred_element_type=f32)
            + rb_ref[2 * idx], 0.0)
        y = jnp.maximum(
            jnp.dot(y.astype(bf16), rw_ref[2 * idx + 1], preferred_element_type=f32)
            + rb_ref[2 * idx + 1], 0.0)
        return h + y

    def avgpool2(h):
        # Pairwise row mean as an MXU matmul against the resident 0.5-matrix
        # (statically sliced top-left corner per stage).  MXU is otherwise
        # under-utilized at these sizes; removes the VMEM round-trip entirely.
        m = h.shape[0]
        return jnp.dot(pool_ref[0:m // 2, 0:m], h.astype(bf16),
                       preferred_element_type=f32)

    h = residue(h, 0); h = residue(h, 1)
    h = avgpool2(h)                     # M   -> M/2
    h = residue(h, 2); h = residue(h, 3)
    h = avgpool2(h)                     # -> M/4
    h = residue(h, 4); h = residue(h, 5)
    h = avgpool2(h)                     # -> M/8  (= TB * l_final rows)
    h = residue(h, 6); h = residue(h, 7)

    # AdaptiveAvgPool1d(1): block-diagonal ones matmul (one row per packed
    # batch element), 1/l_final applied in f32, fused with the lane-padded
    # classifier Linear(32, 3->128).
    TB = pw_ref.shape[0]
    l_final = pw_ref.shape[1] // TB
    feat = jnp.dot(pw_ref[...], h.astype(bf16),
                   preferred_element_type=f32) * (1.0 / l_final)      # (TB, 32)
    out = (jnp.dot(feat.astype(bf16), wl_ref[...], preferred_element_type=f32)
           + bl_ref[...])                                             # (TB, 128)
    out_ref[...] = out.reshape(1, TB, 128)


def gtr_forward(x_ncw, params, *, batch_tile=None):
    """x_ncw: (B, 80, L) float32 (PyTorch NCW).  Returns (B, 3) float32."""
    B = x_ncw.shape[0]
    x = x_ncw.reshape(B, 80, -1)
    L = x.shape[2]
    assert L % 8 == 0, "L must be divisible by 8 (three AvgPool1d(2) stages)"

    # --- batch packing: fill the MXU sublane (M) dimension -----------------
    # Target ~256 activation rows per grid step (fills sublanes without pushing
    # the unrolled residue chain into the spill regime) and keep the grid
    # length >= 2 where possible so v7x's two TensorCores both get work.
    if batch_tile is None:
        TB = max(1, min(B, 256 // L))
        while TB > 1 and -(-B // TB) < 2:
            TB //= 2
    else:
        TB = batch_tile
    # TODO(synk): for very long L (TB == 1, L >> 512) additionally row-chunk the
    # pre-pool residues (lax.fori_loop / L-tiling) for the vreg + v7x 64MiB
    # VMEM budget; unnecessary at these sizes.

    nb = -(-B // TB)
    B_pad = nb * TB
    l_final = L // 8
    M = TB * L

    # channels-last + bf16 MXU operands (also halves the input HBM/DMA traffic)
    x_blc = jnp.transpose(x, (0, 2, 1)).astype(jnp.bfloat16)          # (B, L, 80)
    if B_pad != B:
        x_blc = jnp.concatenate(
            [x_blc, jnp.zeros((B_pad - B, L, 80), jnp.bfloat16)], axis=0)
    x_packed = x_blc.reshape(nb, M, 80)   # contiguous leading-dim merge

    # AvgPool1d(2) matrix: (M/2, M) with 0.5 at (i, 2i) and (i, 2i+1).
    rows = jnp.arange(M // 2)
    pool_mat = (jnp.zeros((M // 2, M), jnp.float32)
                .at[rows, 2 * rows].set(0.5)
                .at[rows, 2 * rows + 1].set(0.5)
                .astype(jnp.bfloat16))

    # AdaptiveAvgPool1d(1): block-diagonal ones (TB, TB*l_final); exact bf16 sums,
    # 1/l_final scale applied in f32 inside the kernel.
    pw = jnp.repeat(jnp.eye(TB, dtype=jnp.float32), l_final,
                    axis=1).astype(jnp.bfloat16)

    const2 = lambda g: (0, 0)
    const3 = lambda g: (0, 0, 0)

    out = pl.pallas_call(
        _gtr_kernel,
        out_shape=jax.ShapeDtypeStruct((nb, TB, 128), jnp.float32),
        grid=(nb,),
        in_specs=[
            pl.BlockSpec((pl.Squeezed(), M, 80), lambda g: (g, 0, 0)),  # x slab
            pl.BlockSpec((80, 80), const2),            # w1 (block-diag grouped)
            pl.BlockSpec((1, 80), const2),             # b1
            pl.BlockSpec((80, 32), const2),            # w2
            pl.BlockSpec((1, 32), const2),             # b2
            pl.BlockSpec((16, 32, 32), const3),        # residue weights (bf16)
            pl.BlockSpec((16, 1, 32), const3),         # residue biases (f32, 2D)
            pl.BlockSpec((M // 2, M), const2),         # AvgPool1d(2) matrix
            pl.BlockSpec((TB, TB * l_final), const2),  # adaptive mean-pool (blk-diag)
            pl.BlockSpec((32, 128), const2),           # classifier W (lane-padded)
            pl.BlockSpec((1, 128), const2),            # classifier b (lane-padded)
        ],
        out_specs=pl.BlockSpec((1, TB, 128), lambda g: (g, 0, 0)),
        compiler_params=pltpu.CompilerParams(
            dimension_semantics=("parallel",),
            vmem_limit_bytes=32 * 1024 * 1024),
    )(x_packed, params['w1'], params['b1'], params['w2'], params['b2'],
      params['rw'], params['rb'], pool_mat, pw, params['wl'], params['bl'])

    return out.reshape(B_pad, 128)[:B, :3]


# --------------------- deterministic parameter setup ------------------------

def init_raw_params(key):
    raw = {}

    def nrm(k, shape, s=0.2):
        return s * jax.random.normal(k, shape, jnp.float32)

    def bn_params(k, c):
        k1, k2, k3, k4 = jax.random.split(k, 4)
        gamma = 1.0 + 0.1 * jax.random.normal(k1, (c,), jnp.float32)
        beta = 0.1 * jax.random.normal(k2, (c,), jnp.float32)
        rm = 0.1 * jax.random.normal(k3, (c,), jnp.float32)
        rv = jax.random.uniform(k4, (c,), jnp.float32, 0.5, 1.5)
        return (gamma, beta, rm, rv)

    keys = iter(jax.random.split(key, 64))
    raw['conv1_w'] = nrm(next(keys), (80, 4))      # Conv1d(80,80,1,groups=20)
    raw['conv1_b'] = nrm(next(keys), (80,))
    raw['bn1'] = bn_params(next(keys), 80)
    raw['conv2_w'] = nrm(next(keys), (32, 80))     # Conv1d(80,32,1)
    raw['conv2_b'] = nrm(next(keys), (32,))
    raw['bn2'] = bn_params(next(keys), 32)
    for i in range(8):                             # 8 x _ResidueModule(32)
        for j in range(2):
            raw[f'res{i}_{j}_w'] = nrm(next(keys), (32, 32))
            raw[f'res{i}_{j}_b'] = nrm(next(keys), (32,))
            raw[f'res{i}_{j}_bn'] = bn_params(next(keys), 32)
    raw['lin_w'] = nrm(next(keys), (3, 32))        # Linear(32,3)
    raw['lin_b'] = nrm(next(keys), (3,))
    return raw


def fold_params(raw):
    """Fold eval-mode BatchNorm into the preceding 1x1-conv; weights -> bf16."""
    def fold_one(w_io, b, bnp):
        gamma, beta, rm, rv = bnp
        scale = gamma / jnp.sqrt(rv + EPS)
        return w_io * scale[None, :], (b * scale + beta - rm * scale).reshape(1, -1)

    # grouped conv -> dense block-diagonal (Cin, Cout) matrix
    w1 = raw['conv1_w']
    M80 = jnp.zeros((80, 80), jnp.float32)
    for g in range(20):
        M80 = M80.at[4 * g:4 * g + 4, 4 * g:4 * g + 4].set(w1[4 * g:4 * g + 4, :].T)
    W1, B1 = fold_one(M80, raw['conv1_b'], raw['bn1'])
    W2, B2 = fold_one(raw['conv2_w'].T, raw['conv2_b'], raw['bn2'])

    rws, rbs = [], []
    for i in range(8):
        for j in range(2):
            w, b = fold_one(raw[f'res{i}_{j}_w'].T, raw[f'res{i}_{j}_b'],
                            raw[f'res{i}_{j}_bn'])
            rws.append(w)
            rbs.append(b)                          # keep 2D (1, 32), f32

    # lane-padded classifier: (32, 128) weights / (1, 128) bias, cols 3.. are 0
    wl_pad = jnp.zeros((32, 128), jnp.float32).at[:, :3].set(raw['lin_w'].T)
    bl_pad = jnp.zeros((1, 128), jnp.float32).at[0, :3].set(raw['lin_b'])

    bf16 = jnp.bfloat16
    return dict(w1=W1.astype(bf16), b1=B1,
                w2=W2.astype(bf16), b2=B2,
                rw=jnp.stack(rws).astype(bf16),     # (16, 32, 32) bf16
                rb=jnp.stack(rbs),                  # (16, 1, 32)  f32
                wl=wl_pad.astype(bf16), bl=bl_pad)


# -------------------------- pure-JAX reference (f32) ------------------------

def reference(x_ncw, raw):
    def bn(y, p):                      # y: (B, C, L)
        gamma, beta, rm, rv = p
        return ((y - rm[None, :, None]) / jnp.sqrt(rv[None, :, None] + EPS)
                * gamma[None, :, None] + beta[None, :, None])

    def conv1x1(y, w, b):              # w: (Cout, Cin)
        return jnp.einsum('bcl,oc->bol', y, w) + b[None, :, None]

    relu = lambda v: jnp.maximum(v, 0.0)
    B = x_ncw.shape[0]
    h = x_ncw.reshape(B, 80, -1)

    # grouped conv
    hg = h.reshape(B, 20, 4, -1)
    wg = raw['conv1_w'].reshape(20, 4, 4)          # (group, out_rel, in_rel)
    y = (jnp.einsum('bgil,goi->bgol', hg, wg).reshape(B, 80, -1)
         + raw['conv1_b'][None, :, None])
    y = relu(bn(y, raw['bn1']))
    y = relu(bn(conv1x1(y, raw['conv2_w'], raw['conv2_b']), raw['bn2']))

    def res(y, i):
        z = y
        for j in range(2):
            z = conv1x1(z, raw[f'res{i}_{j}_w'], raw[f'res{i}_{j}_b'])
            z = relu(bn(z, raw[f'res{i}_{j}_bn']))
        return y + z

    def pool(y):
        b_, c_, l_ = y.shape
        return y.reshape(b_, c_, l_ // 2, 2).mean(axis=3)

    y = res(y, 0); y = res(y, 1); y = pool(y)
    y = res(y, 2); y = res(y, 3); y = pool(y)
    y = res(y, 4); y = res(y, 5); y = pool(y)
    y = res(y, 6); y = res(y, 7)
    feat = y.mean(axis=2)                          # AdaptiveAvgPool1d(1) + squeeze
    return feat @ raw['lin_w'].T + raw['lin_b']


# --------------------------------- main --------------------------------------

if __name__ == "__main__":
    key = jax.random.PRNGKey(0)
    kx, kp = jax.random.split(key)

    # B=8, L=64 -> TB=4 packed elements/step, grid=(2,), 256-row activation slab.
    B, L = 8, 64
    x = jax.random.normal(kx, (B, 80, L), jnp.float32)   # PyTorch NCW input

    raw = init_raw_params(kp)
    params = fold_params(raw)

    fwd = jax.jit(gtr_forward)
    out = jax.block_until_ready(fwd(x, params))
    assert out.shape == (B, 3)

    ref = reference(x, raw)
    # bf16 MXU operands (explicit, per perf review) vs a pure-f32 reference:
    # ~2^-8 operand rounding accumulated over ~19 matmul layers sets the
    # achievable tolerance (~1% relative on O(1) activations).
    np.testing.assert_allclose(np.asarray(out), np.asarray(ref),
                               rtol=5e-2, atol=1e-1)
    print("KERNEL_OK")
</pallas_src>

<mosaic_0001>
module attributes {stable_mosaic.version = 11 : i64} {
  func.func @_gtr_kernel(%arg0: i32, %arg1: memref<1x256x80xbf16, #tpu.memory_space<vmem>>, %arg2: memref<80x80xbf16, #tpu.memory_space<vmem>>, %arg3: memref<1x80xf32, #tpu.memory_space<vmem>>, %arg4: memref<80x32xbf16, #tpu.memory_space<vmem>>, %arg5: memref<1x32xf32, #tpu.memory_space<vmem>>, %arg6: memref<16x32x32xbf16, #tpu.memory_space<vmem>>, %arg7: memref<16x1x32xf32, #tpu.memory_space<vmem>>, %arg8: memref<128x256xbf16, #tpu.memory_space<vmem>>, %arg9: memref<4x32xbf16, #tpu.memory_space<vmem>>, %arg10: memref<32x128xbf16, #tpu.memory_space<vmem>>, %arg11: memref<1x128xf32, #tpu.memory_space<vmem>>, %arg12: memref<1x4x128xf32, #tpu.memory_space<vmem>>) attributes {dimension_semantics = [#tpu.dimension_semantics<parallel>], iteration_bounds = array<i64: 2>, scalar_prefetch = 0 : i64, scratch_operands = 0 : i64, tpu.core_type = #tpu.core_type<tc>, window_params = [{transform_indices = @transform_0, window_bounds = array<i64: 1, 256, 80>}, {pipeline_mode = #tpu.pipeline_mode<synchronous>, transform_indices = @transform_1, window_bounds = array<i64: 80, 80>}, {pipeline_mode = #tpu.pipeline_mode<synchronous>, transform_indices = @transform_2, window_bounds = array<i64: 1, 80>}, {pipeline_mode = #tpu.pipeline_mode<synchronous>, transform_indices = @transform_3, window_bounds = array<i64: 80, 32>}, {pipeline_mode = #tpu.pipeline_mode<synchronous>, transform_indices = @transform_4, window_bounds = array<i64: 1, 32>}, {pipeline_mode = #tpu.pipeline_mode<synchronous>, transform_indices = @transform_5, window_bounds = array<i64: 16, 32, 32>}, {pipeline_mode = #tpu.pipeline_mode<synchronous>, transform_indices = @transform_6, window_bounds = array<i64: 16, 1, 32>}, {pipeline_mode = #tpu.pipeline_mode<synchronous>, transform_indices = @transform_7, window_bounds = array<i64: 128, 256>}, {pipeline_mode = #tpu.pipeline_mode<synchronous>, transform_indices = @transform_8, window_bounds = array<i64: 4, 32>}, {pipeline_mode = #tpu.pipeline_mode<synchronous>, transform_indices = @transform_9, window_bounds = array<i64: 32, 128>}, {pipeline_mode = #tpu.pipeline_mode<synchronous>, transform_indices = @transform_10, window_bounds = array<i64: 1, 128>}, {transform_indices = @transform_11, window_bounds = array<i64: 1, 4, 128>}]} {
    %c0 = arith.constant 0 : index
    %c0_0 = arith.constant 0 : index
    %c0_1 = arith.constant 0 : index
    %0 = vector.load %arg1[%c0, %c0_0, %c0_1] : memref<1x256x80xbf16, #tpu.memory_space<vmem>>, vector<1x256x80xbf16>
    %1 = vector.shape_cast %0 : vector<1x256x80xbf16> to vector<256x80xbf16>
    %c0_2 = arith.constant 0 : index
    %c0_3 = arith.constant 0 : index
    %2 = vector.load %arg2[%c0_2, %c0_3] : memref<80x80xbf16, #tpu.memory_space<vmem>>, vector<80x80xbf16>
    %cst = arith.constant dense<0.000000e+00> : vector<256x80xf32>
    %3 = tpu.matmul %1, %2, %cst {dimension_numbers = #tpu.dot_dimension_numbers<[1], [0], [0], [1], [0, 0, 1, 1], [], []>} : vector<256x80xbf16>, vector<80x80xbf16>, vector<256x80xf32> -> vector<256x80xf32>
    %c0_4 = arith.constant 0 : index
    %c0_5 = arith.constant 0 : index
    %4 = vector.load %arg3[%c0_4, %c0_5] : memref<1x80xf32, #tpu.memory_space<vmem>>, vector<1x80xf32>
    %5 = vector.broadcast %4 : vector<1x80xf32> to vector<256x80xf32>
    %6 = arith.addf %3, %5 : vector<256x80xf32>
    %cst_6 = arith.constant 0.000000e+00 : f32
    %7 = vector.broadcast %cst_6 : f32 to vector<256x80xf32>
    %8 = arith.maximumf %6, %7 : vector<256x80xf32>
    %9 = arith.truncf %8 : vector<256x80xf32> to vector<256x80xbf16>
    %c0_7 = arith.constant 0 : index
    %c0_8 = arith.constant 0 : index
    %10 = vector.load %arg4[%c0_7, %c0_8] : memref<80x32xbf16, #tpu.memory_space<vmem>>, vector<80x32xbf16>
    %cst_9 = arith.constant dense<0.000000e+00> : vector<256x32xf32>
    %11 = tpu.matmul %9, %10, %cst_9 {dimension_numbers = #tpu.dot_dimension_numbers<[1], [0], [0], [1], [0, 0, 1, 1], [], []>} : vector<256x80xbf16>, vector<80x32xbf16>, vector<256x32xf32> -> vector<256x32xf32>
    %c0_10 = arith.constant 0 : index
    %c0_11 = arith.constant 0 : index
    %12 = vector.load %arg5[%c0_10, %c0_11] : memref<1x32xf32, #tpu.memory_space<vmem>>, vector<1x32xf32>
    %13 = vector.broadcast %12 : vector<1x32xf32> to vector<256x32xf32>
    %14 = arith.addf %11, %13 : vector<256x32xf32>
    %cst_12 = arith.constant 0.000000e+00 : f32
    %15 = vector.broadcast %cst_12 : f32 to vector<256x32xf32>
    %16 = arith.maximumf %14, %15 : vector<256x32xf32>
    %17 = arith.truncf %16 : vector<256x32xf32> to vector<256x32xbf16>
    %c0_13 = arith.constant 0 : index
    %c0_14 = arith.constant 0 : index
    %c0_15 = arith.constant 0 : index
    %18 = vector.load %arg6[%c0_13, %c0_14, %c0_15] : memref<16x32x32xbf16, #tpu.memory_space<vmem>>, vector<1x32x32xbf16>
    %19 = vector.shape_cast %18 : vector<1x32x32xbf16> to vector<32x32xbf16>
    %cst_16 = arith.constant dense<0.000000e+00> : vector<256x32xf32>
    %20 = tpu.matmul %17, %19, %cst_16 {dimension_numbers = #tpu.dot_dimension_numbers<[1], [0], [0], [1], [0, 0, 1, 1], [], []>} : vector<256x32xbf16>, vector<32x32xbf16>, vector<256x32xf32> -> vector<256x32xf32>
    %c0_17 = arith.constant 0 : index
    %c0_18 = arith.constant 0 : index
    %c0_19 = arith.constant 0 : index
    %21 = vector.load %arg7[%c0_17, %c0_18, %c0_19] : memref<16x1x32xf32, #tpu.memory_space<vmem>>, vector<1x1x32xf32>
    %22 = vector.shape_cast %21 : vector<1x1x32xf32> to vector<1x32xf32>
    %23 = vector.broadcast %22 : vector<1x32xf32> to vector<256x32xf32>
    %24 = arith.addf %20, %23 : vector<256x32xf32>
    %cst_20 = arith.constant 0.000000e+00 : f32
    %25 = vector.broadcast %cst_20 : f32 to vector<256x32xf32>
    %26 = arith.maximumf %24, %25 : vector<256x32xf32>
    %27 = arith.truncf %26 : vector<256x32xf32> to vector<256x32xbf16>
    %c1 = arith.constant 1 : index
    %c0_21 = arith.constant 0 : index
    %c0_22 = arith.constant 0 : index
    %28 = vector.load %arg6[%c1, %c0_21, %c0_22] : memref<16x32x32xbf16, #tpu.memory_space<vmem>>, vector<1x32x32xbf16>
    %29 = vector.shape_cast %28 : vector<1x32x32xbf16> to vector<32x32xbf16>
    %cst_23 = arith.constant dense<0.000000e+00> : vector<256x32xf32>
    %30 = tpu.matmul %27, %29, %cst_23 {dimension_numbers = #tpu.dot_dimension_numbers<[1], [0], [0], [1], [0, 0, 1, 1], [], []>} : vector<256x32xbf16>, vector<32x32xbf16>, vector<256x32xf32> -> vector<256x32xf32>
    %c1_24 = arith.constant 1 : index
    %c0_25 = arith.constant 0 : index
    %c0_26 = arith.constant 0 : index
    %31 = vector.load %arg7[%c1_24, %c0_25, %c0_26] : memref<16x1x32xf32, #tpu.memory_space<vmem>>, vector<1x1x32xf32>
    %32 = vector.shape_cast %31 : vector<1x1x32xf32> to vector<1x32xf32>
    %33 = vector.broadcast %32 : vector<1x32xf32> to vector<256x32xf32>
    %34 = arith.addf %30, %33 : vector<256x32xf32>
    %cst_27 = arith.constant 0.000000e+00 : f32
    %35 = vector.broadcast %cst_27 : f32 to vector<256x32xf32>
    %36 = arith.maximumf %34, %35 : vector<256x32xf32>
    %37 = arith.addf %16, %36 : vector<256x32xf32>
    %38 = arith.truncf %37 : vector<256x32xf32> to vector<256x32xbf16>
    %c2 = arith.constant 2 : index
    %c0_28 = arith.constant 0 : index
    %c0_29 = arith.constant 0 : index
    %39 = vector.load %arg6[%c2, %c0_28, %c0_29] : memref<16x32x32xbf16, #tpu.memory_space<vmem>>, vector<1x32x32xbf16>
    %40 = vector.shape_cast %39 : vector<1x32x32xbf16> to vector<32x32xbf16>
    %cst_30 = arith.constant dense<0.000000e+00> : vector<256x32xf32>
    %41 = tpu.matmul %38, %40, %cst_30 {dimension_numbers = #tpu.dot_dimension_numbers<[1], [0], [0], [1], [0, 0, 1, 1], [], []>} : vector<256x32xbf16>, vector<32x32xbf16>, vector<256x32xf32> -> vector<256x32xf32>
    %c2_31 = arith.constant 2 : index
    %c0_32 = arith.constant 0 : index
    %c0_33 = arith.constant 0 : index
    %42 = vector.load %arg7[%c2_31, %c0_32, %c0_33] : memref<16x1x32xf32, #tpu.memory_space<vmem>>, vector<1x1x32xf32>
    %43 = vector.shape_cast %42 : vector<1x1x32xf32> to vector<1x32xf32>
    %44 = vector.broadcast %43 : vector<1x32xf32> to vector<256x32xf32>
    %45 = arith.addf %41, %44 : vector<256x32xf32>
    %cst_34 = arith.constant 0.000000e+00 : f32
    %46 = vector.broadcast %cst_34 : f32 to vector<256x32xf32>
    %47 = arith.maximumf %45, %46 : vector<256x32xf32>
    %48 = arith.truncf %47 : vector<256x32xf32> to vector<256x32xbf16>
    %c3 = arith.constant 3 : index
    %c0_35 = arith.constant 0 : index
    %c0_36 = arith.constant 0 : index
    %49 = vector.load %arg6[%c3, %c0_35, %c0_36] : memref<16x32x32xbf16, #tpu.memory_space<vmem>>, vector<1x32x32xbf16>
    %50 = vector.shape_cast %49 : vector<1x32x32xbf16> to vector<32x32xbf16>
    %cst_37 = arith.constant dense<0.000000e+00> : vector<256x32xf32>
    %51 = tpu.matmul %48, %50, %cst_37 {dimension_numbers = #tpu.dot_dimension_numbers<[1], [0], [0], [1], [0, 0, 1, 1], [], []>} : vector<256x32xbf16>, vector<32x32xbf16>, vector<256x32xf32> -> vector<256x32xf32>
    %c3_38 = arith.constant 3 : index
    %c0_39 = arith.constant 0 : index
    %c0_40 = arith.constant 0 : index
    %52 = vector.load %arg7[%c3_38, %c0_39, %c0_40] : memref<16x1x32xf32, #tpu.memory_space<vmem>>, vector<1x1x32xf32>
    %53 = vector.shape_cast %52 : vector<1x1x32xf32> to vector<1x32xf32>
    %54 = vector.broadcast %53 : vector<1x32xf32> to vector<256x32xf32>
    %55 = arith.addf %51, %54 : vector<256x32xf32>
    %cst_41 = arith.constant 0.000000e+00 : f32
    %56 = vector.broadcast %cst_41 : f32 to vector<256x32xf32>
    %57 = arith.maximumf %55, %56 : vector<256x32xf32>
    %58 = arith.addf %37, %57 : vector<256x32xf32>
    %c0_42 = arith.constant 0 : index
    %c0_43 = arith.constant 0 : index
    %59 = vector.load %arg8[%c0_42, %c0_43] : memref<128x256xbf16, #tpu.memory_space<vmem>>, vector<128x256xbf16>
    %60 = arith.truncf %58 : vector<256x32xf32> to vector<256x32xbf16>
    %cst_44 = arith.constant dense<0.000000e+00> : vector<128x32xf32>
    %61 = tpu.matmul %59, %60, %cst_44 {dimension_numbers = #tpu.dot_dimension_numbers<[1], [0], [0], [1], [0, 0, 1, 1], [], []>} : vector<128x256xbf16>, vector<256x32xbf16>, vector<128x32xf32> -> vector<128x32xf32>
    %62 = arith.truncf %61 : vector<128x32xf32> to vector<128x32xbf16>
    %c4 = arith.constant 4 : index
    %c0_45 = arith.constant 0 : index
    %c0_46 = arith.constant 0 : index
    %63 = vector.load %arg6[%c4, %c0_45, %c0_46] : memref<16x32x32xbf16, #tpu.memory_space<vmem>>, vector<1x32x32xbf16>
    %64 = vector.shape_cast %63 : vector<1x32x32xbf16> to vector<32x32xbf16>
    %cst_47 = arith.constant dense<0.000000e+00> : vector<128x32xf32>
    %65 = tpu.matmul %62, %64, %cst_47 {dimension_numbers = #tpu.dot_dimension_numbers<[1], [0], [0], [1], [0, 0, 1, 1], [], []>} : vector<128x32xbf16>, vector<32x32xbf16>, vector<128x32xf32> -> vector<128x32xf32>
    %c4_48 = arith.constant 4 : index
    %c0_49 = arith.constant 0 : index
    %c0_50 = arith.constant 0 : index
    %66 = vector.load %arg7[%c4_48, %c0_49, %c0_50] : memref<16x1x32xf32, #tpu.memory_space<vmem>>, vector<1x1x32xf32>
    %67 = vector.shape_cast %66 : vector<1x1x32xf32> to vector<1x32xf32>
    %68 = vector.broadcast %67 : vector<1x32xf32> to vector<128x32xf32>
    %69 = arith.addf %65, %68 : vector<128x32xf32>
    %cst_51 = arith.constant 0.000000e+00 : f32
    %70 = vector.broadcast %cst_51 : f32 to vector<128x32xf32>
    %71 = arith.maximumf %69, %70 : vector<128x32xf32>
    %72 = arith.truncf %71 : vector<128x32xf32> to vector<128x32xbf16>
    %c5 = arith.constant 5 : index
    %c0_52 = arith.constant 0 : index
    %c0_53 = arith.constant 0 : index
    %73 = vector.load %arg6[%c5, %c0_52, %c0_53] : memref<16x32x32xbf16, #tpu.memory_space<vmem>>, vector<1x32x32xbf16>
    %74 = vector.shape_cast %73 : vector<1x32x32xbf16> to vector<32x32xbf16>
    %cst_54 = arith.constant dense<0.000000e+00> : vector<128x32xf32>
    %75 = tpu.matmul %72, %74, %cst_54 {dimension_numbers = #tpu.dot_dimension_numbers<[1], [0], [0], [1], [0, 0, 1, 1], [], []>} : vector<128x32xbf16>, vector<32x32xbf16>, vector<128x32xf32> -> vector<128x32xf32>
    %c5_55 = arith.constant 5 : index
    %c0_56 = arith.constant 0 : index
    %c0_57 = arith.constant 0 : index
    %76 = vector.load %arg7[%c5_55, %c0_56, %c0_57] : memref<16x1x32xf32, #tpu.memory_space<vmem>>, vector<1x1x32xf32>
    %77 = vector.shape_cast %76 : vector<1x1x32xf32> to vector<1x32xf32>
    %78 = vector.broadcast %77 : vector<1x32xf32> to vector<128x32xf32>
    %79 = arith.addf %75, %78 : vector<128x32xf32>
    %cst_58 = arith.constant 0.000000e+00 : f32
    %80 = vector.broadcast %cst_58 : f32 to vector<128x32xf32>
    %81 = arith.maximumf %79, %80 : vector<128x32xf32>
    %82 = arith.addf %61, %81 : vector<128x32xf32>
    %83 = arith.truncf %82 : vector<128x32xf32> to vector<128x32xbf16>
    %c6 = arith.constant 6 : index
    %c0_59 = arith.constant 0 : index
    %c0_60 = arith.constant 0 : index
    %84 = vector.load %arg6[%c6, %c0_59, %c0_60] : memref<16x32x32xbf16, #tpu.memory_space<vmem>>, vector<1x32x32xbf16>
    %85 = vector.shape_cast %84 : vector<1x32x32xbf16> to vector<32x32xbf16>
    %cst_61 = arith.constant dense<0.000000e+00> : vector<128x32xf32>
    %86 = tpu.matmul %83, %85, %cst_61 {dimension_numbers = #tpu.dot_dimension_numbers<[1], [0], [0], [1], [0, 0, 1, 1], [], []>} : vector<128x32xbf16>, vector<32x32xbf16>, vector<128x32xf32> -> vector<128x32xf32>
    %c6_62 = arith.constant 6 : index
    %c0_63 = arith.constant 0 : index
    %c0_64 = arith.constant 0 : index
    %87 = vector.load %arg7[%c6_62, %c0_63, %c0_64] : memref<16x1x32xf32, #tpu.memory_space<vmem>>, vector<1x1x32xf32>
    %88 = vector.shape_cast %87 : vector<1x1x32xf32> to vector<1x32xf32>
    %89 = vector.broadcast %88 : vector<1x32xf32> to vector<128x32xf32>
    %90 = arith.addf %86, %89 : vector<128x32xf32>
    %cst_65 = arith.constant 0.000000e+00 : f32
    %91 = vector.broadcast %cst_65 : f32 to vector<128x32xf32>
    %92 = arith.maximumf %90, %91 : vector<128x32xf32>
    %93 = arith.truncf %92 : vector<128x32xf32> to vector<128x32xbf16>
    %c7 = arith.constant 7 : index
    %c0_66 = arith.constant 0 : index
    %c0_67 = arith.constant 0 : index
    %94 = vector.load %arg6[%c7, %c0_66, %c0_67] : memref<16x32x32xbf16, #tpu.memory_space<vmem>>, vector<1x32x32xbf16>
    %95 = vector.shape_cast %94 : vector<1x32x32xbf16> to vector<32x32xbf16>
    %cst_68 = arith.constant dense<0.000000e+00> : vector<128x32xf32>
    %96 = tpu.matmul %93, %95, %cst_68 {dimension_numbers = #tpu.dot_dimension_numbers<[1], [0], [0], [1], [0, 0, 1, 1], [], []>} : vector<128x32xbf16>, vector<32x32xbf16>, vector<128x32xf32> -> vector<128x32xf32>
    %c7_69 = arith.constant 7 : index
    %c0_70 = arith.constant 0 : index
    %c0_71 = arith.constant 0 : index
    %97 = vector.load %arg7[%c7_69, %c0_70, %c0_71] : memref<16x1x32xf32, #tpu.memory_space<vmem>>, vector<1x1x32xf32>
    %98 = vector.shape_cast %97 : vector<1x1x32xf32> to vector<1x32xf32>
    %99 = vector.broadcast %98 : vector<1x32xf32> to vector<128x32xf32>
    %100 = arith.addf %96, %99 : vector<128x32xf32>
    %cst_72 = arith.constant 0.000000e+00 : f32
    %101 = vector.broadcast %cst_72 : f32 to vector<128x32xf32>
    %102 = arith.maximumf %100, %101 : vector<128x32xf32>
    %103 = arith.addf %82, %102 : vector<128x32xf32>
    %c0_73 = arith.constant 0 : index
    %c0_74 = arith.constant 0 : index
    %104 = vector.load %arg8[%c0_73, %c0_74] : memref<128x256xbf16, #tpu.memory_space<vmem>>, vector<64x128xbf16>
    %105 = arith.truncf %103 : vector<128x32xf32> to vector<128x32xbf16>
    %cst_75 = arith.constant dense<0.000000e+00> : vector<64x32xf32>
    %106 = tpu.matmul %104, %105, %cst_75 {dimension_numbers = #tpu.dot_dimension_numbers<[1], [0], [0], [1], [0, 0, 1, 1], [], []>} : vector<64x128xbf16>, vector<128x32xbf16>, vector<64x32xf32> -> vector<64x32xf32>
    %107 = arith.truncf %106 : vector<64x32xf32> to vector<64x32xbf16>
    %c8 = arith.constant 8 : index
    %c0_76 = arith.constant 0 : index
    %c0_77 = arith.constant 0 : index
    %108 = vector.load %arg6[%c8, %c0_76, %c0_77] : memref<16x32x32xbf16, #tpu.memory_space<vmem>>, vector<1x32x32xbf16>
    %109 = vector.shape_cast %108 : vector<1x32x32xbf16> to vector<32x32xbf16>
    %cst_78 = arith.constant dense<0.000000e+00> : vector<64x32xf32>
    %110 = tpu.matmul %107, %109, %cst_78 {dimension_numbers = #tpu.dot_dimension_numbers<[1], [0], [0], [1], [0, 0, 1, 1], [], []>} : vector<64x32xbf16>, vector<32x32xbf16>, vector<64x32xf32> -> vector<64x32xf32>
    %c8_79 = arith.constant 8 : index
    %c0_80 = arith.constant 0 : index
    %c0_81 = arith.constant 0 : index
    %111 = vector.load %arg7[%c8_79, %c0_80, %c0_81] : memref<16x1x32xf32, #tpu.memory_space<vmem>>, vector<1x1x32xf32>
    %112 = vector.shape_cast %111 : vector<1x1x32xf32> to vector<1x32xf32>
    %113 = vector.broadcast %112 : vector<1x32xf32> to vector<64x32xf32>
    %114 = arith.addf %110, %113 : vector<64x32xf32>
    %cst_82 = arith.constant 0.000000e+00 : f32
    %115 = vector.broadcast %cst_82 : f32 to vector<64x32xf32>
    %116 = arith.maximumf %114, %115 : vector<64x32xf32>
    %117 = arith.truncf %116 : vector<64x32xf32> to vector<64x32xbf16>
    %c9 = arith.constant 9 : index
    %c0_83 = arith.constant 0 : index
    %c0_84 = arith.constant 0 : index
    %118 = vector.load %arg6[%c9, %c0_83, %c0_84] : memref<16x32x32xbf16, #tpu.memory_space<vmem>>, vector<1x32x32xbf16>
    %119 = vector.shape_cast %118 : vector<1x32x32xbf16> to vector<32x32xbf16>
    %cst_85 = arith.constant dense<0.000000e+00> : vector<64x32xf32>
    %120 = tpu.matmul %117, %119, %cst_85 {dimension_numbers = #tpu.dot_dimension_numbers<[1], [0], [0], [1], [0, 0, 1, 1], [], []>} : vector<64x32xbf16>, vector<32x32xbf16>, vector<64x32xf32> -> vector<64x32xf32>
    %c9_86 = arith.constant 9 : index
    %c0_87 = arith.constant 0 : index
    %c0_88 = arith.constant 0 : index
    %121 = vector.load %arg7[%c9_86, %c0_87, %c0_88] : memref<16x1x32xf32, #tpu.memory_space<vmem>>, vector<1x1x32xf32>
    %122 = vector.shape_cast %121 : vector<1x1x32xf32> to vector<1x32xf32>
    %123 = vector.broadcast %122 : vector<1x32xf32> to vector<64x32xf32>
    %124 = arith.addf %120, %123 : vector<64x32xf32>
    %cst_89 = arith.constant 0.000000e+00 : f32
    %125 = vector.broadcast %cst_89 : f32 to vector<64x32xf32>
    %126 = arith.maximumf %124, %125 : vector<64x32xf32>
    %127 = arith.addf %106, %126 : vector<64x32xf32>
    %128 = arith.truncf %127 : vector<64x32xf32> to vector<64x32xbf16>
    %c10 = arith.constant 10 : index
    %c0_90 = arith.constant 0 : index
    %c0_91 = arith.constant 0 : index
    %129 = vector.load %arg6[%c10, %c0_90, %c0_91] : memref<16x32x32xbf16, #tpu.memory_space<vmem>>, vector<1x32x32xbf16>
    %130 = vector.shape_cast %129 : vector<1x32x32xbf16> to vector<32x32xbf16>
    %cst_92 = arith.constant dense<0.000000e+00> : vector<64x32xf32>
    %131 = tpu.matmul %128, %130, %cst_92 {dimension_numbers = #tpu.dot_dimension_numbers<[1], [0], [0], [1], [0, 0, 1, 1], [], []>} : vector<64x32xbf16>, vector<32x32xbf16>, vector<64x32xf32> -> vector<64x32xf32>
    %c10_93 = arith.constant 10 : index
    %c0_94 = arith.constant 0 : index
    %c0_95 = arith.constant 0 : index
    %132 = vector.load %arg7[%c10_93, %c0_94, %c0_95] : memref<16x1x32xf32, #tpu.memory_space<vmem>>, vector<1x1x32xf32>
    %133 = vector.shape_cast %132 : vector<1x1x32xf32> to vector<1x32xf32>
    %134 = vector.broadcast %133 : vector<1x32xf32> to vector<64x32xf32>
    %135 = arith.addf %131, %134 : vector<64x32xf32>
    %cst_96 = arith.constant 0.000000e+00 : f32
    %136 = vector.broadcast %cst_96 : f32 to vector<64x32xf32>
    %137 = arith.maximumf %135, %136 : vector<64x32xf32>
    %138 = arith.truncf %137 : vector<64x32xf32> to vector<64x32xbf16>
    %c11 = arith.constant 11 : index
    %c0_97 = arith.constant 0 : index
    %c0_98 = arith.constant 0 : index
    %139 = vector.load %arg6[%c11, %c0_97, %c0_98] : memref<16x32x32xbf16, #tpu.memory_space<vmem>>, vector<1x32x32xbf16>
    %140 = vector.shape_cast %139 : vector<1x32x32xbf16> to vector<32x32xbf16>
    %cst_99 = arith.constant dense<0.000000e+00> : vector<64x32xf32>
    %141 = tpu.matmul %138, %140, %cst_99 {dimension_numbers = #tpu.dot_dimension_numbers<[1], [0], [0], [1], [0, 0, 1, 1], [], []>} : vector<64x32xbf16>, vector<32x32xbf16>, vector<64x32xf32> -> vector<64x32xf32>
    %c11_100 = arith.constant 11 : index
    %c0_101 = arith.constant 0 : index
    %c0_102 = arith.constant 0 : index
    %142 = vector.load %arg7[%c11_100, %c0_101, %c0_102] : memref<16x1x32xf32, #tpu.memory_space<vmem>>, vector<1x1x32xf32>
    %143 = vector.shape_cast %142 : vector<1x1x32xf32> to vector<1x32xf32>
    %144 = vector.broadcast %143 : vector<1x32xf32> to vector<64x32xf32>
    %145 = arith.addf %141, %144 : vector<64x32xf32>
    %cst_103 = arith.constant 0.000000e+00 : f32
    %146 = vector.broadcast %cst_103 : f32 to vector<64x32xf32>
    %147 = arith.maximumf %145, %146 : vector<64x32xf32>
    %148 = arith.addf %127, %147 : vector<64x32xf32>
    %c0_104 = arith.constant 0 : index
    %c0_105 = arith.constant 0 : index
    %149 = vector.load %arg8[%c0_104, %c0_105] : memref<128x256xbf16, #tpu.memory_space<vmem>>, vector<32x64xbf16>
    %150 = arith.truncf %148 : vector<64x32xf32> to vector<64x32xbf16>
    %cst_106 = arith.constant dense<0.000000e+00> : vector<32x32xf32>
    %151 = tpu.matmul %149, %150, %cst_106 {dimension_numbers = #tpu.dot_dimension_numbers<[1], [0], [0], [1], [0, 0, 1, 1], [], []>} : vector<32x64xbf16>, vector<64x32xbf16>, vector<32x32xf32> -> vector<32x32xf32>
    %152 = arith.truncf %151 : vector<32x32xf32> to vector<32x32xbf16>
    %c12 = arith.constant 12 : index
    %c0_107 = arith.constant 0 : index
    %c0_108 = arith.constant 0 : index
    %153 = vector.load %arg6[%c12, %c0_107, %c0_108] : memref<16x32x32xbf16, #tpu.memory_space<vmem>>, vector<1x32x32xbf16>
    %154 = vector.shape_cast %153 : vector<1x32x32xbf16> to vector<32x32xbf16>
    %cst_109 = arith.constant dense<0.000000e+00> : vector<32x32xf32>
    %155 = tpu.matmul %152, %154, %cst_109 {dimension_numbers = #tpu.dot_dimension_numbers<[1], [0], [0], [1], [0, 0, 1, 1], [], []>} : vector<32x32xbf16>, vector<32x32xbf16>, vector<32x32xf32> -> vector<32x32xf32>
    %c12_110 = arith.constant 12 : index
    %c0_111 = arith.constant 0 : index
    %c0_112 = arith.constant 0 : index
    %156 = vector.load %arg7[%c12_110, %c0_111, %c0_112] : memref<16x1x32xf32, #tpu.memory_space<vmem>>, vector<1x1x32xf32>
    %157 = vector.shape_cast %156 : vector<1x1x32xf32> to vector<1x32xf32>
    %158 = vector.broadcast %157 : vector<1x32xf32> to vector<32x32xf32>
    %159 = arith.addf %155, %158 : vector<32x32xf32>
    %cst_113 = arith.constant 0.000000e+00 : f32
    %160 = vector.broadcast %cst_113 : f32 to vector<32x32xf32>
    %161 = arith.maximumf %159, %160 : vector<32x32xf32>
    %162 = arith.truncf %161 : vector<32x32xf32> to vector<32x32xbf16>
    %c13 = arith.constant 13 : index
    %c0_114 = arith.constant 0 : index
    %c0_115 = arith.constant 0 : index
    %163 = vector.load %arg6[%c13, %c0_114, %c0_115] : memref<16x32x32xbf16, #tpu.memory_space<vmem>>, vector<1x32x32xbf16>
    %164 = vector.shape_cast %163 : vector<1x32x32xbf16> to vector<32x32xbf16>
    %cst_116 = arith.constant dense<0.000000e+00> : vector<32x32xf32>
    %165 = tpu.matmul %162, %164, %cst_116 {dimension_numbers = #tpu.dot_dimension_numbers<[1], [0], [0], [1], [0, 0, 1, 1], [], []>} : vector<32x32xbf16>, vector<32x32xbf16>, vector<32x32xf32> -> vector<32x32xf32>
    %c13_117 = arith.constant 13 : index
    %c0_118 = arith.constant 0 : index
    %c0_119 = arith.constant 0 : index
    %166 = vector.load %arg7[%c13_117, %c0_118, %c0_119] : memref<16x1x32xf32, #tpu.memory_space<vmem>>, vector<1x1x32xf32>
    %167 = vector.shape_cast %166 : vector<1x1x32xf32> to vector<1x32xf32>
    %168 = vector.broadcast %167 : vector<1x32xf32> to vector<32x32xf32>
    %169 = arith.addf %165, %168 : vector<32x32xf32>
    %cst_120 = arith.constant 0.000000e+00 : f32
    %170 = vector.broadcast %cst_120 : f32 to vector<32x32xf32>
    %171 = arith.maximumf %169, %170 : vector<32x32xf32>
    %172 = arith.addf %151, %171 : vector<32x32xf32>
    %173 = arith.truncf %172 : vector<32x32xf32> to vector<32x32xbf16>
    %c14 = arith.constant 14 : index
    %c0_121 = arith.constant 0 : index
    %c0_122 = arith.constant 0 : index
    %174 = vector.load %arg6[%c14, %c0_121, %c0_122] : memref<16x32x32xbf16, #tpu.memory_space<vmem>>, vector<1x32x32xbf16>
    %175 = vector.shape_cast %174 : vector<1x32x32xbf16> to vector<32x32xbf16>
    %cst_123 = arith.constant dense<0.000000e+00> : vector<32x32xf32>
    %176 = tpu.matmul %173, %175, %cst_123 {dimension_numbers = #tpu.dot_dimension_numbers<[1], [0], [0], [1], [0, 0, 1, 1], [], []>} : vector<32x32xbf16>, vector<32x32xbf16>, vector<32x32xf32> -> vector<32x32xf32>
    %c14_124 = arith.constant 14 : index
    %c0_125 = arith.constant 0 : index
    %c0_126 = arith.constant 0 : index
    %177 = vector.load %arg7[%c14_124, %c0_125, %c0_126] : memref<16x1x32xf32, #tpu.memory_space<vmem>>, vector<1x1x32xf32>
    %178 = vector.shape_cast %177 : vector<1x1x32xf32> to vector<1x32xf32>
    %179 = vector.broadcast %178 : vector<1x32xf32> to vector<32x32xf32>
    %180 = arith.addf %176, %179 : vector<32x32xf32>
    %cst_127 = arith.constant 0.000000e+00 : f32
    %181 = vector.broadcast %cst_127 : f32 to vector<32x32xf32>
    %182 = arith.maximumf %180, %181 : vector<32x32xf32>
    %183 = arith.truncf %182 : vector<32x32xf32> to vector<32x32xbf16>
    %c15 = arith.constant 15 : index
    %c0_128 = arith.constant 0 : index
    %c0_129 = arith.constant 0 : index
    %184 = vector.load %arg6[%c15, %c0_128, %c0_129] : memref<16x32x32xbf16, #tpu.memory_space<vmem>>, vector<1x32x32xbf16>
    %185 = vector.shape_cast %184 : vector<1x32x32xbf16> to vector<32x32xbf16>
    %cst_130 = arith.constant dense<0.000000e+00> : vector<32x32xf32>
    %186 = tpu.matmul %183, %185, %cst_130 {dimension_numbers = #tpu.dot_dimension_numbers<[1], [0], [0], [1], [0, 0, 1, 1], [], []>} : vector<32x32xbf16>, vector<32x32xbf16>, vector<32x32xf32> -> vector<32x32xf32>
    %c15_131 = arith.constant 15 : index
    %c0_132 = arith.constant 0 : index
    %c0_133 = arith.constant 0 : index
    %187 = vector.load %arg7[%c15_131, %c0_132, %c0_133] : memref<16x1x32xf32, #tpu.memory_space<vmem>>, vector<1x1x32xf32>
    %188 = vector.shape_cast %187 : vector<1x1x32xf32> to vector<1x32xf32>
    %189 = vector.broadcast %188 : vector<1x32xf32> to vector<32x32xf32>
    %190 = arith.addf %186, %189 : vector<32x32xf32>
    %cst_134 = arith.constant 0.000000e+00 : f32
    %191 = vector.broadcast %cst_134 : f32 to vector<32x32xf32>
    %192 = arith.maximumf %190, %191 : vector<32x32xf32>
    %193 = arith.addf %172, %192 : vector<32x32xf32>
    %c0_135 = arith.constant 0 : index
    %c0_136 = arith.constant 0 : index
    %194 = vector.load %arg9[%c0_135, %c0_136] : memref<4x32xbf16, #tpu.memory_space<vmem>>, vector<4x32xbf16>
    %195 = arith.truncf %193 : vector<32x32xf32> to vector<32x32xbf16>
    %cst_137 = arith.constant dense<0.000000e+00> : vector<4x32xf32>
    %196 = tpu.matmul %194, %195, %cst_137 {dimension_numbers = #tpu.dot_dimension_numbers<[1], [0], [0], [1], [0, 0, 1, 1], [], []>} : vector<4x32xbf16>, vector<32x32xbf16>, vector<4x32xf32> -> vector<4x32xf32>
    %cst_138 = arith.constant 1.250000e-01 : f32
    %197 = vector.broadcast %cst_138 : f32 to vector<4x32xf32>
    %198 = arith.mulf %196, %197 : vector<4x32xf32>
    %199 = arith.truncf %198 : vector<4x32xf32> to vector<4x32xbf16>
    %c0_139 = arith.constant 0 : index
    %c0_140 = arith.constant 0 : index
    %200 = vector.load %arg10[%c0_139, %c0_140] : memref<32x128xbf16, #tpu.memory_space<vmem>>, vector<32x128xbf16>
    %cst_141 = arith.constant dense<0.000000e+00> : vector<4x128xf32>
    %201 = tpu.matmul %199, %200, %cst_141 {dimension_numbers = #tpu.dot_dimension_numbers<[1], [0], [0], [1], [0, 0, 1, 1], [], []>} : vector<4x32xbf16>, vector<32x128xbf16>, vector<4x128xf32> -> vector<4x128xf32>
    %c0_142 = arith.constant 0 : index
    %c0_143 = arith.constant 0 : index
    %202 = vector.load %arg11[%c0_142, %c0_143] : memref<1x128xf32, #tpu.memory_space<vmem>>, vector<1x128xf32>
    %203 = vector.broadcast %202 : vector<1x128xf32> to vector<4x128xf32>
    %204 = arith.addf %201, %203 : vector<4x128xf32>
    %205 = vector.shape_cast %204 : vector<4x128xf32> to vector<1x4x128xf32>
    %c0_144 = arith.constant 0 : index
    %c0_145 = arith.constant 0 : index
    %c0_146 = arith.constant 0 : index
    %206 = vector.load %arg12[%c0_144, %c0_145, %c0_146] : memref<1x4x128xf32, #tpu.memory_space<vmem>>, vector<1x4x128xf32>
    tpu.vector_store %arg12[%c0_144, %c0_145, %c0_146], %205 {strides = array<i32>} : memref<1x4x128xf32, #tpu.memory_space<vmem>>, vector<1x4x128xf32>,
    return
  }
  func.func @transform_0(%arg0: i32) -> (i32, i32, i32) {
    %c0_i32 = arith.constant 0 : i32
    %c0_i32_0 = arith.constant 0 : i32
    %c0_i32_1 = arith.constant 0 : i32
    return %arg0, %c0_i32, %c0_i32_0 : i32, i32, i32
  }
  func.func @transform_1(%arg0: i32) -> (i32, i32) {
    %c0_i32 = arith.constant 0 : i32
    %c0_i32_0 = arith.constant 0 : i32
    %c0_i32_1 = arith.constant 0 : i32
    return %c0_i32, %c0_i32_0 : i32, i32
  }
  func.func @transform_2(%arg0: i32) -> (i32, i32) {
    %c0_i32 = arith.constant 0 : i32
    %c0_i32_0 = arith.constant 0 : i32
    %c0_i32_1 = arith.constant 0 : i32
    return %c0_i32, %c0_i32_0 : i32, i32
  }
  func.func @transform_3(%arg0: i32) -> (i32, i32) {
    %c0_i32 = arith.constant 0 : i32
    %c0_i32_0 = arith.constant 0 : i32
    %c0_i32_1 = arith.constant 0 : i32
    return %c0_i32, %c0_i32_0 : i32, i32
  }
  func.func @transform_4(%arg0: i32) -> (i32, i32) {
    %c0_i32 = arith.constant 0 : i32
    %c0_i32_0 = arith.constant 0 : i32
    %c0_i32_1 = arith.constant 0 : i32
    return %c0_i32, %c0_i32_0 : i32, i32
  }
  func.func @transform_5(%arg0: i32) -> (i32, i32, i32) {
    %c0_i32 = arith.constant 0 : i32
    %c0_i32_0 = arith.constant 0 : i32
    %c0_i32_1 = arith.constant 0 : i32
    %c0_i32_2 = arith.constant 0 : i32
    return %c0_i32, %c0_i32_0, %c0_i32_1 : i32, i32, i32
  }
  func.func @transform_6(%arg0: i32) -> (i32, i32, i32) {
    %c0_i32 = arith.constant 0 : i32
    %c0_i32_0 = arith.constant 0 : i32
    %c0_i32_1 = arith.constant 0 : i32
    %c0_i32_2 = arith.constant 0 : i32
    return %c0_i32, %c0_i32_0, %c0_i32_1 : i32, i32, i32
  }
  func.func @transform_7(%arg0: i32) -> (i32, i32) {
    %c0_i32 = arith.constant 0 : i32
    %c0_i32_0 = arith.constant 0 : i32
    %c0_i32_1 = arith.constant 0 : i32
    return %c0_i32, %c0_i32_0 : i32, i32
  }
  func.func @transform_8(%arg0: i32) -> (i32, i32) {
    %c0_i32 = arith.constant 0 : i32
    %c0_i32_0 = arith.constant 0 : i32
    %c0_i32_1 = arith.constant 0 : i32
    return %c0_i32, %c0_i32_0 : i32, i32
  }
  func.func @transform_9(%arg0: i32) -> (i32, i32) {
    %c0_i32 = arith.constant 0 : i32
    %c0_i32_0 = arith.constant 0 : i32
    %c0_i32_1 = arith.constant 0 : i32
    return %c0_i32, %c0_i32_0 : i32, i32
  }
  func.func @transform_10(%arg0: i32) -> (i32, i32) {
    %c0_i32 = arith.constant 0 : i32
    %c0_i32_0 = arith.constant 0 : i32
    %c0_i32_1 = arith.constant 0 : i32
    return %c0_i32, %c0_i32_0 : i32, i32
  }
  func.func @transform_11(%arg0: i32) -> (i32, i32, i32) {
    %c0_i32 = arith.constant 0 : i32
    %c0_i32_0 = arith.constant 0 : i32
    %c0_i32_1 = arith.constant 0 : i32
    return %arg0, %c0_i32, %c0_i32_0 : i32, i32, i32
  }
}

</mosaic_0001>

<llo_original>
// kernel: gtr_forward.1
$region0: #{gtr_forward.1}
  #allocation0 [shape = 'u32[]', space=smem, size = 0x4, offset = 0x4, fixed_abs, tag = 'smem constant byte address 0x4 - core index']
  #allocation1 [shape = 'u32[72,128]{1,0:T(1,128)}', space=vmem, size = 0x9000, scoped, tag = 'internal scratch']
  %s0 = inlined_call_operand.vmem [shape: bf16[2,256,80], index: 0, kind: input, shape index: {}]
  %s1 = inlined_call_operand.vmem [shape: bf16[80,80], index: 1, kind: input, shape index: {}]
  %s2 = inlined_call_operand.vmem [shape: f32[1,80], index: 2, kind: input, shape index: {}]
  %s3 = inlined_call_operand.vmem [shape: bf16[80,32], index: 3, kind: input, shape index: {}]
  %s4 = inlined_call_operand.vmem [shape: f32[1,32], index: 4, kind: input, shape index: {}]
  %s5 = inlined_call_operand.vmem [shape: bf16[16,32,32], index: 5, kind: input, shape index: {}]
  %s6 = inlined_call_operand.vmem [shape: f32[16,1,32], index: 6, kind: input, shape index: {}]
  %s7 = inlined_call_operand.vmem [shape: bf16[128,256], index: 7, kind: input, shape index: {}]
  %s8 = inlined_call_operand.vmem [shape: bf16[4,32], index: 8, kind: input, shape index: {}]
  %s9 = inlined_call_operand.vmem [shape: bf16[32,128], index: 9, kind: input, shape index: {}]
  %s10 = inlined_call_operand.vmem [shape: f32[1,128], index: 10, kind: input, shape index: {}]
  %s11 = inlined_call_operand.vmem [shape: f32[2,4,128], index: 11, kind: output, shape index: {}]
  %s12 = sld [smem:[#allocation0]]
  $region77: #{gtr_forward.1} parent=0
    _
  %s14 = ssub.s32 1, %s12
  %s15 = scalar_select 0, %s14, %s12
  loop: start=0, step=1, limit=4
  $region2: #{gtr_forward.1} parent=0 // loop_pre_header
    _
  $region3: #{gtr_forward.1} parent=0 // loop_header
    %s17 = sphi 0, %s21
    %p18 = scmp.ge.s32.totalorder %s17, 4
    %s27 = sphi 0, %s29
    %s30 = sphi 0, %s27
    %s31 = sphi 0, %s30
    %s47 = sphi 0, %s31
    %s51 = sphi 0, %s51
    %s53 = sphi 0, %s51
    %s54 = sphi 0, %s53
    %s68 = sphi 0, %s54
    %s72 = sphi 0, %s72
    %s74 = sphi 0, %s72
    %s75 = sphi 0, %s74
    %s89 = sphi 0, %s75
    %s93 = sphi 0, %s93
    %s95 = sphi 0, %s93
    %s96 = sphi 0, %s95
    %s110 = sphi 0, %s96
    %s114 = sphi 0, %s114
    %s116 = sphi 0, %s114
    %s117 = sphi 0, %s116
    %s131 = sphi 0, %s117
    %s135 = sphi 0, %s135
    %s137 = sphi 0, %s135
    %s138 = sphi 0, %s137
    %s152 = sphi 0, %s138
    %s156 = sphi 0, %s156
    %s158 = sphi 0, %s156
    %s159 = sphi 0, %s158
    %s173 = sphi 0, %s159
    %s177 = sphi 0, %s177
    %s179 = sphi 0, %s177
    %s180 = sphi 0, %s179
    %s194 = sphi 0, %s180
    %s198 = sphi 0, %s198
    %s200 = sphi 0, %s198
    %s201 = sphi 0, %s200
    %s215 = sphi 0, %s201
    %s219 = sphi 0, %s219
    %s221 = sphi 0, %s219
    %s222 = sphi 0, %s221
    %s236 = sphi 0, %s222
    %s240 = sphi 0, %s240
    %s242 = sphi 0, %s240
    %s243 = sphi 0, %s242
    %s257 = sphi 0, %s243
    %s263 = sphi 0, %s265
    %s266 = sphi 0, %s263
    %s267 = sphi 0, %s266
    %s283 = sphi 0, %s267
  $region4: #{gtr_forward.1} parent=0 // loop_header_branch
    %20 = sbr.rel (%p18) target = $region8
  $region5: #{gtr_forward.1} parent=0 // loop_body
    %s22 = ssub.s32 %s17, 1
    %s23 = ssub.s32 %s17, 2
    %s24 = sadd.s32 %s17, 1
    %s25 = ssub.s32 %s17, %s24
    %p26 = scmp.eq.s32.totalorder %s25, 0
    %s28 = sadd.s32 %s27, 1
    %s29 = scalar_select %p26, %s27, %s28
    %p32 = pneg %p26
    %p33 = scmp.eq.s32.totalorder %s17, 1
    %p34 = por %p32, %p33
    %p35 = scmp.ne.s32.totalorder %s27, %s30
    %p36 = scmp.eq.s32.totalorder %s17, 0
    %p37 = por %p35, %p36
    %p38 = scmp.ne.s32.totalorder %s27, %s30
    %p39 = scmp.eq.s32.totalorder %s22, 1
    %p40 = por %p38, %p39
    %p41 = scmp.ne.s32.totalorder %s30, %s31
    %p42 = scmp.eq.s32.totalorder %s22, 0
    %p43 = por %p41, %p42
    %p44 = scmp.ne.s32.totalorder %s30, %s31
    %p45 = scmp.eq.s32.totalorder %s23, 1
    %p46 = por %p44, %p45
    %p48 = scmp.ne.s32.totalorder %s31, %s47
    %p49 = scmp.eq.s32.totalorder %s23, 0
    %p50 = por %p48, %p49
    %s52 = sadd.s32 %s51, 1
    %p55 = scmp.eq.s32.totalorder %s17, 1
    %p56 = scmp.ne.s32.totalorder %s51, %s53
    %p57 = scmp.eq.s32.totalorder %s17, 0
    %p58 = por %p56, %p57
    %p59 = scmp.ne.s32.totalorder %s51, %s53
    %p60 = scmp.eq.s32.totalorder %s22, 1
    %p61 = por %p59, %p60
    %p62 = scmp.ne.s32.totalorder %s53, %s54
    %p63 = scmp.eq.s32.totalorder %s22, 0
    %p64 = por %p62, %p63
    %p65 = scmp.ne.s32.totalorder %s53, %s54
    %p66 = scmp.eq.s32.totalorder %s23, 1
    %p67 = por %p65, %p66
    %p69 = scmp.ne.s32.totalorder %s54, %s68
    %p70 = scmp.eq.s32.totalorder %s23, 0
    %p71 = por %p69, %p70
    %s73 = sadd.s32 %s72, 1
    %p76 = scmp.eq.s32.totalorder %s17, 1
    %p77 = scmp.ne.s32.totalorder %s72, %s74
    %p78 = scmp.eq.s32.totalorder %s17, 0
    %p79 = por %p77, %p78
    %p80 = scmp.ne.s32.totalorder %s72, %s74
    %p81 = scmp.eq.s32.totalorder %s22, 1
    %p82 = por %p80, %p81
    %p83 = scmp.ne.s32.totalorder %s74, %s75
    %p84 = scmp.eq.s32.totalorder %s22, 0
    %p85 = por %p83, %p84
    %p86 = scmp.ne.s32.totalorder %s74, %s75
    %p87 = scmp.eq.s32.totalorder %s23, 1
    %p88 = por %p86, %p87
    %p90 = scmp.ne.s32.totalorder %s75, %s89
    %p91 = scmp.eq.s32.totalorder %s23, 0
    %p92 = por %p90, %p91
    %s94 = sadd.s32 %s93, 1
    %p97 = scmp.eq.s32.totalorder %s17, 1
    %p98 = scmp.ne.s32.totalorder %s93, %s95
    %p99 = scmp.eq.s32.totalorder %s17, 0
    %p100 = por %p98, %p99
    %p101 = scmp.ne.s32.totalorder %s93, %s95
    %p102 = scmp.eq.s32.totalorder %s22, 1
    %p103 = por %p101, %p102
    %p104 = scmp.ne.s32.totalorder %s95, %s96
    %p105 = scmp.eq.s32.totalorder %s22, 0
    %p106 = por %p104, %p105
    %p107 = scmp.ne.s32.totalorder %s95, %s96
    %p108 = scmp.eq.s32.totalorder %s23, 1
    %p109 = por %p107, %p108
    %p111 = scmp.ne.s32.totalorder %s96, %s110
    %p112 = scmp.eq.s32.totalorder %s23, 0
    %p113 = por %p111, %p112
    %s115 = sadd.s32 %s114, 1
    %p118 = scmp.eq.s32.totalorder %s17, 1
    %p119 = scmp.ne.s32.totalorder %s114, %s116
    %p120 = scmp.eq.s32.totalorder %s17, 0
    %p121 = por %p119, %p120
    %p122 = scmp.ne.s32.totalorder %s114, %s116
    %p123 = scmp.eq.s32.totalorder %s22, 1
    %p124 = por %p122, %p123
    %p125 = scmp.ne.s32.totalorder %s116, %s117
    %p126 = scmp.eq.s32.totalorder %s22, 0
    %p127 = por %p125, %p126
    %p128 = scmp.ne.s32.totalorder %s116, %s117
    %p129 = scmp.eq.s32.totalorder %s23, 1
    %p130 = por %p128, %p129
    %p132 = scmp.ne.s32.totalorder %s117, %s131
    %p133 = scmp.eq.s32.totalorder %s23, 0
    %p134 = por %p132, %p133
    %s136 = sadd.s32 %s135, 1
    %p139 = scmp.eq.s32.totalorder %s17, 1
    %p140 = scmp.ne.s32.totalorder %s135, %s137
    %p141 = scmp.eq.s32.totalorder %s17, 0
    %p142 = por %p140, %p141
    %p143 = scmp.ne.s32.totalorder %s135, %s137
    %p144 = scmp.eq.s32.totalorder %s22, 1
    %p145 = por %p143, %p144
    %p146 = scmp.ne.s32.totalorder %s137, %s138
    %p147 = scmp.eq.s32.totalorder %s22, 0
    %p148 = por %p146, %p147
    %p149 = scmp.ne.s32.totalorder %s137, %s138
    %p150 = scmp.eq.s32.totalorder %s23, 1
    %p151 = por %p149, %p150
    %p153 = scmp.ne.s32.totalorder %s138, %s152
    %p154 = scmp.eq.s32.totalorder %s23, 0
    %p155 = por %p153, %p154
    %s157 = sadd.s32 %s156, 1
    %p160 = scmp.eq.s32.totalorder %s17, 1
    %p161 = scmp.ne.s32.totalorder %s156, %s158
    %p162 = scmp.eq.s32.totalorder %s17, 0
    %p163 = por %p161, %p162
    %p164 = scmp.ne.s32.totalorder %s156, %s158
    %p165 = scmp.eq.s32.totalorder %s22, 1
    %p166 = por %p164, %p165
    %p167 = scmp.ne.s32.totalorder %s158, %s159
    %p168 = scmp.eq.s32.totalorder %s22, 0
    %p169 = por %p167, %p168
    %p170 = scmp.ne.s32.totalorder %s158, %s159
    %p171 = scmp.eq.s32.totalorder %s23, 1
    %p172 = por %p170, %p171
    %p174 = scmp.ne.s32.totalorder %s159, %s173
    %p175 = scmp.eq.s32.totalorder %s23, 0
    %p176 = por %p174, %p175
    %s178 = sadd.s32 %s177, 1
    %p181 = scmp.eq.s32.totalorder %s17, 1
    %p182 = scmp.ne.s32.totalorder %s177, %s179
    %p183 = scmp.eq.s32.totalorder %s17, 0
    %p184 = por %p182, %p183
    %p185 = scmp.ne.s32.totalorder %s177, %s179
    %p186 = scmp.eq.s32.totalorder %s22, 1
    %p187 = por %p185, %p186
    %p188 = scmp.ne.s32.totalorder %s179, %s180
    %p189 = scmp.eq.s32.totalorder %s22, 0
    %p190 = por %p188, %p189
    %p191 = scmp.ne.s32.totalorder %s179, %s180
    %p192 = scmp.eq.s32.totalorder %s23, 1
    %p193 = por %p191, %p192
    %p195 = scmp.ne.s32.totalorder %s180, %s194
    %p196 = scmp.eq.s32.totalorder %s23, 0
    %p197 = por %p195, %p196
    %s199 = sadd.s32 %s198, 1
    %p202 = scmp.eq.s32.totalorder %s17, 1
    %p203 = scmp.ne.s32.totalorder %s198, %s200
    %p204 = scmp.eq.s32.totalorder %s17, 0
    %p205 = por %p203, %p204
    %p206 = scmp.ne.s32.totalorder %s198, %s200
    %p207 = scmp.eq.s32.totalorder %s22, 1
    %p208 = por %p206, %p207
    %p209 = scmp.ne.s32.totalorder %s200, %s201
    %p210 = scmp.eq.s32.totalorder %s22, 0
    %p211 = por %p209, %p210
    %p212 = scmp.ne.s32.totalorder %s200, %s201
    %p213 = scmp.eq.s32.totalorder %s23, 1
    %p214 = por %p212, %p213
    %p216 = scmp.ne.s32.totalorder %s201, %s215
    %p217 = scmp.eq.s32.totalorder %s23, 0
    %p218 = por %p216, %p217
    %s220 = sadd.s32 %s219, 1
    %p223 = scmp.eq.s32.totalorder %s17, 1
    %p224 = scmp.ne.s32.totalorder %s219, %s221
    %p225 = scmp.eq.s32.totalorder %s17, 0
    %p226 = por %p224, %p225
    %p227 = scmp.ne.s32.totalorder %s219, %s221
    %p228 = scmp.eq.s32.totalorder %s22, 1
    %p229 = por %p227, %p228
    %p230 = scmp.ne.s32.totalorder %s221, %s222
    %p231 = scmp.eq.s32.totalorder %s22, 0
    %p232 = por %p230, %p231
    %p233 = scmp.ne.s32.totalorder %s221, %s222
    %p234 = scmp.eq.s32.totalorder %s23, 1
    %p235 = por %p233, %p234
    %p237 = scmp.ne.s32.totalorder %s222, %s236
    %p238 = scmp.eq.s32.totalorder %s23, 0
    %p239 = por %p237, %p238
    %s241 = sadd.s32 %s240, 1
    %p244 = scmp.eq.s32.totalorder %s17, 1
    %p245 = scmp.ne.s32.totalorder %s240, %s242
    %p246 = scmp.eq.s32.totalorder %s17, 0
    %p247 = por %p245, %p246
    %p248 = scmp.ne.s32.totalorder %s240, %s242
    %p249 = scmp.eq.s32.totalorder %s22, 1
    %p250 = por %p248, %p249
    %p251 = scmp.ne.s32.totalorder %s242, %s243
    %p252 = scmp.eq.s32.totalorder %s22, 0
    %p253 = por %p251, %p252
    %p254 = scmp.ne.s32.totalorder %s242, %s243
    %p255 = scmp.eq.s32.totalorder %s23, 1
    %p256 = por %p254, %p255
    %p258 = scmp.ne.s32.totalorder %s243, %s257
    %p259 = scmp.eq.s32.totalorder %s23, 0
    %p260 = por %p258, %p259
    %s261 = ssub.s32 %s17, %s24
    %p262 = scmp.eq.s32.totalorder %s261, 0
    %s264 = sadd.s32 %s263, 1
    %s265 = scalar_select %p262, %s263, %s264
    %p268 = pneg %p262
    %p269 = scmp.eq.s32.totalorder %s17, 1
    %p270 = por %p268, %p269
    %p271 = scmp.ne.s32.totalorder %s263, %s266
    %p272 = scmp.eq.s32.totalorder %s17, 0
    %p273 = por %p271, %p272
    %p274 = scmp.ne.s32.totalorder %s263, %s266
    %p275 = scmp.eq.s32.totalorder %s22, 1
    %p276 = por %p274, %p275
    %p277 = scmp.ne.s32.totalorder %s266, %s267
    %p278 = scmp.eq.s32.totalorder %s22, 0
    %p279 = por %p277, %p278
    %p280 = scmp.ne.s32.totalorder %s266, %s267
    %p281 = scmp.eq.s32.totalorder %s23, 1
    %p282 = por %p280, %p281
    %p284 = scmp.ne.s32.totalorder %s267, %s283
    %p285 = scmp.eq.s32.totalorder %s23, 0
    %p286 = por %p284, %p285
    %p287 = scmp.le.s32.totalorder 1, %s17
    %p288 = scmp.lt.s32.totalorder %s17, 3
    %p289 = pnand %p287, %p288
    %p290 = pneg %p289
    // Predicated region
    $region9: #{gtr_forward.1} parent=5 // pred_check
      _
    $region10: #{gtr_forward.1} parent=5 // pred_check_branch
      %292 = sbr.rel (%p289) target = $region12
    $region11: #{gtr_forward.1} parent=5 // pred_region
      %s293 = ssub.s32 %s17, 1
      // Predicated region
      $region13: #{gtr_forward.1} parent=11 // pred_check
        %p294 = pneg %p64
      $region14: #{gtr_forward.1} parent=11 // pred_check_branch
        %296 = sbr.rel (%p294) target = $region16
      $region15: #{gtr_forward.1} parent=11 // pred_region
        _
      $region16: #{gtr_forward.1} parent=11 // pred_fallthru
        _
      // Predicated region
      $region17: #{gtr_forward.1} parent=11 // pred_check
        %p297 = pneg %p85
      $region18: #{gtr_forward.1} parent=11 // pred_check_branch
        %299 = sbr.rel (%p297) target = $region20
      $region19: #{gtr_forward.1} parent=11 // pred_region
        _
      $region20: #{gtr_forward.1} parent=11 // pred_fallthru
        _
      // Predicated region
      $region21: #{gtr_forward.1} parent=11 // pred_check
        %p300 = pneg %p106
      $region22: #{gtr_forward.1} parent=11 // pred_check_branch
        %302 = sbr.rel (%p300) target = $region24
      $region23: #{gtr_forward.1} parent=11 // pred_region
        _
      $region24: #{gtr_forward.1} parent=11 // pred_fallthru
        _
      // Predicated region
      $region25: #{gtr_forward.1} parent=11 // pred_check
        %p303 = pneg %p127
      $region26: #{gtr_forward.1} parent=11 // pred_check_branch
        %305 = sbr.rel (%p303) target = $region28
      $region27: #{gtr_forward.1} parent=11 // pred_region
        _
      $region28: #{gtr_forward.1} parent=11 // pred_fallthru
        _
      // Predicated region
      $region29: #{gtr_forward.1} parent=11 // pred_check
        %p306 = pneg %p148
      $region30: #{gtr_forward.1} parent=11 // pred_check_branch
        %308 = sbr.rel (%p306) target = $region32
      $region31: #{gtr_forward.1} parent=11 // pred_region
        _
      $region32: #{gtr_forward.1} parent=11 // pred_fallthru
        _
      // Predicated region
      $region33: #{gtr_forward.1} parent=11 // pred_check
        %p309 = pneg %p169
      $region34: #{gtr_forward.1} parent=11 // pred_check_branch
        %311 = sbr.rel (%p309) target = $region36
      $region35: #{gtr_forward.1} parent=11 // pred_region
        _
      $region36: #{gtr_forward.1} parent=11 // pred_fallthru
        _
      // Predicated region
      $region37: #{gtr_forward.1} parent=11 // pred_check
        %p312 = pneg %p190
      $region38: #{gtr_forward.1} parent=11 // pred_check_branch
        %314 = sbr.rel (%p312) target = $region40
      $region39: #{gtr_forward.1} parent=11 // pred_region
        _
      $region40: #{gtr_forward.1} parent=11 // pred_fallthru
        _
      // Predicated region
      $region41: #{gtr_forward.1} parent=11 // pred_check
        %p315 = pneg %p211
      $region42: #{gtr_forward.1} parent=11 // pred_check_branch
        %317 = sbr.rel (%p315) target = $region44
      $region43: #{gtr_forward.1} parent=11 // pred_region
        _
      $region44: #{gtr_forward.1} parent=11 // pred_fallthru
        _
      // Predicated region
      $region45: #{gtr_forward.1} parent=11 // pred_check
        %p318 = pneg %p232
      $region46: #{gtr_forward.1} parent=11 // pred_check_branch
        %320 = sbr.rel (%p318) target = $region48
      $region47: #{gtr_forward.1} parent=11 // pred_region
        _
      $region48: #{gtr_forward.1} parent=11 // pred_fallthru
        _
      // Predicated region
      $region49: #{gtr_forward.1} parent=11 // pred_check
        %p321 = pneg %p253
      $region50: #{gtr_forward.1} parent=11 // pred_check_branch
        %323 = sbr.rel (%p321) target = $region52
      $region51: #{gtr_forward.1} parent=11 // pred_region
        _
      $region52: #{gtr_forward.1} parent=11 // pred_fallthru
        _
    $region12: #{gtr_forward.1} parent=5 // pred_fallthru
      _
    %p324 = scmp.lt.s32.totalorder %s17, 2
    // Predicated region
    $region53: #{gtr_forward.1} parent=5 // pred_check
      %p325 = pneg %p324
    $region54: #{gtr_forward.1} parent=5 // pred_check_branch
      %327 = sbr.rel (%p325) target = $region56
    $region55: #{gtr_forward.1} parent=5 // pred_region
      // Predicated region
      $region57: #{gtr_forward.1} parent=55 // pred_check
        %p328 = pneg %p37
      $region58: #{gtr_forward.1} parent=55 // pred_check_branch
        %330 = sbr.rel (%p328) target = $region60
      $region59: #{gtr_forward.1} parent=55 // pred_region
        %p331 = scmp.lt.s32.totalorder %s17, 1
        %s332 = scalar_select %p331, %s17, 1
        %s333 = smul.addr %s332, 32
        %s334 = smul.addr %s333, 4
        %s335 = scalar_lea.vmem %s0, %s334
      $region60: #{gtr_forward.1} parent=55 // pred_fallthru
        _
    $region56: #{gtr_forward.1} parent=5 // pred_fallthru
      _
    %p336 = scmp.le.s32.totalorder 1, %s17
    %p337 = scmp.lt.s32.totalorder %s17, 3
    %p338 = pnand %p336, %p337
    %p339 = pneg %p338
    // Predicated region
    $region61: #{gtr_forward.1} parent=5 // pred_check
      _
    $region62: #{gtr_forward.1} parent=5 // pred_check_branch
      %341 = sbr.rel (%p338) target = $region64
    $region63: #{gtr_forward.1} parent=5 // pred_region
      %s342 = ssub.s32 %s17, 1
      %p343 = scmp.lt.s32.totalorder %s22, 1
      %s344 = scalar_select %p343, %s22, 1
      %s345 = smul.addr %s344, 32
      %s346 = smul.addr %s345, 4
      %s347 = scalar_lea.vmem %s0, %s346
      %p348 = pneg %p43
      %p349 = pneg %p40
      %p350 = pneg %p64
      %p351 = pneg %p61
      %p352 = pneg %p85
      %p353 = pneg %p82
      %p354 = pneg %p106
      %p355 = pneg %p103
      %p356 = pneg %p127
      %p357 = pneg %p124
      %p358 = pneg %p148
      %p359 = pneg %p145
      %p360 = pneg %p169
      %p361 = pneg %p166
      %p362 = pneg %p190
      %p363 = pneg %p187
      %p364 = pneg %p211
      %p365 = pneg %p208
      %p366 = pneg %p232
      %p367 = pneg %p229
      %p368 = pneg %p253
      %p369 = pneg %p250
      %p370 = pneg %p279
      %p371 = pneg %p276
      %p372 = scmp.lt.s32.totalorder %s22, 1
      %s373 = scalar_select %p372, %s22, 1
      %s374 = smul.addr %s373, 4
      %s375 = scalar_lea.vmem %s11, %s374
      %p376 = scmp.lt.s32.totalorder %s22, 1
      %s377 = scalar_select %p376, %s22, 1
      %s378 = smul.addr %s377, 32
      %s379 = smul.addr %s378, 4
      %s380 = scalar_lea.vmem %s0, %s379
      %p381 = scmp.lt.s32.totalorder %s22, 1
      %s382 = scalar_select %p381, %s22, 1
      %s383 = smul.addr %s382, 4
      %s384 = scalar_lea.vmem %s11, %s383
      %v386 = vld [vmem:[%s380] sm:$0xf]
      %v387 = vld [vmem:[%s380 + $0x4] sm:$0xf]
      %v388 = vld [vmem:[%s380 + $0x8] sm:$0xf]
      %v389 = vld [vmem:[%s380 + $0xc] sm:$0xf]
      %v390 = vld [vmem:[%s380 + $0x10] sm:$0xf]
      %v391 = vld [vmem:[%s380 + $0x14] sm:$0xf]
      %v392 = vld [vmem:[%s380 + $0x18] sm:$0xf]
      %v393 = vld [vmem:[%s380 + $0x1c] sm:$0xf]
      %v394 = vld [vmem:[%s380 + $0x20] sm:$0xf]
      %v395 = vld [vmem:[%s380 + $0x24] sm:$0xf]
      %v396 = vld [vmem:[%s380 + $0x28] sm:$0xf]
      %v397 = vld [vmem:[%s380 + $0x2c] sm:$0xf]
      %v398 = vld [vmem:[%s380 + $0x30] sm:$0xf]
      %v399 = vld [vmem:[%s380 + $0x34] sm:$0xf]
      %v400 = vld [vmem:[%s380 + $0x38] sm:$0xf]
      %v401 = vld [vmem:[%s380 + $0x3c] sm:$0xf]
      %v402 = vld [vmem:[%s380 + $0x40] sm:$0xf]
      %v403 = vld [vmem:[%s380 + $0x44] sm:$0xf]
      %v404 = vld [vmem:[%s380 + $0x48] sm:$0xf]
      %v405 = vld [vmem:[%s380 + $0x4c] sm:$0xf]
      %v406 = vld [vmem:[%s380 + $0x50] sm:$0xf]
      %v407 = vld [vmem:[%s380 + $0x54] sm:$0xf]
      %v408 = vld [vmem:[%s380 + $0x58] sm:$0xf]
      %v409 = vld [vmem:[%s380 + $0x5c] sm:$0xf]
      %v410 = vld [vmem:[%s380 + $0x60] sm:$0xf]
      %v411 = vld [vmem:[%s380 + $0x64] sm:$0xf]
      %v412 = vld [vmem:[%s380 + $0x68] sm:$0xf]
      %v413 = vld [vmem:[%s380 + $0x6c] sm:$0xf]
      %v414 = vld [vmem:[%s380 + $0x70] sm:$0xf]
      %v415 = vld [vmem:[%s380 + $0x74] sm:$0xf]
      %v416 = vld [vmem:[%s380 + $0x78] sm:$0xf]
      %v417 = vld [vmem:[%s380 + $0x7c] sm:$0xf]
      %v418 = vld [vmem:[%s1] sm:$0xf]
      %v419 = vld [vmem:[%s1 + $0x4] sm:$0xf]
      %v420 = vld [vmem:[%s1 + $0x8] sm:$0xf]
      %v421 = vld [vmem:[%s1 + $0xc] sm:$0xf]
      %v422 = vld [vmem:[%s1 + $0x10] sm:$0xf]
      %v423 = vld [vmem:[%s1 + $0x14] sm:$0xf]
      %v424 = vld [vmem:[%s1 + $0x18] sm:$0xf]
      %v425 = vld [vmem:[%s1 + $0x1c] sm:$0xf]
      %v426 = vld [vmem:[%s1 + $0x20] sm:$0xf]
      %v427 = vld [vmem:[%s1 + $0x24] sm:$0xf]
      %v428 = vld [vmem:[%s2] sm:$0x1]
      %v430 = vperm.slane %v428, 0
      %v464 = vunpack.c.l.b16 %v386
      %v465 = vunpack.c.l.b16 %v387
      %v466 = vunpack.c.l.b16 %v388
      %v467 = vunpack.c.l.b16 %v389
      %v468 = vunpack.c.l.b16 %v390
      %v469 = vunpack.c.l.b16 %v391
      %v470 = vunpack.c.l.b16 %v392
      %v471 = vunpack.c.l.b16 %v393
      %v472 = vunpack.c.l.b16 %v394
      %v473 = vunpack.c.l.b16 %v395
      %v474 = vunpack.c.l.b16 %v396
      %v475 = vunpack.c.l.b16 %v397
      %v476 = vunpack.c.l.b16 %v398
      %v477 = vunpack.c.l.b16 %v399
      %v478 = vunpack.c.l.b16 %v400
      %v479 = vunpack.c.l.b16 %v401
      %v480 = vunpack.c.l.b16 %v402
      %v481 = vunpack.c.l.b16 %v403
      %v482 = vunpack.c.l.b16 %v404
      %v483 = vunpack.c.l.b16 %v405
      %v484 = vunpack.c.l.b16 %v406
      %v485 = vunpack.c.l.b16 %v407
      %v486 = vunpack.c.l.b16 %v408
      %v487 = vunpack.c.l.b16 %v409
      %v488 = vunpack.c.l.b16 %v410
      %v489 = vunpack.c.l.b16 %v411
      %v490 = vunpack.c.l.b16 %v412
      %v491 = vunpack.c.l.b16 %v413
      %v492 = vunpack.c.l.b16 %v414
      %v493 = vunpack.c.l.b16 %v415
      %v494 = vunpack.c.l.b16 %v416
      %v495 = vunpack.c.l.b16 %v417
      %v496 = vpack.c.b16 %v465, %v464
      %v497 = vpack.c.b16 %v467, %v466
      %v498 = vpack.c.b16 %v469, %v468
      %v499 = vpack.c.b16 %v471, %v470
      %v500 = vpack.c.b16 %v473, %v472
      %v501 = vpack.c.b16 %v475, %v474
      %v502 = vpack.c.b16 %v477, %v476
      %v503 = vpack.c.b16 %v479, %v478
      %v504 = vpack.c.b16 %v481, %v480
      %v505 = vpack.c.b16 %v483, %v482
      %v506 = vpack.c.b16 %v485, %v484
      %v507 = vpack.c.b16 %v487, %v486
      %v508 = vpack.c.b16 %v489, %v488
      %v509 = vpack.c.b16 %v491, %v490
      %v510 = vpack.c.b16 %v493, %v492
      %v511 = vpack.c.b16 %v495, %v494
      %v522 = vunpack.c.l.b16 %v418
      %v523 = vunpack.c.l.b16 %v419
      %v524 = vunpack.c.l.b16 %v420
      %v525 = vunpack.c.l.b16 %v421
      %v526 = vunpack.c.l.b16 %v422
      %v527 = vunpack.c.l.b16 %v423
      %v528 = vunpack.c.l.b16 %v424
      %v529 = vunpack.c.l.b16 %v425
      %v530 = vunpack.c.l.b16 %v426
      %v531 = vunpack.c.l.b16 %v427
      %v532 = vpack.c.b16 %v523, %v522
      %v533 = vpack.c.b16 %v525, %v524
      %v534 = vpack.c.b16 %v527, %v526
      %v535 = vpack.c.b16 %v529, %v528
      %v536 = vpack.c.b16 %v531, %v530
      %vm542 = vcmask 654336
      %v544 = vsel %vm542, %v496, 0
      %v547 = vsel %vm542, %v497, 0
      %v550 = vsel %vm542, %v498, 0
      %v553 = vsel %vm542, %v499, 0
      %v556 = vsel %vm542, %v500, 0
      %v559 = vsel %vm542, %v501, 0
      %v562 = vsel %vm542, %v502, 0
      %v565 = vsel %vm542, %v503, 0
      %v568 = vsel %vm542, %v504, 0
      %v571 = vsel %vm542, %v505, 0
      %v574 = vsel %vm542, %v506, 0
      %v577 = vsel %vm542, %v507, 0
      %v580 = vsel %vm542, %v508, 0
      %v583 = vsel %vm542, %v509, 0
      %v586 = vsel %vm542, %v510, 0
      %v589 = vsel %vm542, %v511, 0
      %591 = vmatpush.bf16.msra.mxu0 0
      %592 = vmatpush.bf16.msra.mxu0 0
      %593 = vmatpush.bf16.msra.mxu0 0
      %594 = vmatpush.bf16.msra.mxu0 %v536
      %595 = vmatpush.bf16.msra.mxu0 %v535
      %596 = vmatpush.bf16.msra.mxu0 %v534
      %597 = vmatpush.bf16.msra.mxu0 %v533
      %598 = vmatpush.bf16.msra.mxu0 %v532
      %599 = vmatmul.bf16.gmra.mxu0 %v544
      %v600 = vpop.f32.mrf.mxu0
      %v601 = vadd.f32 %v430, %v600
      %v602 = vpop.f32.mrf.mxu0
      %v603 = vadd.f32 %v430, %v602
      %604 = vmatmul.bf16.gmra.mxu0 %v547
      %v605 = vpop.f32.mrf.mxu0
      %v606 = vadd.f32 %v430, %v605
      %v607 = vpop.f32.mrf.mxu0
      %v608 = vadd.f32 %v430, %v607
      %609 = vmatmul.bf16.gmra.mxu0 %v550
      %v610 = vpop.f32.mrf.mxu0
      %v611 = vadd.f32 %v430, %v610
      %v612 = vpop.f32.mrf.mxu0
      %v613 = vadd.f32 %v430, %v612
      %614 = vmatmul.bf16.gmra.mxu0 %v553
      %v615 = vpop.f32.mrf.mxu0
      %v616 = vadd.f32 %v430, %v615
      %v617 = vpop.f32.mrf.mxu0
      %v618 = vadd.f32 %v430, %v617
      %619 = vmatmul.bf16.gmra.mxu0 %v556
      %v620 = vpop.f32.mrf.mxu0
      %v621 = vadd.f32 %v430, %v620
      %v622 = vpop.f32.mrf.mxu0
      %v623 = vadd.f32 %v430, %v622
      %624 = vmatmul.bf16.gmra.mxu0 %v559
      %v625 = vpop.f32.mrf.mxu0
      %v626 = vadd.f32 %v430, %v625
      %v627 = vpop.f32.mrf.mxu0
      %v628 = vadd.f32 %v430, %v627
      %629 = vmatmul.bf16.gmra.mxu0 %v562
      %v630 = vpop.f32.mrf.mxu0
      %v631 = vadd.f32 %v430, %v630
      %v632 = vpop.f32.mrf.mxu0
      %v633 = vadd.f32 %v430, %v632
      %634 = vmatmul.bf16.gmra.mxu0 %v565
      %v635 = vpop.f32.mrf.mxu0
      %v636 = vadd.f32 %v430, %v635
      %v637 = vpop.f32.mrf.mxu0
      %v638 = vadd.f32 %v430, %v637
      %639 = vmatmul.bf16.gmra.mxu0 %v568
      %v640 = vpop.f32.mrf.mxu0
      %v641 = vadd.f32 %v430, %v640
      %v642 = vpop.f32.mrf.mxu0
      %v643 = vadd.f32 %v430, %v642
      %644 = vmatmul.bf16.gmra.mxu0 %v571
      %v645 = vpop.f32.mrf.mxu0
      %v646 = vadd.f32 %v430, %v645
      %v647 = vpop.f32.mrf.mxu0
      %v648 = vadd.f32 %v430, %v647
      %649 = vmatmul.bf16.gmra.mxu0 %v574
      %v650 = vpop.f32.mrf.mxu0
      %v651 = vadd.f32 %v430, %v650
      %v652 = vpop.f32.mrf.mxu0
      %v653 = vadd.f32 %v430, %v652
      %654 = vmatmul.bf16.gmra.mxu0 %v577
      %v655 = vpop.f32.mrf.mxu0
      %v656 = vadd.f32 %v430, %v655
      %v657 = vpop.f32.mrf.mxu0
      %v658 = vadd.f32 %v430, %v657
      %659 = vmatmul.bf16.gmra.mxu0 %v580
      %v660 = vpop.f32.mrf.mxu0
      %v661 = vadd.f32 %v430, %v660
      %v662 = vpop.f32.mrf.mxu0
      %v663 = vadd.f32 %v430, %v662
      %664 = vmatmul.bf16.gmra.mxu0 %v583
      %v665 = vpop.f32.mrf.mxu0
      %v666 = vadd.f32 %v430, %v665
      %v667 = vpop.f32.mrf.mxu0
      %v668 = vadd.f32 %v430, %v667
      %669 = vmatmul.bf16.gmra.mxu0 %v586
      %v670 = vpop.f32.mrf.mxu0
      %v671 = vadd.f32 %v430, %v670
      %v672 = vpop.f32.mrf.mxu0
      %v673 = vadd.f32 %v430, %v672
      %674 = vmatmul.bf16.gmra.mxu0 %v589
      %v675 = vpop.f32.mrf.mxu0
      %v676 = vadd.f32 %v430, %v675
      %v677 = vpop.f32.mrf.mxu0
      %v678 = vadd.f32 %v430, %v677
      %679 = vdwg.mxu0
      %v680 = vmax.f32 %v601, 0.0
      %v681 = vmax.f32 %v603, 0.0
      %v682 = vmax.f32 %v606, 0.0
      %v683 = vmax.f32 %v608, 0.0
      %v684 = vmax.f32 %v611, 0.0
      %v685 = vmax.f32 %v613, 0.0
      %v686 = vmax.f32 %v616, 0.0
      %v687 = vmax.f32 %v618, 0.0
      %v688 = vmax.f32 %v621, 0.0
      %v689 = vmax.f32 %v623, 0.0
      %v690 = vmax.f32 %v626, 0.0
      %v691 = vmax.f32 %v628, 0.0
      %v692 = vmax.f32 %v631, 0.0
      %v693 = vmax.f32 %v633, 0.0
      %v694 = vmax.f32 %v636, 0.0
      %v695 = vmax.f32 %v638, 0.0
      %v696 = vmax.f32 %v641, 0.0
      %v697 = vmax.f32 %v643, 0.0
      %v698 = vmax.f32 %v646, 0.0
      %v699 = vmax.f32 %v648, 0.0
      %v700 = vmax.f32 %v651, 0.0
      %v701 = vmax.f32 %v653, 0.0
      %v702 = vmax.f32 %v656, 0.0
      %v703 = vmax.f32 %v658, 0.0
      %v704 = vmax.f32 %v661, 0.0
      %v705 = vmax.f32 %v663, 0.0
      %v706 = vmax.f32 %v666, 0.0
      %v707 = vmax.f32 %v668, 0.0
      %v708 = vmax.f32 %v671, 0.0
      %v709 = vmax.f32 %v673, 0.0
      %v710 = vmax.f32 %v676, 0.0
      %v711 = vmax.f32 %v678, 0.0
      %v712 = vpack.c.bf16 %v681, %v680
      %v713 = vpack.c.bf16 %v683, %v682
      %v714 = vpack.c.bf16 %v685, %v684
      %v715 = vpack.c.bf16 %v687, %v686
      %v716 = vpack.c.bf16 %v689, %v688
      %v717 = vpack.c.bf16 %v691, %v690
      %v718 = vpack.c.bf16 %v693, %v692
      %v719 = vpack.c.bf16 %v695, %v694
      %v720 = vpack.c.bf16 %v697, %v696
      %v721 = vpack.c.bf16 %v699, %v698
      %v722 = vpack.c.bf16 %v701, %v700
      %v723 = vpack.c.bf16 %v703, %v702
      %v724 = vpack.c.bf16 %v705, %v704
      %v725 = vpack.c.bf16 %v707, %v706
      %v726 = vpack.c.bf16 %v709, %v708
      %v727 = vpack.c.bf16 %v711, %v710
      %v728 = vld [vmem:[%s3] sm:$0xf]
      %v729 = vld [vmem:[%s3 + $0x4] sm:$0xf]
      %v730 = vld [vmem:[%s3 + $0x8] sm:$0xf]
      %v731 = vld [vmem:[%s3 + $0xc] sm:$0xf]
      %v732 = vld [vmem:[%s3 + $0x10] sm:$0xf]
      %v733 = vld [vmem:[%s3 + $0x14] sm:$0xf]
      %v734 = vld [vmem:[%s3 + $0x18] sm:$0xf]
      %v735 = vld [vmem:[%s3 + $0x1c] sm:$0xf]
      %v736 = vld [vmem:[%s3 + $0x20] sm:$0xf]
      %v737 = vld [vmem:[%s3 + $0x24] sm:$0xf]
      %v738 = vld [vmem:[%s4] sm:$0x1]
      %v740 = vperm.slane %v738, 0
      %v752 = vunpack.c.l.b16 %v728
      %v753 = vunpack.c.l.b16 %v729
      %v754 = vunpack.c.l.b16 %v730
      %v755 = vunpack.c.l.b16 %v731
      %v756 = vunpack.c.l.b16 %v732
      %v757 = vunpack.c.l.b16 %v733
      %v758 = vunpack.c.l.b16 %v734
      %v759 = vunpack.c.l.b16 %v735
      %v760 = vunpack.c.l.b16 %v736
      %v761 = vunpack.c.l.b16 %v737
      %v762 = vpack.c.b16 %v753, %v752
      %v763 = vpack.c.b16 %v755, %v754
      %v764 = vpack.c.b16 %v757, %v756
      %v765 = vpack.c.b16 %v759, %v758
      %v766 = vpack.c.b16 %v761, %v760
      %v773 = vsel %vm542, %v712, 0
      %v776 = vsel %vm542, %v713, 0
      %v779 = vsel %vm542, %v714, 0
      %v782 = vsel %vm542, %v715, 0
      %v785 = vsel %vm542, %v716, 0
      %v788 = vsel %vm542, %v717, 0
      %v791 = vsel %vm542, %v718, 0
      %v794 = vsel %vm542, %v719, 0
      %v797 = vsel %vm542, %v720, 0
      %v800 = vsel %vm542, %v721, 0
      %v803 = vsel %vm542, %v722, 0
      %v806 = vsel %vm542, %v723, 0
      %v809 = vsel %vm542, %v724, 0
      %v812 = vsel %vm542, %v725, 0
      %v815 = vsel %vm542, %v726, 0
      %v818 = vsel %vm542, %v727, 0
      %820 = vmatpush.bf16.msra.mxu0 0
      %821 = vmatpush.bf16.msra.mxu0 0
      %822 = vmatpush.bf16.msra.mxu0 0
      %823 = vmatpush.bf16.msra.mxu0 %v766
      %824 = vmatpush.bf16.msra.mxu0 %v765
      %825 = vmatpush.bf16.msra.mxu0 %v764
      %826 = vmatpush.bf16.msra.mxu0 %v763
      %827 = vmatpush.bf16.msra.mxu0 %v762
      %828 = vmatmul.bf16.gmra.mxu0 %v773
      %v829 = vpop.f32.mrf.mxu0
      %v830 = vadd.f32 %v740, %v829
      %v831 = vpop.f32.mrf.mxu0
      %v832 = vadd.f32 %v740, %v831
      %833 = vmatmul.bf16.gmra.mxu0 %v776
      %v834 = vpop.f32.mrf.mxu0
      %v835 = vadd.f32 %v740, %v834
      %v836 = vpop.f32.mrf.mxu0
      %v837 = vadd.f32 %v740, %v836
      %838 = vmatmul.bf16.gmra.mxu0 %v779
      %v839 = vpop.f32.mrf.mxu0
      %v840 = vadd.f32 %v740, %v839
      %v841 = vpop.f32.mrf.mxu0
      %v842 = vadd.f32 %v740, %v841
      %843 = vmatmul.bf16.gmra.mxu0 %v782
      %v844 = vpop.f32.mrf.mxu0
      %v845 = vadd.f32 %v740, %v844
      %v846 = vpop.f32.mrf.mxu0
      %v847 = vadd.f32 %v740, %v846
      %848 = vmatmul.bf16.gmra.mxu0 %v785
      %v849 = vpop.f32.mrf.mxu0
      %v850 = vadd.f32 %v740, %v849
      %v851 = vpop.f32.mrf.mxu0
      %v852 = vadd.f32 %v740, %v851
      %853 = vmatmul.bf16.gmra.mxu0 %v788
      %v854 = vpop.f32.mrf.mxu0
      %v855 = vadd.f32 %v740, %v854
      %v856 = vpop.f32.mrf.mxu0
      %v857 = vadd.f32 %v740, %v856
      %858 = vmatmul.bf16.gmra.mxu0 %v791
      %v859 = vpop.f32.mrf.mxu0
      %v860 = vadd.f32 %v740, %v859
      %v861 = vpop.f32.mrf.mxu0
      %v862 = vadd.f32 %v740, %v861
      %863 = vmatmul.bf16.gmra.mxu0 %v794
      %v864 = vpop.f32.mrf.mxu0
      %v865 = vadd.f32 %v740, %v864
      %v866 = vpop.f32.mrf.mxu0
      %v867 = vadd.f32 %v740, %v866
      %868 = vmatmul.bf16.gmra.mxu0 %v797
      %v869 = vpop.f32.mrf.mxu0
      %v870 = vadd.f32 %v740, %v869
      %v871 = vpop.f32.mrf.mxu0
      %v872 = vadd.f32 %v740, %v871
      %873 = vmatmul.bf16.gmra.mxu0 %v800
      %v874 = vpop.f32.mrf.mxu0
      %v875 = vadd.f32 %v740, %v874
      %v876 = vpop.f32.mrf.mxu0
      %v877 = vadd.f32 %v740, %v876
      %878 = vmatmul.bf16.gmra.mxu0 %v803
      %v879 = vpop.f32.mrf.mxu0
      %v880 = vadd.f32 %v740, %v879
      %v881 = vpop.f32.mrf.mxu0
      %v882 = vadd.f32 %v740, %v881
      %883 = vmatmul.bf16.gmra.mxu0 %v806
      %v884 = vpop.f32.mrf.mxu0
      %v885 = vadd.f32 %v740, %v884
      %v886 = vpop.f32.mrf.mxu0
      %v887 = vadd.f32 %v740, %v886
      %888 = vmatmul.bf16.gmra.mxu0 %v809
      %v889 = vpop.f32.mrf.mxu0
      %v890 = vadd.f32 %v740, %v889
      %v891 = vpop.f32.mrf.mxu0
      %v892 = vadd.f32 %v740, %v891
      %893 = vmatmul.bf16.gmra.mxu0 %v812
      %v894 = vpop.f32.mrf.mxu0
      %v895 = vadd.f32 %v740, %v894
      %v896 = vpop.f32.mrf.mxu0
      %v897 = vadd.f32 %v740, %v896
      %898 = vmatmul.bf16.gmra.mxu0 %v815
      %v899 = vpop.f32.mrf.mxu0
      %v900 = vadd.f32 %v740, %v899
      %v901 = vpop.f32.mrf.mxu0
      %v902 = vadd.f32 %v740, %v901
      %903 = vmatmul.bf16.gmra.mxu0 %v818
      %v904 = vpop.f32.mrf.mxu0
      %v905 = vadd.f32 %v740, %v904
      %v906 = vpop.f32.mrf.mxu0
      %v907 = vadd.f32 %v740, %v906
      %908 = vdwg.mxu0
      %v909 = vmax.f32 %v830, 0.0
      %v910 = vmax.f32 %v832, 0.0
      %v911 = vmax.f32 %v835, 0.0
      %v912 = vmax.f32 %v837, 0.0
      %v913 = vmax.f32 %v840, 0.0
      %v914 = vmax.f32 %v842, 0.0
      %v915 = vmax.f32 %v845, 0.0
      %v916 = vmax.f32 %v847, 0.0
      %v917 = vmax.f32 %v850, 0.0
      %v918 = vmax.f32 %v852, 0.0
      %v919 = vmax.f32 %v855, 0.0
      %v920 = vmax.f32 %v857, 0.0
      %v921 = vmax.f32 %v860, 0.0
      %v922 = vmax.f32 %v862, 0.0
      %v923 = vmax.f32 %v865, 0.0
      %v924 = vmax.f32 %v867, 0.0
      %v925 = vmax.f32 %v870, 0.0
      %v926 = vmax.f32 %v872, 0.0
      %v927 = vmax.f32 %v875, 0.0
      %v928 = vmax.f32 %v877, 0.0
      %v929 = vmax.f32 %v880, 0.0
      %v930 = vmax.f32 %v882, 0.0
      %v931 = vmax.f32 %v885, 0.0
      %v932 = vmax.f32 %v887, 0.0
      %v933 = vmax.f32 %v890, 0.0
      %v934 = vmax.f32 %v892, 0.0
      %v935 = vmax.f32 %v895, 0.0
      %v936 = vmax.f32 %v897, 0.0
      %v937 = vmax.f32 %v900, 0.0
      %v938 = vmax.f32 %v902, 0.0
      %v939 = vmax.f32 %v905, 0.0
      %v940 = vmax.f32 %v907, 0.0
      %v941 = vpack.c.bf16 %v910, %v909
      %v942 = vpack.c.bf16 %v912, %v911
      %v943 = vpack.c.bf16 %v914, %v913
      %v944 = vpack.c.bf16 %v916, %v915
      %v945 = vpack.c.bf16 %v918, %v917
      %v946 = vpack.c.bf16 %v920, %v919
      %v947 = vpack.c.bf16 %v922, %v921
      %v948 = vpack.c.bf16 %v924, %v923
      %v949 = vpack.c.bf16 %v926, %v925
      %v950 = vpack.c.bf16 %v928, %v927
      %v951 = vpack.c.bf16 %v930, %v929
      %v952 = vpack.c.bf16 %v932, %v931
      %v953 = vpack.c.bf16 %v934, %v933
      %v954 = vpack.c.bf16 %v936, %v935
      %v955 = vpack.c.bf16 %v938, %v937
      %v956 = vpack.c.bf16 %v940, %v939
      %v957 = vld [vmem:[%s5] sm:$0xf]
      %v958 = vld [vmem:[%s5 + $0x4] sm:$0xf]
      %v959 = vld [vmem:[%s5 + $0x8] sm:$0xf]
      %v960 = vld [vmem:[%s5 + $0xc] sm:$0xf]
      %v961 = vld [vmem:[%s6] sm:$0x1]
      %v963 = vperm.slane %v961, 0
      %v969 = vunpack.c.l.b16 %v957
      %v970 = vunpack.c.l.b16 %v958
      %v971 = vunpack.c.l.b16 %v959
      %v972 = vunpack.c.l.b16 %v960
      %v973 = vpack.c.b16 %v970, %v969
      %v974 = vpack.c.b16 %v972, %v971
      %vm977 = vcmask 261120
      %v979 = vsel %vm977, %v941, 0
      %v982 = vsel %vm977, %v942, 0
      %v985 = vsel %vm977, %v943, 0
      %v988 = vsel %vm977, %v944, 0
      %v991 = vsel %vm977, %v945, 0
      %v994 = vsel %vm977, %v946, 0
      %v997 = vsel %vm977, %v947, 0
      %v1000 = vsel %vm977, %v948, 0
      %v1003 = vsel %vm977, %v949, 0
      %v1006 = vsel %vm977, %v950, 0
      %v1009 = vsel %vm977, %v951, 0
      %v1012 = vsel %vm977, %v952, 0
      %v1015 = vsel %vm977, %v953, 0
      %v1018 = vsel %vm977, %v954, 0
      %v1021 = vsel %vm977, %v955, 0
      %v1024 = vsel %vm977, %v956, 0
      %1026 = vmatpush.bf16.msra.mxu0 0
      %1027 = vmatpush.bf16.msra.mxu0 0
      %1028 = vmatpush.bf16.msra.mxu0 0
      %1029 = vmatpush.bf16.msra.mxu0 0
      %1030 = vmatpush.bf16.msra.mxu0 0
      %1031 = vmatpush.bf16.msra.mxu0 0
      %1032 = vmatpush.bf16.msra.mxu0 %v974
      %1033 = vmatpush.bf16.msra.mxu0 %v973
      %1034 = vmatmul.bf16.gmra.mxu0 %v979
      %v1035 = vpop.f32.mrf.mxu0
      %v1036 = vadd.f32 %v963, %v1035
      %v1037 = vpop.f32.mrf.mxu0
      %v1038 = vadd.f32 %v963, %v1037
      %1039 = vmatmul.bf16.gmra.mxu0 %v982
      %v1040 = vpop.f32.mrf.mxu0
      %v1041 = vadd.f32 %v963, %v1040
      %v1042 = vpop.f32.mrf.mxu0
      %v1043 = vadd.f32 %v963, %v1042
      %1044 = vmatmul.bf16.gmra.mxu0 %v985
      %v1045 = vpop.f32.mrf.mxu0
      %v1046 = vadd.f32 %v963, %v1045
      %v1047 = vpop.f32.mrf.mxu0
      %v1048 = vadd.f32 %v963, %v1047
      %1049 = vmatmul.bf16.gmra.mxu0 %v988
      %v1050 = vpop.f32.mrf.mxu0
      %v1051 = vadd.f32 %v963, %v1050
      %v1052 = vpop.f32.mrf.mxu0
      %v1053 = vadd.f32 %v963, %v1052
      %1054 = vmatmul.bf16.gmra.mxu0 %v991
      %v1055 = vpop.f32.mrf.mxu0
      %v1056 = vadd.f32 %v963, %v1055
      %v1057 = vpop.f32.mrf.mxu0
      %v1058 = vadd.f32 %v963, %v1057
      %1059 = vmatmul.bf16.gmra.mxu0 %v994
      %v1060 = vpop.f32.mrf.mxu0
      %v1061 = vadd.f32 %v963, %v1060
      %v1062 = vpop.f32.mrf.mxu0
      %v1063 = vadd.f32 %v963, %v1062
      %1064 = vmatmul.bf16.gmra.mxu0 %v997
      %v1065 = vpop.f32.mrf.mxu0
      %v1066 = vadd.f32 %v963, %v1065
      %v1067 = vpop.f32.mrf.mxu0
      %v1068 = vadd.f32 %v963, %v1067
      %1069 = vmatmul.bf16.gmra.mxu0 %v1000
      %v1070 = vpop.f32.mrf.mxu0
      %v1071 = vadd.f32 %v963, %v1070
      %v1072 = vpop.f32.mrf.mxu0
      %v1073 = vadd.f32 %v963, %v1072
      %1074 = vmatmul.bf16.gmra.mxu0 %v1003
      %v1075 = vpop.f32.mrf.mxu0
      %v1076 = vadd.f32 %v963, %v1075
      %v1077 = vpop.f32.mrf.mxu0
      %v1078 = vadd.f32 %v963, %v1077
      %1079 = vmatmul.bf16.gmra.mxu0 %v1006
      %v1080 = vpop.f32.mrf.mxu0
      %v1081 = vadd.f32 %v963, %v1080
      %v1082 = vpop.f32.mrf.mxu0
      %v1083 = vadd.f32 %v963, %v1082
      %1084 = vmatmul.bf16.gmra.mxu0 %v1009
      %v1085 = vpop.f32.mrf.mxu0
      %v1086 = vadd.f32 %v963, %v1085
      %v1087 = vpop.f32.mrf.mxu0
      %v1088 = vadd.f32 %v963, %v1087
      %1089 = vmatmul.bf16.gmra.mxu0 %v1012
      %v1090 = vpop.f32.mrf.mxu0
      %v1091 = vadd.f32 %v963, %v1090
      %v1092 = vpop.f32.mrf.mxu0
      %v1093 = vadd.f32 %v963, %v1092
      %1094 = vmatmul.bf16.gmra.mxu0 %v1015
      %v1095 = vpop.f32.mrf.mxu0
      %v1096 = vadd.f32 %v963, %v1095
      %v1097 = vpop.f32.mrf.mxu0
      %v1098 = vadd.f32 %v963, %v1097
      %1099 = vmatmul.bf16.gmra.mxu0 %v1018
      %v1100 = vpop.f32.mrf.mxu0
      %v1101 = vadd.f32 %v963, %v1100
      %v1102 = vpop.f32.mrf.mxu0
      %v1103 = vadd.f32 %v963, %v1102
      %1104 = vmatmul.bf16.gmra.mxu0 %v1021
      %v1105 = vpop.f32.mrf.mxu0
      %v1106 = vadd.f32 %v963, %v1105
      %v1107 = vpop.f32.mrf.mxu0
      %v1108 = vadd.f32 %v963, %v1107
      %1109 = vmatmul.bf16.gmra.mxu0 %v1024
      %v1110 = vpop.f32.mrf.mxu0
      %v1111 = vadd.f32 %v963, %v1110
      %v1112 = vpop.f32.mrf.mxu0
      %v1113 = vadd.f32 %v963, %v1112
      %1114 = vdwg.mxu0
      %v1115 = vmax.f32 %v1036, 0.0
      %v1116 = vmax.f32 %v1038, 0.0
      %v1117 = vmax.f32 %v1041, 0.0
      %v1118 = vmax.f32 %v1043, 0.0
      %v1119 = vmax.f32 %v1046, 0.0
      %v1120 = vmax.f32 %v1048, 0.0
      %v1121 = vmax.f32 %v1051, 0.0
      %v1122 = vmax.f32 %v1053, 0.0
      %v1123 = vmax.f32 %v1056, 0.0
      %v1124 = vmax.f32 %v1058, 0.0
      %v1125 = vmax.f32 %v1061, 0.0
      %v1126 = vmax.f32 %v1063, 0.0
      %v1127 = vmax.f32 %v1066, 0.0
      %v1128 = vmax.f32 %v1068, 0.0
      %v1129 = vmax.f32 %v1071, 0.0
      %v1130 = vmax.f32 %v1073, 0.0
      %v1131 = vmax.f32 %v1076, 0.0
      %v1132 = vmax.f32 %v1078, 0.0
      %v1133 = vmax.f32 %v1081, 0.0
      %v1134 = vmax.f32 %v1083, 0.0
      %v1135 = vmax.f32 %v1086, 0.0
      %v1136 = vmax.f32 %v1088, 0.0
      %v1137 = vmax.f32 %v1091, 0.0
      %v1138 = vmax.f32 %v1093, 0.0
      %v1139 = vmax.f32 %v1096, 0.0
      %v1140 = vmax.f32 %v1098, 0.0
      %v1141 = vmax.f32 %v1101, 0.0
      %v1142 = vmax.f32 %v1103, 0.0
      %v1143 = vmax.f32 %v1106, 0.0
      %v1144 = vmax.f32 %v1108, 0.0
      %v1145 = vmax.f32 %v1111, 0.0
      %v1146 = vmax.f32 %v1113, 0.0
      %v1147 = vpack.c.bf16 %v1116, %v1115
      %v1148 = vpack.c.bf16 %v1118, %v1117
      %v1149 = vpack.c.bf16 %v1120, %v1119
      %v1150 = vpack.c.bf16 %v1122, %v1121
      %v1151 = vpack.c.bf16 %v1124, %v1123
      %v1152 = vpack.c.bf16 %v1126, %v1125
      %v1153 = vpack.c.bf16 %v1128, %v1127
      %v1154 = vpack.c.bf16 %v1130, %v1129
      %v1155 = vpack.c.bf16 %v1132, %v1131
      %v1156 = vpack.c.bf16 %v1134, %v1133
      %v1157 = vpack.c.bf16 %v1136, %v1135
      %v1158 = vpack.c.bf16 %v1138, %v1137
      %v1159 = vpack.c.bf16 %v1140, %v1139
      %v1160 = vpack.c.bf16 %v1142, %v1141
      %v1161 = vpack.c.bf16 %v1144, %v1143
      %v1162 = vpack.c.bf16 %v1146, %v1145
      %s1163 = scalar_lea.vmem %s5, 16
      %v1164 = vld [vmem:[%s1163] sm:$0xf]
      %v1165 = vld [vmem:[%s1163 + $0x4] sm:$0xf]
      %v1166 = vld [vmem:[%s1163 + $0x8] sm:$0xf]
      %v1167 = vld [vmem:[%s1163 + $0xc] sm:$0xf]
      %s1168 = scalar_lea.vmem %s6, 1
      %v1169 = vld [vmem:[%s1168] sm:$0x1]
      %v1171 = vperm.slane %v1169, 0
      %v1177 = vunpack.c.l.b16 %v1164
      %v1178 = vunpack.c.l.b16 %v1165
      %v1179 = vunpack.c.l.b16 %v1166
      %v1180 = vunpack.c.l.b16 %v1167
      %v1181 = vpack.c.b16 %v1178, %v1177
      %v1182 = vpack.c.b16 %v1180, %v1179
      %v1186 = vsel %vm977, %v1147, 0
      %v1189 = vsel %vm977, %v1148, 0
      %v1192 = vsel %vm977, %v1149, 0
      %v1195 = vsel %vm977, %v1150, 0
      %v1198 = vsel %vm977, %v1151, 0
      %v1201 = vsel %vm977, %v1152, 0
      %v1204 = vsel %vm977, %v1153, 0
      %v1207 = vsel %vm977, %v1154, 0
      %v1210 = vsel %vm977, %v1155, 0
      %v1213 = vsel %vm977, %v1156, 0
      %v1216 = vsel %vm977, %v1157, 0
      %v1219 = vsel %vm977, %v1158, 0
      %v1222 = vsel %vm977, %v1159, 0
      %v1225 = vsel %vm977, %v1160, 0
      %v1228 = vsel %vm977, %v1161, 0
      %v1231 = vsel %vm977, %v1162, 0
      %1233 = vmatpush.bf16.msra.mxu0 0
      %1234 = vmatpush.bf16.msra.mxu0 0
      %1235 = vmatpush.bf16.msra.mxu0 0
      %1236 = vmatpush.bf16.msra.mxu0 0
      %1237 = vmatpush.bf16.msra.mxu0 0
      %1238 = vmatpush.bf16.msra.mxu0 0
      %1239 = vmatpush.bf16.msra.mxu0 %v1182
      %1240 = vmatpush.bf16.msra.mxu0 %v1181
      %1241 = vmatmul.bf16.gmra.mxu0 %v1186
      %v1242 = vpop.f32.mrf.mxu0
      %v1243 = vadd.f32 %v1171, %v1242
      %v1244 = vpop.f32.mrf.mxu0
      %v1245 = vadd.f32 %v1171, %v1244
      %1246 = vmatmul.bf16.gmra.mxu0 %v1189
      %v1247 = vpop.f32.mrf.mxu0
      %v1248 = vadd.f32 %v1171, %v1247
      %v1249 = vpop.f32.mrf.mxu0
      %v1250 = vadd.f32 %v1171, %v1249
      %1251 = vmatmul.bf16.gmra.mxu0 %v1192
      %v1252 = vpop.f32.mrf.mxu0
      %v1253 = vadd.f32 %v1171, %v1252
      %v1254 = vpop.f32.mrf.mxu0
      %v1255 = vadd.f32 %v1171, %v1254
      %1256 = vmatmul.bf16.gmra.mxu0 %v1195
      %v1257 = vpop.f32.mrf.mxu0
      %v1258 = vadd.f32 %v1171, %v1257
      %v1259 = vpop.f32.mrf.mxu0
      %v1260 = vadd.f32 %v1171, %v1259
      %1261 = vmatmul.bf16.gmra.mxu0 %v1198
      %v1262 = vpop.f32.mrf.mxu0
      %v1263 = vadd.f32 %v1171, %v1262
      %v1264 = vpop.f32.mrf.mxu0
      %v1265 = vadd.f32 %v1171, %v1264
      %1266 = vmatmul.bf16.gmra.mxu0 %v1201
      %v1267 = vpop.f32.mrf.mxu0
      %v1268 = vadd.f32 %v1171, %v1267
      %v1269 = vpop.f32.mrf.mxu0
      %v1270 = vadd.f32 %v1171, %v1269
      %1271 = vmatmul.bf16.gmra.mxu0 %v1204
      %v1272 = vpop.f32.mrf.mxu0
      %v1273 = vadd.f32 %v1171, %v1272
      %v1274 = vpop.f32.mrf.mxu0
      %v1275 = vadd.f32 %v1171, %v1274
      %1276 = vmatmul.bf16.gmra.mxu0 %v1207
      %v1277 = vpop.f32.mrf.mxu0
      %v1278 = vadd.f32 %v1171, %v1277
      %v1279 = vpop.f32.mrf.mxu0
      %v1280 = vadd.f32 %v1171, %v1279
      %1281 = vmatmul.bf16.gmra.mxu0 %v1210
      %v1282 = vpop.f32.mrf.mxu0
      %v1283 = vadd.f32 %v1171, %v1282
      %v1284 = vpop.f32.mrf.mxu0
      %v1285 = vadd.f32 %v1171, %v1284
      %1286 = vmatmul.bf16.gmra.mxu0 %v1213
      %v1287 = vpop.f32.mrf.mxu0
      %v1288 = vadd.f32 %v1171, %v1287
      %v1289 = vpop.f32.mrf.mxu0
      %v1290 = vadd.f32 %v1171, %v1289
      %1291 = vmatmul.bf16.gmra.mxu0 %v1216
      %v1292 = vpop.f32.mrf.mxu0
      %v1293 = vadd.f32 %v1171, %v1292
      %v1294 = vpop.f32.mrf.mxu0
      %v1295 = vadd.f32 %v1171, %v1294
      %1296 = vmatmul.bf16.gmra.mxu0 %v1219
      %v1297 = vpop.f32.mrf.mxu0
      %v1298 = vadd.f32 %v1171, %v1297
      %v1299 = vpop.f32.mrf.mxu0
      %v1300 = vadd.f32 %v1171, %v1299
      %1301 = vmatmul.bf16.gmra.mxu0 %v1222
      %v1302 = vpop.f32.mrf.mxu0
      %v1303 = vadd.f32 %v1171, %v1302
      %v1304 = vpop.f32.mrf.mxu0
      %v1305 = vadd.f32 %v1171, %v1304
      %1306 = vmatmul.bf16.gmra.mxu0 %v1225
      %v1307 = vpop.f32.mrf.mxu0
      %v1308 = vadd.f32 %v1171, %v1307
      %v1309 = vpop.f32.mrf.mxu0
      %v1310 = vadd.f32 %v1171, %v1309
      %1311 = vmatmul.bf16.gmra.mxu0 %v1228
      %v1312 = vpop.f32.mrf.mxu0
      %v1313 = vadd.f32 %v1171, %v1312
      %v1314 = vpop.f32.mrf.mxu0
      %v1315 = vadd.f32 %v1171, %v1314
      %1316 = vmatmul.bf16.gmra.mxu0 %v1231
      %v1317 = vpop.f32.mrf.mxu0
      %v1318 = vadd.f32 %v1171, %v1317
      %v1319 = vpop.f32.mrf.mxu0
      %v1320 = vadd.f32 %v1171, %v1319
      %1321 = vdwg.mxu0
      %v1322 = vmax.f32 %v1243, 0.0
      %v1323 = vmax.f32 %v1245, 0.0
      %v1324 = vmax.f32 %v1248, 0.0
      %v1325 = vmax.f32 %v1250, 0.0
      %v1326 = vmax.f32 %v1253, 0.0
      %v1327 = vmax.f32 %v1255, 0.0
      %v1328 = vmax.f32 %v1258, 0.0
      %v1329 = vmax.f32 %v1260, 0.0
      %v1330 = vmax.f32 %v1263, 0.0
      %v1331 = vmax.f32 %v1265, 0.0
      %v1332 = vmax.f32 %v1268, 0.0
      %v1333 = vmax.f32 %v1270, 0.0
      %v1334 = vmax.f32 %v1273, 0.0
      %v1335 = vmax.f32 %v1275, 0.0
      %v1336 = vmax.f32 %v1278, 0.0
      %v1337 = vmax.f32 %v1280, 0.0
      %v1338 = vmax.f32 %v1283, 0.0
      %v1339 = vmax.f32 %v1285, 0.0
      %v1340 = vmax.f32 %v1288, 0.0
      %v1341 = vmax.f32 %v1290, 0.0
      %v1342 = vmax.f32 %v1293, 0.0
      %v1343 = vmax.f32 %v1295, 0.0
      %v1344 = vmax.f32 %v1298, 0.0
      %v1345 = vmax.f32 %v1300, 0.0
      %v1346 = vmax.f32 %v1303, 0.0
      %v1347 = vmax.f32 %v1305, 0.0
      %v1348 = vmax.f32 %v1308, 0.0
      %v1349 = vmax.f32 %v1310, 0.0
      %v1350 = vmax.f32 %v1313, 0.0
      %v1351 = vmax.f32 %v1315, 0.0
      %v1352 = vmax.f32 %v1318, 0.0
      %v1353 = vmax.f32 %v1320, 0.0
      %v1354 = vadd.f32 %v909, %v1322
      %v1355 = vadd.f32 %v910, %v1323
      %v1356 = vadd.f32 %v911, %v1324
      %v1357 = vadd.f32 %v912, %v1325
      %v1358 = vadd.f32 %v913, %v1326
      %v1359 = vadd.f32 %v914, %v1327
      %v1360 = vadd.f32 %v915, %v1328
      %v1361 = vadd.f32 %v916, %v1329
      %v1362 = vadd.f32 %v917, %v1330
      %v1363 = vadd.f32 %v918, %v1331
      %v1364 = vadd.f32 %v919, %v1332
      %v1365 = vadd.f32 %v920, %v1333
      %v1366 = vadd.f32 %v921, %v1334
      %v1367 = vadd.f32 %v922, %v1335
      %v1368 = vadd.f32 %v923, %v1336
      %v1369 = vadd.f32 %v924, %v1337
      %v1370 = vadd.f32 %v925, %v1338
      %v1371 = vadd.f32 %v926, %v1339
      %v1372 = vadd.f32 %v927, %v1340
      %v1373 = vadd.f32 %v928, %v1341
      %v1374 = vadd.f32 %v929, %v1342
      %v1375 = vadd.f32 %v930, %v1343
      %v1376 = vadd.f32 %v931, %v1344
      %v1377 = vadd.f32 %v932, %v1345
      %v1378 = vadd.f32 %v933, %v1346
      %v1379 = vadd.f32 %v934, %v1347
      %v1380 = vadd.f32 %v935, %v1348
      %v1381 = vadd.f32 %v936, %v1349
      %v1382 = vadd.f32 %v937, %v1350
      %v1383 = vadd.f32 %v938, %v1351
      %v1384 = vadd.f32 %v939, %v1352
      %v1385 = vadd.f32 %v940, %v1353
      %v1386 = vpack.c.bf16 %v1355, %v1354
      %v1387 = vpack.c.bf16 %v1357, %v1356
      %v1388 = vpack.c.bf16 %v1359, %v1358
      %v1389 = vpack.c.bf16 %v1361, %v1360
      %v1390 = vpack.c.bf16 %v1363, %v1362
      %v1391 = vpack.c.bf16 %v1365, %v1364
      %v1392 = vpack.c.bf16 %v1367, %v1366
      %v1393 = vpack.c.bf16 %v1369, %v1368
      %v1394 = vpack.c.bf16 %v1371, %v1370
      %v1395 = vpack.c.bf16 %v1373, %v1372
      %v1396 = vpack.c.bf16 %v1375, %v1374
      %v1397 = vpack.c.bf16 %v1377, %v1376
      %v1398 = vpack.c.bf16 %v1379, %v1378
      %v1399 = vpack.c.bf16 %v1381, %v1380
      %v1400 = vpack.c.bf16 %v1383, %v1382
      %v1401 = vpack.c.bf16 %v1385, %v1384
      %s1402 = scalar_lea.vmem %s5, 32
      %v1403 = vld [vmem:[%s1402] sm:$0xf]
      %v1404 = vld [vmem:[%s1402 + $0x4] sm:$0xf]
      %v1405 = vld [vmem:[%s1402 + $0x8] sm:$0xf]
      %v1406 = vld [vmem:[%s1402 + $0xc] sm:$0xf]
      %s1407 = scalar_lea.vmem %s6, 2
      %v1408 = vld [vmem:[%s1407] sm:$0x1]
      %v1410 = vperm.slane %v1408, 0
      %v1416 = vunpack.c.l.b16 %v1403
      %v1417 = vunpack.c.l.b16 %v1404
      %v1418 = vunpack.c.l.b16 %v1405
      %v1419 = vunpack.c.l.b16 %v1406
      %v1420 = vpack.c.b16 %v1417, %v1416
      %v1421 = vpack.c.b16 %v1419, %v1418
      %v1425 = vsel %vm977, %v1386, 0
      %v1428 = vsel %vm977, %v1387, 0
      %v1431 = vsel %vm977, %v1388, 0
      %v1434 = vsel %vm977, %v1389, 0
      %v1437 = vsel %vm977, %v1390, 0
      %v1440 = vsel %vm977, %v1391, 0
      %v1443 = vsel %vm977, %v1392, 0
      %v1446 = vsel %vm977, %v1393, 0
      %v1449 = vsel %vm977, %v1394, 0
      %v1452 = vsel %vm977, %v1395, 0
      %v1455 = vsel %vm977, %v1396, 0
      %v1458 = vsel %vm977, %v1397, 0
      %v1461 = vsel %vm977, %v1398, 0
      %v1464 = vsel %vm977, %v1399, 0
      %v1467 = vsel %vm977, %v1400, 0
      %v1470 = vsel %vm977, %v1401, 0
      %1472 = vmatpush.bf16.msra.mxu0 0
      %1473 = vmatpush.bf16.msra.mxu0 0
      %1474 = vmatpush.bf16.msra.mxu0 0
      %1475 = vmatpush.bf16.msra.mxu0 0
      %1476 = vmatpush.bf16.msra.mxu0 0
      %1477 = vmatpush.bf16.msra.mxu0 0
      %1478 = vmatpush.bf16.msra.mxu0 %v1421
      %1479 = vmatpush.bf16.msra.mxu0 %v1420
      %1480 = vmatmul.bf16.gmra.mxu0 %v1425
      %v1481 = vpop.f32.mrf.mxu0
      %v1482 = vadd.f32 %v1410, %v1481
      %v1483 = vpop.f32.mrf.mxu0
      %v1484 = vadd.f32 %v1410, %v1483
      %1485 = vmatmul.bf16.gmra.mxu0 %v1428
      %v1486 = vpop.f32.mrf.mxu0
      %v1487 = vadd.f32 %v1410, %v1486
      %v1488 = vpop.f32.mrf.mxu0
      %v1489 = vadd.f32 %v1410, %v1488
      %1490 = vmatmul.bf16.gmra.mxu0 %v1431
      %v1491 = vpop.f32.mrf.mxu0
      %v1492 = vadd.f32 %v1410, %v1491
      %v1493 = vpop.f32.mrf.mxu0
      %v1494 = vadd.f32 %v1410, %v1493
      %1495 = vmatmul.bf16.gmra.mxu0 %v1434
      %v1496 = vpop.f32.mrf.mxu0
      %v1497 = vadd.f32 %v1410, %v1496
      %v1498 = vpop.f32.mrf.mxu0
      %v1499 = vadd.f32 %v1410, %v1498
      %1500 = vmatmul.bf16.gmra.mxu0 %v1437
      %v1501 = vpop.f32.mrf.mxu0
      %v1502 = vadd.f32 %v1410, %v1501
      %v1503 = vpop.f32.mrf.mxu0
      %v1504 = vadd.f32 %v1410, %v1503
      %1505 = vmatmul.bf16.gmra.mxu0 %v1440
      %v1506 = vpop.f32.mrf.mxu0
      %v1507 = vadd.f32 %v1410, %v1506
      %v1508 = vpop.f32.mrf.mxu0
      %v1509 = vadd.f32 %v1410, %v1508
      %1510 = vmatmul.bf16.gmra.mxu0 %v1443
      %v1511 = vpop.f32.mrf.mxu0
      %v1512 = vadd.f32 %v1410, %v1511
      %v1513 = vpop.f32.mrf.mxu0
      %v1514 = vadd.f32 %v1410, %v1513
      %1515 = vmatmul.bf16.gmra.mxu0 %v1446
      %v1516 = vpop.f32.mrf.mxu0
      %v1517 = vadd.f32 %v1410, %v1516
      %v1518 = vpop.f32.mrf.mxu0
      %v1519 = vadd.f32 %v1410, %v1518
      %1520 = vmatmul.bf16.gmra.mxu0 %v1449
      %v1521 = vpop.f32.mrf.mxu0
      %v1522 = vadd.f32 %v1410, %v1521
      %v1523 = vpop.f32.mrf.mxu0
      %v1524 = vadd.f32 %v1410, %v1523
      %1525 = vmatmul.bf16.gmra.mxu0 %v1452
      %v1526 = vpop.f32.mrf.mxu0
      %v1527 = vadd.f32 %v1410, %v1526
      %v1528 = vpop.f32.mrf.mxu0
      %v1529 = vadd.f32 %v1410, %v1528
      %1530 = vmatmul.bf16.gmra.mxu0 %v1455
      %v1531 = vpop.f32.mrf.mxu0
      %v1532 = vadd.f32 %v1410, %v1531
      %v1533 = vpop.f32.mrf.mxu0
      %v1534 = vadd.f32 %v1410, %v1533
      %1535 = vmatmul.bf16.gmra.mxu0 %v1458
      %v1536 = vpop.f32.mrf.mxu0
      %v1537 = vadd.f32 %v1410, %v1536
      %v1538 = vpop.f32.mrf.mxu0
      %v1539 = vadd.f32 %v1410, %v1538
      %1540 = vmatmul.bf16.gmra.mxu0 %v1461
      %v1541 = vpop.f32.mrf.mxu0
      %v1542 = vadd.f32 %v1410, %v1541
      %v1543 = vpop.f32.mrf.mxu0
      %v1544 = vadd.f32 %v1410, %v1543
      %1545 = vmatmul.bf16.gmra.mxu0 %v1464
      %v1546 = vpop.f32.mrf.mxu0
      %v1547 = vadd.f32 %v1410, %v1546
      %v1548 = vpop.f32.mrf.mxu0
      %v1549 = vadd.f32 %v1410, %v1548
      %1550 = vmatmul.bf16.gmra.mxu0 %v1467
      %v1551 = vpop.f32.mrf.mxu0
      %v1552 = vadd.f32 %v1410, %v1551
      %v1553 = vpop.f32.mrf.mxu0
      %v1554 = vadd.f32 %v1410, %v1553
      %1555 = vmatmul.bf16.gmra.mxu0 %v1470
      %v1556 = vpop.f32.mrf.mxu0
      %v1557 = vadd.f32 %v1410, %v1556
      %v1558 = vpop.f32.mrf.mxu0
      %v1559 = vadd.f32 %v1410, %v1558
      %1560 = vdwg.mxu0
      %v1561 = vmax.f32 %v1482, 0.0
      %v1562 = vmax.f32 %v1484, 0.0
      %v1563 = vmax.f32 %v1487, 0.0
      %v1564 = vmax.f32 %v1489, 0.0
      %v1565 = vmax.f32 %v1492, 0.0
      %v1566 = vmax.f32 %v1494, 0.0
      %v1567 = vmax.f32 %v1497, 0.0
      %v1568 = vmax.f32 %v1499, 0.0
      %v1569 = vmax.f32 %v1502, 0.0
      %v1570 = vmax.f32 %v1504, 0.0
      %v1571 = vmax.f32 %v1507, 0.0
      %v1572 = vmax.f32 %v1509, 0.0
      %v1573 = vmax.f32 %v1512, 0.0
      %v1574 = vmax.f32 %v1514, 0.0
      %v1575 = vmax.f32 %v1517, 0.0
      %v1576 = vmax.f32 %v1519, 0.0
      %v1577 = vmax.f32 %v1522, 0.0
      %v1578 = vmax.f32 %v1524, 0.0
      %v1579 = vmax.f32 %v1527, 0.0
      %v1580 = vmax.f32 %v1529, 0.0
      %v1581 = vmax.f32 %v1532, 0.0
      %v1582 = vmax.f32 %v1534, 0.0
      %v1583 = vmax.f32 %v1537, 0.0
      %v1584 = vmax.f32 %v1539, 0.0
      %v1585 = vmax.f32 %v1542, 0.0
      %v1586 = vmax.f32 %v1544, 0.0
      %v1587 = vmax.f32 %v1547, 0.0
      %v1588 = vmax.f32 %v1549, 0.0
      %v1589 = vmax.f32 %v1552, 0.0
      %v1590 = vmax.f32 %v1554, 0.0
      %v1591 = vmax.f32 %v1557, 0.0
      %v1592 = vmax.f32 %v1559, 0.0
      %v1593 = vpack.c.bf16 %v1562, %v1561
      %v1594 = vpack.c.bf16 %v1564, %v1563
      %v1595 = vpack.c.bf16 %v1566, %v1565
      %v1596 = vpack.c.bf16 %v1568, %v1567
      %v1597 = vpack.c.bf16 %v1570, %v1569
      %v1598 = vpack.c.bf16 %v1572, %v1571
      %v1599 = vpack.c.bf16 %v1574, %v1573
      %v1600 = vpack.c.bf16 %v1576, %v1575
      %v1601 = vpack.c.bf16 %v1578, %v1577
      %v1602 = vpack.c.bf16 %v1580, %v1579
      %v1603 = vpack.c.bf16 %v1582, %v1581
      %v1604 = vpack.c.bf16 %v1584, %v1583
      %v1605 = vpack.c.bf16 %v1586, %v1585
      %v1606 = vpack.c.bf16 %v1588, %v1587
      %v1607 = vpack.c.bf16 %v1590, %v1589
      %v1608 = vpack.c.bf16 %v1592, %v1591
      %s1609 = scalar_lea.vmem %s5, 48
      %v1610 = vld [vmem:[%s1609] sm:$0xf]
      %v1611 = vld [vmem:[%s1609 + $0x4] sm:$0xf]
      %v1612 = vld [vmem:[%s1609 + $0x8] sm:$0xf]
      %v1613 = vld [vmem:[%s1609 + $0xc] sm:$0xf]
      %s1614 = scalar_lea.vmem %s6, 3
      %v1615 = vld [vmem:[%s1614] sm:$0x1]
      %v1617 = vperm.slane %v1615, 0
      %v1623 = vunpack.c.l.b16 %v1610
      %v1624 = vunpack.c.l.b16 %v1611
      %v1625 = vunpack.c.l.b16 %v1612
      %v1626 = vunpack.c.l.b16 %v1613
      %v1627 = vpack.c.b16 %v1624, %v1623
      %v1628 = vpack.c.b16 %v1626, %v1625
      %v1632 = vsel %vm977, %v1593, 0
      %v1635 = vsel %vm977, %v1594, 0
      %v1638 = vsel %vm977, %v1595, 0
      %v1641 = vsel %vm977, %v1596, 0
      %v1644 = vsel %vm977, %v1597, 0
      %v1647 = vsel %vm977, %v1598, 0
      %v1650 = vsel %vm977, %v1599, 0
      %v1653 = vsel %vm977, %v1600, 0
      %v1656 = vsel %vm977, %v1601, 0
      %v1659 = vsel %vm977, %v1602, 0
      %v1662 = vsel %vm977, %v1603, 0
      %v1665 = vsel %vm977, %v1604, 0
      %v1668 = vsel %vm977, %v1605, 0
      %v1671 = vsel %vm977, %v1606, 0
      %v1674 = vsel %vm977, %v1607, 0
      %v1677 = vsel %vm977, %v1608, 0
      %1679 = vmatpush.bf16.msra.mxu0 0
      %1680 = vmatpush.bf16.msra.mxu0 0
      %1681 = vmatpush.bf16.msra.mxu0 0
      %1682 = vmatpush.bf16.msra.mxu0 0
      %1683 = vmatpush.bf16.msra.mxu0 0
      %1684 = vmatpush.bf16.msra.mxu0 0
      %1685 = vmatpush.bf16.msra.mxu0 %v1628
      %1686 = vmatpush.bf16.msra.mxu0 %v1627
      %1687 = vmatmul.bf16.gmra.mxu0 %v1632
      %v1688 = vpop.f32.mrf.mxu0
      %v1689 = vadd.f32 %v1617, %v1688
      %v1690 = vpop.f32.mrf.mxu0
      %v1691 = vadd.f32 %v1617, %v1690
      %1692 = vmatmul.bf16.gmra.mxu0 %v1635
      %v1693 = vpop.f32.mrf.mxu0
      %v1694 = vadd.f32 %v1617, %v1693
      %v1695 = vpop.f32.mrf.mxu0
      %v1696 = vadd.f32 %v1617, %v1695
      %1697 = vmatmul.bf16.gmra.mxu0 %v1638
      %v1698 = vpop.f32.mrf.mxu0
      %v1699 = vadd.f32 %v1617, %v1698
      %v1700 = vpop.f32.mrf.mxu0
      %v1701 = vadd.f32 %v1617, %v1700
      %1702 = vmatmul.bf16.gmra.mxu0 %v1641
      %v1703 = vpop.f32.mrf.mxu0
      %v1704 = vadd.f32 %v1617, %v1703
      %v1705 = vpop.f32.mrf.mxu0
      %v1706 = vadd.f32 %v1617, %v1705
      %1707 = vmatmul.bf16.gmra.mxu0 %v1644
      %v1708 = vpop.f32.mrf.mxu0
      %v1709 = vadd.f32 %v1617, %v1708
      %v1710 = vpop.f32.mrf.mxu0
      %v1711 = vadd.f32 %v1617, %v1710
      %1712 = vmatmul.bf16.gmra.mxu0 %v1647
      %v1713 = vpop.f32.mrf.mxu0
      %v1714 = vadd.f32 %v1617, %v1713
      %v1715 = vpop.f32.mrf.mxu0
      %v1716 = vadd.f32 %v1617, %v1715
      %1717 = vmatmul.bf16.gmra.mxu0 %v1650
      %v1718 = vpop.f32.mrf.mxu0
      %v1719 = vadd.f32 %v1617, %v1718
      %v1720 = vpop.f32.mrf.mxu0
      %v1721 = vadd.f32 %v1617, %v1720
      %1722 = vmatmul.bf16.gmra.mxu0 %v1653
      %v1723 = vpop.f32.mrf.mxu0
      %v1724 = vadd.f32 %v1617, %v1723
      %v1725 = vpop.f32.mrf.mxu0
      %v1726 = vadd.f32 %v1617, %v1725
      %1727 = vmatmul.bf16.gmra.mxu0 %v1656
      %v1728 = vpop.f32.mrf.mxu0
      %v1729 = vadd.f32 %v1617, %v1728
      %v1730 = vpop.f32.mrf.mxu0
      %v1731 = vadd.f32 %v1617, %v1730
      %1732 = vmatmul.bf16.gmra.mxu0 %v1659
      %v1733 = vpop.f32.mrf.mxu0
      %v1734 = vadd.f32 %v1617, %v1733
      %v1735 = vpop.f32.mrf.mxu0
      %v1736 = vadd.f32 %v1617, %v1735
      %1737 = vmatmul.bf16.gmra.mxu0 %v1662
      %v1738 = vpop.f32.mrf.mxu0
      %v1739 = vadd.f32 %v1617, %v1738
      %v1740 = vpop.f32.mrf.mxu0
      %v1741 = vadd.f32 %v1617, %v1740
      %1742 = vmatmul.bf16.gmra.mxu0 %v1665
      %v1743 = vpop.f32.mrf.mxu0
      %v1744 = vadd.f32 %v1617, %v1743
      %v1745 = vpop.f32.mrf.mxu0
      %v1746 = vadd.f32 %v1617, %v1745
      %1747 = vmatmul.bf16.gmra.mxu0 %v1668
      %v1748 = vpop.f32.mrf.mxu0
      %v1749 = vadd.f32 %v1617, %v1748
      %v1750 = vpop.f32.mrf.mxu0
      %v1751 = vadd.f32 %v1617, %v1750
      %1752 = vmatmul.bf16.gmra.mxu0 %v1671
      %v1753 = vpop.f32.mrf.mxu0
      %v1754 = vadd.f32 %v1617, %v1753
      %v1755 = vpop.f32.mrf.mxu0
      %v1756 = vadd.f32 %v1617, %v1755
      %1757 = vmatmul.bf16.gmra.mxu0 %v1674
      %v1758 = vpop.f32.mrf.mxu0
      %v1759 = vadd.f32 %v1617, %v1758
      %v1760 = vpop.f32.mrf.mxu0
      %v1761 = vadd.f32 %v1617, %v1760
      %1762 = vmatmul.bf16.gmra.mxu0 %v1677
      %v1763 = vpop.f32.mrf.mxu0
      %v1764 = vadd.f32 %v1617, %v1763
      %v1765 = vpop.f32.mrf.mxu0
      %v1766 = vadd.f32 %v1617, %v1765
      %1767 = vdwg.mxu0
      %v1768 = vmax.f32 %v1689, 0.0
      %v1769 = vmax.f32 %v1691, 0.0
      %v1770 = vmax.f32 %v1694, 0.0
      %v1771 = vmax.f32 %v1696, 0.0
      %v1772 = vmax.f32 %v1699, 0.0
      %v1773 = vmax.f32 %v1701, 0.0
      %v1774 = vmax.f32 %v1704, 0.0
      %v1775 = vmax.f32 %v1706, 0.0
      %v1776 = vmax.f32 %v1709, 0.0
      %v1777 = vmax.f32 %v1711, 0.0
      %v1778 = vmax.f32 %v1714, 0.0
      %v1779 = vmax.f32 %v1716, 0.0
      %v1780 = vmax.f32 %v1719, 0.0
      %v1781 = vmax.f32 %v1721, 0.0
      %v1782 = vmax.f32 %v1724, 0.0
      %v1783 = vmax.f32 %v1726, 0.0
      %v1784 = vmax.f32 %v1729, 0.0
      %v1785 = vmax.f32 %v1731, 0.0
      %v1786 = vmax.f32 %v1734, 0.0
      %v1787 = vmax.f32 %v1736, 0.0
      %v1788 = vmax.f32 %v1739, 0.0
      %v1789 = vmax.f32 %v1741, 0.0
      %v1790 = vmax.f32 %v1744, 0.0
      %v1791 = vmax.f32 %v1746, 0.0
      %v1792 = vmax.f32 %v1749, 0.0
      %v1793 = vmax.f32 %v1751, 0.0
      %v1794 = vmax.f32 %v1754, 0.0
      %v1795 = vmax.f32 %v1756, 0.0
      %v1796 = vmax.f32 %v1759, 0.0
      %v1797 = vmax.f32 %v1761, 0.0
      %v1798 = vmax.f32 %v1764, 0.0
      %v1799 = vmax.f32 %v1766, 0.0
      %v1800 = vadd.f32 %v1354, %v1768
      %v1801 = vadd.f32 %v1355, %v1769
      %v1802 = vadd.f32 %v1356, %v1770
      %v1803 = vadd.f32 %v1357, %v1771
      %v1804 = vadd.f32 %v1358, %v1772
      %v1805 = vadd.f32 %v1359, %v1773
      %v1806 = vadd.f32 %v1360, %v1774
      %v1807 = vadd.f32 %v1361, %v1775
      %v1808 = vadd.f32 %v1362, %v1776
      %v1809 = vadd.f32 %v1363, %v1777
      %v1810 = vadd.f32 %v1364, %v1778
      %v1811 = vadd.f32 %v1365, %v1779
      %v1812 = vadd.f32 %v1366, %v1780
      %v1813 = vadd.f32 %v1367, %v1781
      %v1814 = vadd.f32 %v1368, %v1782
      %v1815 = vadd.f32 %v1369, %v1783
      %v1816 = vadd.f32 %v1370, %v1784
      %v1817 = vadd.f32 %v1371, %v1785
      %v1818 = vadd.f32 %v1372, %v1786
      %v1819 = vadd.f32 %v1373, %v1787
      %v1820 = vadd.f32 %v1374, %v1788
      %v1821 = vadd.f32 %v1375, %v1789
      %v1822 = vadd.f32 %v1376, %v1790
      %v1823 = vadd.f32 %v1377, %v1791
      %v1824 = vadd.f32 %v1378, %v1792
      %v1825 = vadd.f32 %v1379, %v1793
      %v1826 = vadd.f32 %v1380, %v1794
      %v1827 = vadd.f32 %v1381, %v1795
      %v1828 = vadd.f32 %v1382, %v1796
      %v1829 = vadd.f32 %v1383, %v1797
      %v1830 = vadd.f32 %v1384, %v1798
      %v1831 = vadd.f32 %v1385, %v1799
      %v1832 = vld [vmem:[%s7] sm:$0xff]
      %v1833 = vld [vmem:[%s7 + $0x8] sm:$0xff]
      %v1834 = vld [vmem:[%s7 + $0x10] sm:$0xff]
      %v1835 = vld [vmem:[%s7 + $0x18] sm:$0xff]
      %v1836 = vld [vmem:[%s7 + $0x20] sm:$0xff]
      %v1837 = vld [vmem:[%s7 + $0x28] sm:$0xff]
      %v1838 = vld [vmem:[%s7 + $0x30] sm:$0xff]
      %v1839 = vld [vmem:[%s7 + $0x38] sm:$0xff]
      %v1840 = vld [vmem:[%s7 + $0x40] sm:$0xff]
      %v1841 = vld [vmem:[%s7 + $0x48] sm:$0xff]
      %v1842 = vld [vmem:[%s7 + $0x50] sm:$0xff]
      %v1843 = vld [vmem:[%s7 + $0x58] sm:$0xff]
      %v1844 = vld [vmem:[%s7 + $0x60] sm:$0xff]
      %v1845 = vld [vmem:[%s7 + $0x68] sm:$0xff]
      %v1846 = vld [vmem:[%s7 + $0x70] sm:$0xff]
      %v1847 = vld [vmem:[%s7 + $0x78] sm:$0xff]
      %v1848 = vpack.c.bf16 %v1801, %v1800
      %v1849 = vpack.c.bf16 %v1803, %v1802
      %v1850 = vpack.c.bf16 %v1805, %v1804
      %v1851 = vpack.c.bf16 %v1807, %v1806
      %v1852 = vpack.c.bf16 %v1809, %v1808
      %v1853 = vpack.c.bf16 %v1811, %v1810
      %v1854 = vpack.c.bf16 %v1813, %v1812
      %v1855 = vpack.c.bf16 %v1815, %v1814
      %v1856 = vpack.c.bf16 %v1817, %v1816
      %v1857 = vpack.c.bf16 %v1819, %v1818
      %v1858 = vpack.c.bf16 %v1821, %v1820
      %v1859 = vpack.c.bf16 %v1823, %v1822
      %v1860 = vpack.c.bf16 %v1825, %v1824
      %v1861 = vpack.c.bf16 %v1827, %v1826
      %v1862 = vpack.c.bf16 %v1829, %v1828
      %v1863 = vpack.c.bf16 %v1831, %v1830
      %v1880 = vunpack.c.l.b16 %v1832
      %v1881 = vunpack.c.h.b16 %v1832
      %v1882 = vunpack.c.l.b16 %v1833
      %v1883 = vunpack.c.h.b16 %v1833
      %v1884 = vunpack.c.l.b16 %v1834
      %v1885 = vunpack.c.h.b16 %v1834
      %v1886 = vunpack.c.l.b16 %v1835
      %v1887 = vunpack.c.h.b16 %v1835
      %v1888 = vunpack.c.l.b16 %v1836
      %v1889 = vunpack.c.h.b16 %v1836
      %v1890 = vunpack.c.l.b16 %v1837
      %v1891 = vunpack.c.h.b16 %v1837
      %v1892 = vunpack.c.l.b16 %v1838
      %v1893 = vunpack.c.h.b16 %v1838
      %v1894 = vunpack.c.l.b16 %v1839
      %v1895 = vunpack.c.h.b16 %v1839
      %v1896 = vunpack.c.l.b16 %v1840
      %v1897 = vunpack.c.h.b16 %v1840
      %v1898 = vunpack.c.l.b16 %v1841
      %v1899 = vunpack.c.h.b16 %v1841
      %v1900 = vunpack.c.l.b16 %v1842
      %v1901 = vunpack.c.h.b16 %v1842
      %v1902 = vunpack.c.l.b16 %v1843
      %v1903 = vunpack.c.h.b16 %v1843
      %v1904 = vunpack.c.l.b16 %v1844
      %v1905 = vunpack.c.h.b16 %v1844
      %v1906 = vunpack.c.l.b16 %v1845
      %v1907 = vunpack.c.h.b16 %v1845
      %v1908 = vunpack.c.l.b16 %v1846
      %v1909 = vunpack.c.h.b16 %v1846
      %v1910 = vunpack.c.l.b16 %v1847
      %v1911 = vunpack.c.h.b16 %v1847
      %v1912 = vpack.c.b16 %v1882, %v1880
      %v1913 = vpack.c.b16 %v1883, %v1881
      %v1914 = vpack.c.b16 %v1886, %v1884
      %v1915 = vpack.c.b16 %v1887, %v1885
      %v1916 = vpack.c.b16 %v1890, %v1888
      %v1917 = vpack.c.b16 %v1891, %v1889
      %v1918 = vpack.c.b16 %v1894, %v1892
      %v1919 = vpack.c.b16 %v1895, %v1893
      %v1920 = vpack.c.b16 %v1898, %v1896
      %v1921 = vpack.c.b16 %v1899, %v1897
      %v1922 = vpack.c.b16 %v1902, %v1900
      %v1923 = vpack.c.b16 %v1903, %v1901
      %v1924 = vpack.c.b16 %v1906, %v1904
      %v1925 = vpack.c.b16 %v1907, %v1905
      %v1926 = vpack.c.b16 %v1910, %v1908
      %v1927 = vpack.c.b16 %v1911, %v1909
      %1944 = vmatpush.bf16.msra.mxu0 %v1855
      %1945 = vmatpush.bf16.msra.mxu0 %v1854
      %1946 = vmatpush.bf16.msra.mxu0 %v1853
      %1947 = vmatpush.bf16.msra.mxu0 %v1852
      %1948 = vmatpush.bf16.msra.mxu0 %v1851
      %1949 = vmatpush.bf16.msra.mxu0 %v1850
      %1950 = vmatpush.bf16.msra.mxu0 %v1849
      %1951 = vmatpush.bf16.msra.mxu0 %v1848
      %1952 = vmatmul.bf16.gmra.mxu0 %v1912
      %v1953 = vpop.f32.mrf.mxu0
      %v1954 = vadd.f32 0.0, %v1953
      %v1955 = vpop.f32.mrf.mxu0
      %v1956 = vadd.f32 0.0, %v1955
      %1957 = vmatmul.bf16.gmra.mxu0 %v1914
      %v1958 = vpop.f32.mrf.mxu0
      %v1959 = vadd.f32 0.0, %v1958
      %v1960 = vpop.f32.mrf.mxu0
      %v1961 = vadd.f32 0.0, %v1960
      %1962 = vmatmul.bf16.gmra.mxu0 %v1916
      %v1963 = vpop.f32.mrf.mxu0
      %v1964 = vadd.f32 0.0, %v1963
      %v1965 = vpop.f32.mrf.mxu0
      %v1966 = vadd.f32 0.0, %v1965
      %1967 = vmatmul.bf16.gmra.mxu0 %v1918
      %v1968 = vpop.f32.mrf.mxu0
      %v1969 = vadd.f32 0.0, %v1968
      %v1970 = vpop.f32.mrf.mxu0
      %v1971 = vadd.f32 0.0, %v1970
      %1972 = vmatmul.bf16.gmra.mxu0 %v1920
      %v1973 = vpop.f32.mrf.mxu0
      %v1974 = vadd.f32 0.0, %v1973
      %v1975 = vpop.f32.mrf.mxu0
      %v1976 = vadd.f32 0.0, %v1975
      %1977 = vmatmul.bf16.gmra.mxu0 %v1922
      %v1978 = vpop.f32.mrf.mxu0
      %v1979 = vadd.f32 0.0, %v1978
      %v1980 = vpop.f32.mrf.mxu0
      %v1981 = vadd.f32 0.0, %v1980
      %1982 = vmatmul.bf16.gmra.mxu0 %v1924
      %v1983 = vpop.f32.mrf.mxu0
      %v1984 = vadd.f32 0.0, %v1983
      %v1985 = vpop.f32.mrf.mxu0
      %v1986 = vadd.f32 0.0, %v1985
      %1987 = vmatmul.bf16.gmra.mxu0 %v1926
      %v1988 = vpop.f32.mrf.mxu0
      %v1989 = vadd.f32 0.0, %v1988
      %v1990 = vpop.f32.mrf.mxu0
      %v1991 = vadd.f32 0.0, %v1990
      %1992 = vdwg.mxu0
      %1993 = vmatpush.bf16.msra.mxu0 %v1863
      %1994 = vmatpush.bf16.msra.mxu0 %v1862
      %1995 = vmatpush.bf16.msra.mxu0 %v1861
      %1996 = vmatpush.bf16.msra.mxu0 %v1860
      %1997 = vmatpush.bf16.msra.mxu0 %v1859
      %1998 = vmatpush.bf16.msra.mxu0 %v1858
      %1999 = vmatpush.bf16.msra.mxu0 %v1857
      %2000 = vmatpush.bf16.msra.mxu0 %v1856
      %2001 = vmatmul.bf16.gmra.mxu0 %v1913
      %v2002 = vpop.f32.mrf.mxu0
      %v2003 = vadd.f32 %v1954, %v2002
      %v2004 = vpop.f32.mrf.mxu0
      %v2005 = vadd.f32 %v1956, %v2004
      %2006 = vmatmul.bf16.gmra.mxu0 %v1915
      %v2007 = vpop.f32.mrf.mxu0
      %v2008 = vadd.f32 %v1959, %v2007
      %v2009 = vpop.f32.mrf.mxu0
      %v2010 = vadd.f32 %v1961, %v2009
      %2011 = vmatmul.bf16.gmra.mxu0 %v1917
      %v2012 = vpop.f32.mrf.mxu0
      %v2013 = vadd.f32 %v1964, %v2012
      %v2014 = vpop.f32.mrf.mxu0
      %v2015 = vadd.f32 %v1966, %v2014
      %2016 = vmatmul.bf16.gmra.mxu0 %v1919
      %v2017 = vpop.f32.mrf.mxu0
      %v2018 = vadd.f32 %v1969, %v2017
      %v2019 = vpop.f32.mrf.mxu0
      %v2020 = vadd.f32 %v1971, %v2019
      %2021 = vmatmul.bf16.gmra.mxu0 %v1921
      %v2022 = vpop.f32.mrf.mxu0
      %v2023 = vadd.f32 %v1974, %v2022
      %v2024 = vpop.f32.mrf.mxu0
      %v2025 = vadd.f32 %v1976, %v2024
      %2026 = vmatmul.bf16.gmra.mxu0 %v1923
      %v2027 = vpop.f32.mrf.mxu0
      %v2028 = vadd.f32 %v1979, %v2027
      %v2029 = vpop.f32.mrf.mxu0
      %v2030 = vadd.f32 %v1981, %v2029
      %2031 = vmatmul.bf16.gmra.mxu0 %v1925
      %v2032 = vpop.f32.mrf.mxu0
      %v2033 = vadd.f32 %v1984, %v2032
      %v2034 = vpop.f32.mrf.mxu0
      %v2035 = vadd.f32 %v1986, %v2034
      %2036 = vmatmul.bf16.gmra.mxu0 %v1927
      %v2037 = vpop.f32.mrf.mxu0
      %v2038 = vadd.f32 %v1989, %v2037
      %v2039 = vpop.f32.mrf.mxu0
      %v2040 = vadd.f32 %v1991, %v2039
      %2041 = vdwg.mxu0
      %v2042 = vpack.c.bf16 %v2005, %v2003
      %v2043 = vpack.c.bf16 %v2010, %v2008
      %v2044 = vpack.c.bf16 %v2015, %v2013
      %v2045 = vpack.c.bf16 %v2020, %v2018
      %v2046 = vpack.c.bf16 %v2025, %v2023
      %v2047 = vpack.c.bf16 %v2030, %v2028
      %v2048 = vpack.c.bf16 %v2035, %v2033
      %v2049 = vpack.c.bf16 %v2040, %v2038
      %s2050 = scalar_lea.vmem %s5, 64
      %v2051 = vld [vmem:[%s2050] sm:$0xf]
      %v2052 = vld [vmem:[%s2050 + $0x4] sm:$0xf]
      %v2053 = vld [vmem:[%s2050 + $0x8] sm:$0xf]
      %v2054 = vld [vmem:[%s2050 + $0xc] sm:$0xf]
      %s2055 = scalar_lea.vmem %s6, 4
      %v2056 = vld [vmem:[%s2055] sm:$0x1]
      %v2058 = vperm.slane %v2056, 0
      %v2064 = vunpack.c.l.b16 %v2051
      %v2065 = vunpack.c.l.b16 %v2052
      %v2066 = vunpack.c.l.b16 %v2053
      %v2067 = vunpack.c.l.b16 %v2054
      %v2068 = vpack.c.b16 %v2065, %v2064
      %v2069 = vpack.c.b16 %v2067, %v2066
      %v2073 = vsel %vm977, %v2042, 0
      %v2076 = vsel %vm977, %v2043, 0
      %v2079 = vsel %vm977, %v2044, 0
      %v2082 = vsel %vm977, %v2045, 0
      %v2085 = vsel %vm977, %v2046, 0
      %v2088 = vsel %vm977, %v2047, 0
      %v2091 = vsel %vm977, %v2048, 0
      %v2094 = vsel %vm977, %v2049, 0
      %2096 = vmatpush.bf16.msra.mxu0 0
      %2097 = vmatpush.bf16.msra.mxu0 0
      %2098 = vmatpush.bf16.msra.mxu0 0
      %2099 = vmatpush.bf16.msra.mxu0 0
      %2100 = vmatpush.bf16.msra.mxu0 0
      %2101 = vmatpush.bf16.msra.mxu0 0
      %2102 = vmatpush.bf16.msra.mxu0 %v2069
      %2103 = vmatpush.bf16.msra.mxu0 %v2068
      %2104 = vmatmul.bf16.gmra.mxu0 %v2073
      %v2105 = vpop.f32.mrf.mxu0
      %v2106 = vadd.f32 %v2058, %v2105
      %v2107 = vpop.f32.mrf.mxu0
      %v2108 = vadd.f32 %v2058, %v2107
      %2109 = vmatmul.bf16.gmra.mxu0 %v2076
      %v2110 = vpop.f32.mrf.mxu0
      %v2111 = vadd.f32 %v2058, %v2110
      %v2112 = vpop.f32.mrf.mxu0
      %v2113 = vadd.f32 %v2058, %v2112
      %2114 = vmatmul.bf16.gmra.mxu0 %v2079
      %v2115 = vpop.f32.mrf.mxu0
      %v2116 = vadd.f32 %v2058, %v2115
      %v2117 = vpop.f32.mrf.mxu0
      %v2118 = vadd.f32 %v2058, %v2117
      %2119 = vmatmul.bf16.gmra.mxu0 %v2082
      %v2120 = vpop.f32.mrf.mxu0
      %v2121 = vadd.f32 %v2058, %v2120
      %v2122 = vpop.f32.mrf.mxu0
      %v2123 = vadd.f32 %v2058, %v2122
      %2124 = vmatmul.bf16.gmra.mxu0 %v2085
      %v2125 = vpop.f32.mrf.mxu0
      %v2126 = vadd.f32 %v2058, %v2125
      %v2127 = vpop.f32.mrf.mxu0
      %v2128 = vadd.f32 %v2058, %v2127
      %2129 = vmatmul.bf16.gmra.mxu0 %v2088
      %v2130 = vpop.f32.mrf.mxu0
      %v2131 = vadd.f32 %v2058, %v2130
      %v2132 = vpop.f32.mrf.mxu0
      %v2133 = vadd.f32 %v2058, %v2132
      %2134 = vmatmul.bf16.gmra.mxu0 %v2091
      %v2135 = vpop.f32.mrf.mxu0
      %v2136 = vadd.f32 %v2058, %v2135
      %v2137 = vpop.f32.mrf.mxu0
      %v2138 = vadd.f32 %v2058, %v2137
      %2139 = vmatmul.bf16.gmra.mxu0 %v2094
      %v2140 = vpop.f32.mrf.mxu0
      %v2141 = vadd.f32 %v2058, %v2140
      %v2142 = vpop.f32.mrf.mxu0
      %v2143 = vadd.f32 %v2058, %v2142
      %2144 = vdwg.mxu0
      %v2145 = vmax.f32 %v2106, 0.0
      %v2146 = vmax.f32 %v2108, 0.0
      %v2147 = vmax.f32 %v2111, 0.0
      %v2148 = vmax.f32 %v2113, 0.0
      %v2149 = vmax.f32 %v2116, 0.0
      %v2150 = vmax.f32 %v2118, 0.0
      %v2151 = vmax.f32 %v2121, 0.0
      %v2152 = vmax.f32 %v2123, 0.0
      %v2153 = vmax.f32 %v2126, 0.0
      %v2154 = vmax.f32 %v2128, 0.0
      %v2155 = vmax.f32 %v2131, 0.0
      %v2156 = vmax.f32 %v2133, 0.0
      %v2157 = vmax.f32 %v2136, 0.0
      %v2158 = vmax.f32 %v2138, 0.0
      %v2159 = vmax.f32 %v2141, 0.0
      %v2160 = vmax.f32 %v2143, 0.0
      %v2161 = vpack.c.bf16 %v2146, %v2145
      %v2162 = vpack.c.bf16 %v2148, %v2147
      %v2163 = vpack.c.bf16 %v2150, %v2149
      %v2164 = vpack.c.bf16 %v2152, %v2151
      %v2165 = vpack.c.bf16 %v2154, %v2153
      %v2166 = vpack.c.bf16 %v2156, %v2155
      %v2167 = vpack.c.bf16 %v2158, %v2157
      %v2168 = vpack.c.bf16 %v2160, %v2159
      %s2169 = scalar_lea.vmem %s5, 80
      %v2170 = vld [vmem:[%s2169] sm:$0xf]
      %v2171 = vld [vmem:[%s2169 + $0x4] sm:$0xf]
      %v2172 = vld [vmem:[%s2169 + $0x8] sm:$0xf]
      %v2173 = vld [vmem:[%s2169 + $0xc] sm:$0xf]
      %s2174 = scalar_lea.vmem %s6, 5
      %v2175 = vld [vmem:[%s2174] sm:$0x1]
      %v2177 = vperm.slane %v2175, 0
      %v2183 = vunpack.c.l.b16 %v2170
      %v2184 = vunpack.c.l.b16 %v2171
      %v2185 = vunpack.c.l.b16 %v2172
      %v2186 = vunpack.c.l.b16 %v2173
      %v2187 = vpack.c.b16 %v2184, %v2183
      %v2188 = vpack.c.b16 %v2186, %v2185
      %v2192 = vsel %vm977, %v2161, 0
      %v2195 = vsel %vm977, %v2162, 0
      %v2198 = vsel %vm977, %v2163, 0
      %v2201 = vsel %vm977, %v2164, 0
      %v2204 = vsel %vm977, %v2165, 0
      %v2207 = vsel %vm977, %v2166, 0
      %v2210 = vsel %vm977, %v2167, 0
      %v2213 = vsel %vm977, %v2168, 0
      %2215 = vmatpush.bf16.msra.mxu0 0
      %2216 = vmatpush.bf16.msra.mxu0 0
      %2217 = vmatpush.bf16.msra.mxu0 0
      %2218 = vmatpush.bf16.msra.mxu0 0
      %2219 = vmatpush.bf16.msra.mxu0 0
      %2220 = vmatpush.bf16.msra.mxu0 0
      %2221 = vmatpush.bf16.msra.mxu0 %v2188
      %2222 = vmatpush.bf16.msra.mxu0 %v2187
      %2223 = vmatmul.bf16.gmra.mxu0 %v2192
      %v2224 = vpop.f32.mrf.mxu0
      %v2225 = vadd.f32 %v2177, %v2224
      %v2226 = vpop.f32.mrf.mxu0
      %v2227 = vadd.f32 %v2177, %v2226
      %2228 = vmatmul.bf16.gmra.mxu0 %v2195
      %v2229 = vpop.f32.mrf.mxu0
      %v2230 = vadd.f32 %v2177, %v2229
      %v2231 = vpop.f32.mrf.mxu0
      %v2232 = vadd.f32 %v2177, %v2231
      %2233 = vmatmul.bf16.gmra.mxu0 %v2198
      %v2234 = vpop.f32.mrf.mxu0
      %v2235 = vadd.f32 %v2177, %v2234
      %v2236 = vpop.f32.mrf.mxu0
      %v2237 = vadd.f32 %v2177, %v2236
      %2238 = vmatmul.bf16.gmra.mxu0 %v2201
      %v2239 = vpop.f32.mrf.mxu0
      %v2240 = vadd.f32 %v2177, %v2239
      %v2241 = vpop.f32.mrf.mxu0
      %v2242 = vadd.f32 %v2177, %v2241
      %2243 = vmatmul.bf16.gmra.mxu0 %v2204
      %v2244 = vpop.f32.mrf.mxu0
      %v2245 = vadd.f32 %v2177, %v2244
      %v2246 = vpop.f32.mrf.mxu0
      %v2247 = vadd.f32 %v2177, %v2246
      %2248 = vmatmul.bf16.gmra.mxu0 %v2207
      %v2249 = vpop.f32.mrf.mxu0
      %v2250 = vadd.f32 %v2177, %v2249
      %v2251 = vpop.f32.mrf.mxu0
      %v2252 = vadd.f32 %v2177, %v2251
      %2253 = vmatmul.bf16.gmra.mxu0 %v2210
      %v2254 = vpop.f32.mrf.mxu0
      %v2255 = vadd.f32 %v2177, %v2254
      %v2256 = vpop.f32.mrf.mxu0
      %v2257 = vadd.f32 %v2177, %v2256
      %2258 = vmatmul.bf16.gmra.mxu0 %v2213
      %v2259 = vpop.f32.mrf.mxu0
      %v2260 = vadd.f32 %v2177, %v2259
      %v2261 = vpop.f32.mrf.mxu0
      %v2262 = vadd.f32 %v2177, %v2261
      %2263 = vdwg.mxu0
      %v2264 = vmax.f32 %v2225, 0.0
      %v2265 = vmax.f32 %v2227, 0.0
      %v2266 = vmax.f32 %v2230, 0.0
      %v2267 = vmax.f32 %v2232, 0.0
      %v2268 = vmax.f32 %v2235, 0.0
      %v2269 = vmax.f32 %v2237, 0.0
      %v2270 = vmax.f32 %v2240, 0.0
      %v2271 = vmax.f32 %v2242, 0.0
      %v2272 = vmax.f32 %v2245, 0.0
      %v2273 = vmax.f32 %v2247, 0.0
      %v2274 = vmax.f32 %v2250, 0.0
      %v2275 = vmax.f32 %v2252, 0.0
      %v2276 = vmax.f32 %v2255, 0.0
      %v2277 = vmax.f32 %v2257, 0.0
      %v2278 = vmax.f32 %v2260, 0.0
      %v2279 = vmax.f32 %v2262, 0.0
      %v2280 = vadd.f32 %v2003, %v2264
      %v2281 = vadd.f32 %v2005, %v2265
      %v2282 = vadd.f32 %v2008, %v2266
      %v2283 = vadd.f32 %v2010, %v2267
      %v2284 = vadd.f32 %v2013, %v2268
      %v2285 = vadd.f32 %v2015, %v2269
      %v2286 = vadd.f32 %v2018, %v2270
      %v2287 = vadd.f32 %v2020, %v2271
      %v2288 = vadd.f32 %v2023, %v2272
      %v2289 = vadd.f32 %v2025, %v2273
      %v2290 = vadd.f32 %v2028, %v2274
      %v2291 = vadd.f32 %v2030, %v2275
      %v2292 = vadd.f32 %v2033, %v2276
      %v2293 = vadd.f32 %v2035, %v2277
      %v2294 = vadd.f32 %v2038, %v2278
      %v2295 = vadd.f32 %v2040, %v2279
      %v2296 = vpack.c.bf16 %v2281, %v2280
      %v2297 = vpack.c.bf16 %v2283, %v2282
      %v2298 = vpack.c.bf16 %v2285, %v2284
      %v2299 = vpack.c.bf16 %v2287, %v2286
      %v2300 = vpack.c.bf16 %v2289, %v2288
      %v2301 = vpack.c.bf16 %v2291, %v2290
      %v2302 = vpack.c.bf16 %v2293, %v2292
      %v2303 = vpack.c.bf16 %v2295, %v2294
      %s2304 = scalar_lea.vmem %s5, 96
      %v2305 = vld [vmem:[%s2304] sm:$0xf]
      %v2306 = vld [vmem:[%s2304 + $0x4] sm:$0xf]
      %v2307 = vld [vmem:[%s2304 + $0x8] sm:$0xf]
      %v2308 = vld [vmem:[%s2304 + $0xc] sm:$0xf]
      %s2309 = scalar_lea.vmem %s6, 6
      %v2310 = vld [vmem:[%s2309] sm:$0x1]
      %v2312 = vperm.slane %v2310, 0
      %v2318 = vunpack.c.l.b16 %v2305
      %v2319 = vunpack.c.l.b16 %v2306
      %v2320 = vunpack.c.l.b16 %v2307
      %v2321 = vunpack.c.l.b16 %v2308
      %v2322 = vpack.c.b16 %v2319, %v2318
      %v2323 = vpack.c.b16 %v2321, %v2320
      %v2327 = vsel %vm977, %v2296, 0
      %v2330 = vsel %vm977, %v2297, 0
      %v2333 = vsel %vm977, %v2298, 0
      %v2336 = vsel %vm977, %v2299, 0
      %v2339 = vsel %vm977, %v2300, 0
      %v2342 = vsel %vm977, %v2301, 0
      %v2345 = vsel %vm977, %v2302, 0
      %v2348 = vsel %vm977, %v2303, 0
      %2350 = vmatpush.bf16.msra.mxu0 0
      %2351 = vmatpush.bf16.msra.mxu0 0
      %2352 = vmatpush.bf16.msra.mxu0 0
      %2353 = vmatpush.bf16.msra.mxu0 0
      %2354 = vmatpush.bf16.msra.mxu0 0
      %2355 = vmatpush.bf16.msra.mxu0 0
      %2356 = vmatpush.bf16.msra.mxu0 %v2323
      %2357 = vmatpush.bf16.msra.mxu0 %v2322
      %2358 = vmatmul.bf16.gmra.mxu0 %v2327
      %v2359 = vpop.f32.mrf.mxu0
      %v2360 = vadd.f32 %v2312, %v2359
      %v2361 = vpop.f32.mrf.mxu0
      %v2362 = vadd.f32 %v2312, %v2361
      %2363 = vmatmul.bf16.gmra.mxu0 %v2330
      %v2364 = vpop.f32.mrf.mxu0
      %v2365 = vadd.f32 %v2312, %v2364
      %v2366 = vpop.f32.mrf.mxu0
      %v2367 = vadd.f32 %v2312, %v2366
      %2368 = vmatmul.bf16.gmra.mxu0 %v2333
      %v2369 = vpop.f32.mrf.mxu0
      %v2370 = vadd.f32 %v2312, %v2369
      %v2371 = vpop.f32.mrf.mxu0
      %v2372 = vadd.f32 %v2312, %v2371
      %2373 = vmatmul.bf16.gmra.mxu0 %v2336
      %v2374 = vpop.f32.mrf.mxu0
      %v2375 = vadd.f32 %v2312, %v2374
      %v2376 = vpop.f32.mrf.mxu0
      %v2377 = vadd.f32 %v2312, %v2376
      %2378 = vmatmul.bf16.gmra.mxu0 %v2339
      %v2379 = vpop.f32.mrf.mxu0
      %v2380 = vadd.f32 %v2312, %v2379
      %v2381 = vpop.f32.mrf.mxu0
      %v2382 = vadd.f32 %v2312, %v2381
      %2383 = vmatmul.bf16.gmra.mxu0 %v2342
      %v2384 = vpop.f32.mrf.mxu0
      %v2385 = vadd.f32 %v2312, %v2384
      %v2386 = vpop.f32.mrf.mxu0
      %v2387 = vadd.f32 %v2312, %v2386
      %2388 = vmatmul.bf16.gmra.mxu0 %v2345
      %v2389 = vpop.f32.mrf.mxu0
      %v2390 = vadd.f32 %v2312, %v2389
      %v2391 = vpop.f32.mrf.mxu0
      %v2392 = vadd.f32 %v2312, %v2391
      %2393 = vmatmul.bf16.gmra.mxu0 %v2348
      %v2394 = vpop.f32.mrf.mxu0
      %v2395 = vadd.f32 %v2312, %v2394
      %v2396 = vpop.f32.mrf.mxu0
      %v2397 = vadd.f32 %v2312, %v2396
      %2398 = vdwg.mxu0
      %v2399 = vmax.f32 %v2360, 0.0
      %v2400 = vmax.f32 %v2362, 0.0
      %v2401 = vmax.f32 %v2365, 0.0
      %v2402 = vmax.f32 %v2367, 0.0
      %v2403 = vmax.f32 %v2370, 0.0
      %v2404 = vmax.f32 %v2372, 0.0
      %v2405 = vmax.f32 %v2375, 0.0
      %v2406 = vmax.f32 %v2377, 0.0
      %v2407 = vmax.f32 %v2380, 0.0
      %v2408 = vmax.f32 %v2382, 0.0
      %v2409 = vmax.f32 %v2385, 0.0
      %v2410 = vmax.f32 %v2387, 0.0
      %v2411 = vmax.f32 %v2390, 0.0
      %v2412 = vmax.f32 %v2392, 0.0
      %v2413 = vmax.f32 %v2395, 0.0
      %v2414 = vmax.f32 %v2397, 0.0
      %v2415 = vpack.c.bf16 %v2400, %v2399
      %v2416 = vpack.c.bf16 %v2402, %v2401
      %v2417 = vpack.c.bf16 %v2404, %v2403
      %v2418 = vpack.c.bf16 %v2406, %v2405
      %v2419 = vpack.c.bf16 %v2408, %v2407
      %v2420 = vpack.c.bf16 %v2410, %v2409
      %v2421 = vpack.c.bf16 %v2412, %v2411
      %v2422 = vpack.c.bf16 %v2414, %v2413
      %s2423 = scalar_lea.vmem %s5, 112
      %v2424 = vld [vmem:[%s2423] sm:$0xf]
      %v2425 = vld [vmem:[%s2423 + $0x4] sm:$0xf]
      %v2426 = vld [vmem:[%s2423 + $0x8] sm:$0xf]
      %v2427 = vld [vmem:[%s2423 + $0xc] sm:$0xf]
      %s2428 = scalar_lea.vmem %s6, 7
      %v2429 = vld [vmem:[%s2428] sm:$0x1]
      %v2431 = vperm.slane %v2429, 0
      %v2437 = vunpack.c.l.b16 %v2424
      %v2438 = vunpack.c.l.b16 %v2425
      %v2439 = vunpack.c.l.b16 %v2426
      %v2440 = vunpack.c.l.b16 %v2427
      %v2441 = vpack.c.b16 %v2438, %v2437
      %v2442 = vpack.c.b16 %v2440, %v2439
      %v2446 = vsel %vm977, %v2415, 0
      %v2449 = vsel %vm977, %v2416, 0
      %v2452 = vsel %vm977, %v2417, 0
      %v2455 = vsel %vm977, %v2418, 0
      %v2458 = vsel %vm977, %v2419, 0
      %v2461 = vsel %vm977, %v2420, 0
      %v2464 = vsel %vm977, %v2421, 0
      %v2467 = vsel %vm977, %v2422, 0
      %2469 = vmatpush.bf16.msra.mxu0 0
      %2470 = vmatpush.bf16.msra.mxu0 0
      %2471 = vmatpush.bf16.msra.mxu0 0
      %2472 = vmatpush.bf16.msra.mxu0 0
      %2473 = vmatpush.bf16.msra.mxu0 0
      %2474 = vmatpush.bf16.msra.mxu0 0
      %2475 = vmatpush.bf16.msra.mxu0 %v2442
      %2476 = vmatpush.bf16.msra.mxu0 %v2441
      %2477 = vmatmul.bf16.gmra.mxu0 %v2446
      %v2478 = vpop.f32.mrf.mxu0
      %v2479 = vadd.f32 %v2431, %v2478
      %v2480 = vpop.f32.mrf.mxu0
      %v2481 = vadd.f32 %v2431, %v2480
      %2482 = vmatmul.bf16.gmra.mxu0 %v2449
      %v2483 = vpop.f32.mrf.mxu0
      %v2484 = vadd.f32 %v2431, %v2483
      %v2485 = vpop.f32.mrf.mxu0
      %v2486 = vadd.f32 %v2431, %v2485
      %2487 = vmatmul.bf16.gmra.mxu0 %v2452
      %v2488 = vpop.f32.mrf.mxu0
      %v2489 = vadd.f32 %v2431, %v2488
      %v2490 = vpop.f32.mrf.mxu0
      %v2491 = vadd.f32 %v2431, %v2490
      %2492 = vmatmul.bf16.gmra.mxu0 %v2455
      %v2493 = vpop.f32.mrf.mxu0
      %v2494 = vadd.f32 %v2431, %v2493
      %v2495 = vpop.f32.mrf.mxu0
      %v2496 = vadd.f32 %v2431, %v2495
      %2497 = vmatmul.bf16.gmra.mxu0 %v2458
      %v2498 = vpop.f32.mrf.mxu0
      %v2499 = vadd.f32 %v2431, %v2498
      %v2500 = vpop.f32.mrf.mxu0
      %v2501 = vadd.f32 %v2431, %v2500
      %2502 = vmatmul.bf16.gmra.mxu0 %v2461
      %v2503 = vpop.f32.mrf.mxu0
      %v2504 = vadd.f32 %v2431, %v2503
      %v2505 = vpop.f32.mrf.mxu0
      %v2506 = vadd.f32 %v2431, %v2505
      %2507 = vmatmul.bf16.gmra.mxu0 %v2464
      %v2508 = vpop.f32.mrf.mxu0
      %v2509 = vadd.f32 %v2431, %v2508
      %v2510 = vpop.f32.mrf.mxu0
      %v2511 = vadd.f32 %v2431, %v2510
      %2512 = vmatmul.bf16.gmra.mxu0 %v2467
      %v2513 = vpop.f32.mrf.mxu0
      %v2514 = vadd.f32 %v2431, %v2513
      %v2515 = vpop.f32.mrf.mxu0
      %v2516 = vadd.f32 %v2431, %v2515
      %2517 = vdwg.mxu0
      %v2518 = vmax.f32 %v2479, 0.0
      %v2519 = vmax.f32 %v2481, 0.0
      %v2520 = vmax.f32 %v2484, 0.0
      %v2521 = vmax.f32 %v2486, 0.0
      %v2522 = vmax.f32 %v2489, 0.0
      %v2523 = vmax.f32 %v2491, 0.0
      %v2524 = vmax.f32 %v2494, 0.0
      %v2525 = vmax.f32 %v2496, 0.0
      %v2526 = vmax.f32 %v2499, 0.0
      %v2527 = vmax.f32 %v2501, 0.0
      %v2528 = vmax.f32 %v2504, 0.0
      %v2529 = vmax.f32 %v2506, 0.0
      %v2530 = vmax.f32 %v2509, 0.0
      %v2531 = vmax.f32 %v2511, 0.0
      %v2532 = vmax.f32 %v2514, 0.0
      %v2533 = vmax.f32 %v2516, 0.0
      %v2534 = vadd.f32 %v2280, %v2518
      %v2535 = vadd.f32 %v2281, %v2519
      %v2536 = vadd.f32 %v2282, %v2520
      %v2537 = vadd.f32 %v2283, %v2521
      %v2538 = vadd.f32 %v2284, %v2522
      %v2539 = vadd.f32 %v2285, %v2523
      %v2540 = vadd.f32 %v2286, %v2524
      %v2541 = vadd.f32 %v2287, %v2525
      %v2542 = vadd.f32 %v2288, %v2526
      %v2543 = vadd.f32 %v2289, %v2527
      %v2544 = vadd.f32 %v2290, %v2528
      %v2545 = vadd.f32 %v2291, %v2529
      %v2546 = vadd.f32 %v2292, %v2530
      %v2547 = vadd.f32 %v2293, %v2531
      %v2548 = vadd.f32 %v2294, %v2532
      %v2549 = vadd.f32 %v2295, %v2533
      %v2550 = vld [vmem:[%s7] sm:$0xf]
      %v2551 = vld [vmem:[%s7 + $0x8] sm:$0xf]
      %v2552 = vld [vmem:[%s7 + $0x10] sm:$0xf]
      %v2553 = vld [vmem:[%s7 + $0x18] sm:$0xf]
      %v2554 = vld [vmem:[%s7 + $0x20] sm:$0xf]
      %v2555 = vld [vmem:[%s7 + $0x28] sm:$0xf]
      %v2556 = vld [vmem:[%s7 + $0x30] sm:$0xf]
      %v2557 = vld [vmem:[%s7 + $0x38] sm:$0xf]
      %v2558 = vpack.c.bf16 %v2535, %v2534
      %v2559 = vpack.c.bf16 %v2537, %v2536
      %v2560 = vpack.c.bf16 %v2539, %v2538
      %v2561 = vpack.c.bf16 %v2541, %v2540
      %v2562 = vpack.c.bf16 %v2543, %v2542
      %v2563 = vpack.c.bf16 %v2545, %v2544
      %v2564 = vpack.c.bf16 %v2547, %v2546
      %v2565 = vpack.c.bf16 %v2549, %v2548
      %v2574 = vunpack.c.l.b16 %v2550
      %v2575 = vunpack.c.l.b16 %v2551
      %v2576 = vunpack.c.l.b16 %v2552
      %v2577 = vunpack.c.l.b16 %v2553
      %v2578 = vunpack.c.l.b16 %v2554
      %v2579 = vunpack.c.l.b16 %v2555
      %v2580 = vunpack.c.l.b16 %v2556
      %v2581 = vunpack.c.l.b16 %v2557
      %v2582 = vpack.c.b16 %v2575, %v2574
      %v2583 = vpack.c.b16 %v2577, %v2576
      %v2584 = vpack.c.b16 %v2579, %v2578
      %v2585 = vpack.c.b16 %v2581, %v2580
      %2590 = vmatpush.bf16.msra.mxu0 %v2565
      %2591 = vmatpush.bf16.msra.mxu0 %v2564
      %2592 = vmatpush.bf16.msra.mxu0 %v2563
      %2593 = vmatpush.bf16.msra.mxu0 %v2562
      %2594 = vmatpush.bf16.msra.mxu0 %v2561
      %2595 = vmatpush.bf16.msra.mxu0 %v2560
      %2596 = vmatpush.bf16.msra.mxu0 %v2559
      %2597 = vmatpush.bf16.msra.mxu0 %v2558
      %2598 = vmatmul.bf16.gmra.mxu0 %v2582
      %v2599 = vpop.f32.mrf.mxu0
      %v2600 = vadd.f32 0.0, %v2599
      %v2601 = vpop.f32.mrf.mxu0
      %v2602 = vadd.f32 0.0, %v2601
      %2603 = vmatmul.bf16.gmra.mxu0 %v2583
      %v2604 = vpop.f32.mrf.mxu0
      %v2605 = vadd.f32 0.0, %v2604
      %v2606 = vpop.f32.mrf.mxu0
      %v2607 = vadd.f32 0.0, %v2606
      %2608 = vmatmul.bf16.gmra.mxu0 %v2584
      %v2609 = vpop.f32.mrf.mxu0
      %v2610 = vadd.f32 0.0, %v2609
      %v2611 = vpop.f32.mrf.mxu0
      %v2612 = vadd.f32 0.0, %v2611
      %2613 = vmatmul.bf16.gmra.mxu0 %v2585
      %v2614 = vpop.f32.mrf.mxu0
      %v2615 = vadd.f32 0.0, %v2614
      %v2616 = vpop.f32.mrf.mxu0
      %v2617 = vadd.f32 0.0, %v2616
      %2618 = vdwg.mxu0
      %v2619 = vpack.c.bf16 %v2602, %v2600
      %v2620 = vpack.c.bf16 %v2607, %v2605
      %v2621 = vpack.c.bf16 %v2612, %v2610
      %v2622 = vpack.c.bf16 %v2617, %v2615
      %s2623 = scalar_lea.vmem %s5, 128
      %v2624 = vld [vmem:[%s2623] sm:$0xf]
      %v2625 = vld [vmem:[%s2623 + $0x4] sm:$0xf]
      %v2626 = vld [vmem:[%s2623 + $0x8] sm:$0xf]
      %v2627 = vld [vmem:[%s2623 + $0xc] sm:$0xf]
      %s2628 = scalar_lea.vmem %s6, 8
      %v2629 = vld [vmem:[%s2628] sm:$0x1]
      %v2631 = vperm.slane %v2629, 0
      %v2637 = vunpack.c.l.b16 %v2624
      %v2638 = vunpack.c.l.b16 %v2625
      %v2639 = vunpack.c.l.b16 %v2626
      %v2640 = vunpack.c.l.b16 %v2627
      %v2641 = vpack.c.b16 %v2638, %v2637
      %v2642 = vpack.c.b16 %v2640, %v2639
      %v2646 = vsel %vm977, %v2619, 0
      %v2649 = vsel %vm977, %v2620, 0
      %v2652 = vsel %vm977, %v2621, 0
      %v2655 = vsel %vm977, %v2622, 0
      %2657 = vmatpush.bf16.msra.mxu0 0
      %2658 = vmatpush.bf16.msra.mxu0 0
      %2659 = vmatpush.bf16.msra.mxu0 0
      %2660 = vmatpush.bf16.msra.mxu0 0
      %2661 = vmatpush.bf16.msra.mxu0 0
      %2662 = vmatpush.bf16.msra.mxu0 0
      %2663 = vmatpush.bf16.msra.mxu0 %v2642
      %2664 = vmatpush.bf16.msra.mxu0 %v2641
      %2665 = vmatmul.bf16.gmra.mxu0 %v2646
      %v2666 = vpop.f32.mrf.mxu0
      %v2667 = vadd.f32 %v2631, %v2666
      %v2668 = vpop.f32.mrf.mxu0
      %v2669 = vadd.f32 %v2631, %v2668
      %2670 = vmatmul.bf16.gmra.mxu0 %v2649
      %v2671 = vpop.f32.mrf.mxu0
      %v2672 = vadd.f32 %v2631, %v2671
      %v2673 = vpop.f32.mrf.mxu0
      %v2674 = vadd.f32 %v2631, %v2673
      %2675 = vmatmul.bf16.gmra.mxu0 %v2652
      %v2676 = vpop.f32.mrf.mxu0
      %v2677 = vadd.f32 %v2631, %v2676
      %v2678 = vpop.f32.mrf.mxu0
      %v2679 = vadd.f32 %v2631, %v2678
      %2680 = vmatmul.bf16.gmra.mxu0 %v2655
      %v2681 = vpop.f32.mrf.mxu0
      %v2682 = vadd.f32 %v2631, %v2681
      %v2683 = vpop.f32.mrf.mxu0
      %v2684 = vadd.f32 %v2631, %v2683
      %2685 = vdwg.mxu0
      %v2686 = vmax.f32 %v2667, 0.0
      %v2687 = vmax.f32 %v2669, 0.0
      %v2688 = vmax.f32 %v2672, 0.0
      %v2689 = vmax.f32 %v2674, 0.0
      %v2690 = vmax.f32 %v2677, 0.0
      %v2691 = vmax.f32 %v2679, 0.0
      %v2692 = vmax.f32 %v2682, 0.0
      %v2693 = vmax.f32 %v2684, 0.0
      %v2694 = vpack.c.bf16 %v2687, %v2686
      %v2695 = vpack.c.bf16 %v2689, %v2688
      %v2696 = vpack.c.bf16 %v2691, %v2690
      %v2697 = vpack.c.bf16 %v2693, %v2692
      %s2698 = scalar_lea.vmem %s5, 144
      %v2699 = vld [vmem:[%s2698] sm:$0xf]
      %v2700 = vld [vmem:[%s2698 + $0x4] sm:$0xf]
      %v2701 = vld [vmem:[%s2698 + $0x8] sm:$0xf]
      %v2702 = vld [vmem:[%s2698 + $0xc] sm:$0xf]
      %s2703 = scalar_lea.vmem %s6, 9
      %v2704 = vld [vmem:[%s2703] sm:$0x1]
      %v2706 = vperm.slane %v2704, 0
      %v2712 = vunpack.c.l.b16 %v2699
      %v2713 = vunpack.c.l.b16 %v2700
      %v2714 = vunpack.c.l.b16 %v2701
      %v2715 = vunpack.c.l.b16 %v2702
      %v2716 = vpack.c.b16 %v2713, %v2712
      %v2717 = vpack.c.b16 %v2715, %v2714
      %v2721 = vsel %vm977, %v2694, 0
      %v2724 = vsel %vm977, %v2695, 0
      %v2727 = vsel %vm977, %v2696, 0
      %v2730 = vsel %vm977, %v2697, 0
      %2732 = vmatpush.bf16.msra.mxu0 0
      %2733 = vmatpush.bf16.msra.mxu0 0
      %2734 = vmatpush.bf16.msra.mxu0 0
      %2735 = vmatpush.bf16.msra.mxu0 0
      %2736 = vmatpush.bf16.msra.mxu0 0
      %2737 = vmatpush.bf16.msra.mxu0 0
      %2738 = vmatpush.bf16.msra.mxu0 %v2717
      %2739 = vmatpush.bf16.msra.mxu0 %v2716
      %2740 = vmatmul.bf16.gmra.mxu0 %v2721
      %v2741 = vpop.f32.mrf.mxu0
      %v2742 = vadd.f32 %v2706, %v2741
      %v2743 = vpop.f32.mrf.mxu0
      %v2744 = vadd.f32 %v2706, %v2743
      %2745 = vmatmul.bf16.gmra.mxu0 %v2724
      %v2746 = vpop.f32.mrf.mxu0
      %v2747 = vadd.f32 %v2706, %v2746
      %v2748 = vpop.f32.mrf.mxu0
      %v2749 = vadd.f32 %v2706, %v2748
      %2750 = vmatmul.bf16.gmra.mxu0 %v2727
      %v2751 = vpop.f32.mrf.mxu0
      %v2752 = vadd.f32 %v2706, %v2751
      %v2753 = vpop.f32.mrf.mxu0
      %v2754 = vadd.f32 %v2706, %v2753
      %2755 = vmatmul.bf16.gmra.mxu0 %v2730
      %v2756 = vpop.f32.mrf.mxu0
      %v2757 = vadd.f32 %v2706, %v2756
      %v2758 = vpop.f32.mrf.mxu0
      %v2759 = vadd.f32 %v2706, %v2758
      %2760 = vdwg.mxu0
      %v2761 = vmax.f32 %v2742, 0.0
      %v2762 = vmax.f32 %v2744, 0.0
      %v2763 = vmax.f32 %v2747, 0.0
      %v2764 = vmax.f32 %v2749, 0.0
      %v2765 = vmax.f32 %v2752, 0.0
      %v2766 = vmax.f32 %v2754, 0.0
      %v2767 = vmax.f32 %v2757, 0.0
      %v2768 = vmax.f32 %v2759, 0.0
      %v2769 = vadd.f32 %v2600, %v2761
      %v2770 = vadd.f32 %v2602, %v2762
      %v2771 = vadd.f32 %v2605, %v2763
      %v2772 = vadd.f32 %v2607, %v2764
      %v2773 = vadd.f32 %v2610, %v2765
      %v2774 = vadd.f32 %v2612, %v2766
      %v2775 = vadd.f32 %v2615, %v2767
      %v2776 = vadd.f32 %v2617, %v2768
      %v2777 = vpack.c.bf16 %v2770, %v2769
      %v2778 = vpack.c.bf16 %v2772, %v2771
      %v2779 = vpack.c.bf16 %v2774, %v2773
      %v2780 = vpack.c.bf16 %v2776, %v2775
      %s2781 = scalar_lea.vmem %s5, 160
      %v2782 = vld [vmem:[%s2781] sm:$0xf]
      %v2783 = vld [vmem:[%s2781 + $0x4] sm:$0xf]
      %v2784 = vld [vmem:[%s2781 + $0x8] sm:$0xf]
      %v2785 = vld [vmem:[%s2781 + $0xc] sm:$0xf]
      %s2786 = scalar_lea.vmem %s6, 10
      %v2787 = vld [vmem:[%s2786] sm:$0x1]
      %v2789 = vperm.slane %v2787, 0
      %v2795 = vunpack.c.l.b16 %v2782
      %v2796 = vunpack.c.l.b16 %v2783
      %v2797 = vunpack.c.l.b16 %v2784
      %v2798 = vunpack.c.l.b16 %v2785
      %v2799 = vpack.c.b16 %v2796, %v2795
      %v2800 = vpack.c.b16 %v2798, %v2797
      %v2804 = vsel %vm977, %v2777, 0
      %v2807 = vsel %vm977, %v2778, 0
      %v2810 = vsel %vm977, %v2779, 0
      %v2813 = vsel %vm977, %v2780, 0
      %2815 = vmatpush.bf16.msra.mxu0 0
      %2816 = vmatpush.bf16.msra.mxu0 0
      %2817 = vmatpush.bf16.msra.mxu0 0
      %2818 = vmatpush.bf16.msra.mxu0 0
      %2819 = vmatpush.bf16.msra.mxu0 0
      %2820 = vmatpush.bf16.msra.mxu0 0
      %2821 = vmatpush.bf16.msra.mxu0 %v2800
      %2822 = vmatpush.bf16.msra.mxu0 %v2799
      %2823 = vmatmul.bf16.gmra.mxu0 %v2804
      %v2824 = vpop.f32.mrf.mxu0
      %v2825 = vadd.f32 %v2789, %v2824
      %v2826 = vpop.f32.mrf.mxu0
      %v2827 = vadd.f32 %v2789, %v2826
      %2828 = vmatmul.bf16.gmra.mxu0 %v2807
      %v2829 = vpop.f32.mrf.mxu0
      %v2830 = vadd.f32 %v2789, %v2829
      %v2831 = vpop.f32.mrf.mxu0
      %v2832 = vadd.f32 %v2789, %v2831
      %2833 = vmatmul.bf16.gmra.mxu0 %v2810
      %v2834 = vpop.f32.mrf.mxu0
      %v2835 = vadd.f32 %v2789, %v2834
      %v2836 = vpop.f32.mrf.mxu0
      %v2837 = vadd.f32 %v2789, %v2836
      %2838 = vmatmul.bf16.gmra.mxu0 %v2813
      %v2839 = vpop.f32.mrf.mxu0
      %v2840 = vadd.f32 %v2789, %v2839
      %v2841 = vpop.f32.mrf.mxu0
      %v2842 = vadd.f32 %v2789, %v2841
      %2843 = vdwg.mxu0
      %v2844 = vmax.f32 %v2825, 0.0
      %v2845 = vmax.f32 %v2827, 0.0
      %v2846 = vmax.f32 %v2830, 0.0
      %v2847 = vmax.f32 %v2832, 0.0
      %v2848 = vmax.f32 %v2835, 0.0
      %v2849 = vmax.f32 %v2837, 0.0
      %v2850 = vmax.f32 %v2840, 0.0
      %v2851 = vmax.f32 %v2842, 0.0
      %v2852 = vpack.c.bf16 %v2845, %v2844
      %v2853 = vpack.c.bf16 %v2847, %v2846
      %v2854 = vpack.c.bf16 %v2849, %v2848
      %v2855 = vpack.c.bf16 %v2851, %v2850
      %s2856 = scalar_lea.vmem %s5, 176
      %v2857 = vld [vmem:[%s2856] sm:$0xf]
      %v2858 = vld [vmem:[%s2856 + $0x4] sm:$0xf]
      %v2859 = vld [vmem:[%s2856 + $0x8] sm:$0xf]
      %v2860 = vld [vmem:[%s2856 + $0xc] sm:$0xf]
      %s2861 = scalar_lea.vmem %s6, 11
      %v2862 = vld [vmem:[%s2861] sm:$0x1]
      %v2864 = vperm.slane %v2862, 0
      %v2870 = vunpack.c.l.b16 %v2857
      %v2871 = vunpack.c.l.b16 %v2858
      %v2872 = vunpack.c.l.b16 %v2859
      %v2873 = vunpack.c.l.b16 %v2860
      %v2874 = vpack.c.b16 %v2871, %v2870
      %v2875 = vpack.c.b16 %v2873, %v2872
      %v2879 = vsel %vm977, %v2852, 0
      %v2882 = vsel %vm977, %v2853, 0
      %v2885 = vsel %vm977, %v2854, 0
      %v2888 = vsel %vm977, %v2855, 0
      %2890 = vmatpush.bf16.msra.mxu0 0
      %2891 = vmatpush.bf16.msra.mxu0 0
      %2892 = vmatpush.bf16.msra.mxu0 0
      %2893 = vmatpush.bf16.msra.mxu0 0
      %2894 = vmatpush.bf16.msra.mxu0 0
      %2895 = vmatpush.bf16.msra.mxu0 0
      %2896 = vmatpush.bf16.msra.mxu0 %v2875
      %2897 = vmatpush.bf16.msra.mxu0 %v2874
      %2898 = vmatmul.bf16.gmra.mxu0 %v2879
      %v2899 = vpop.f32.mrf.mxu0
      %v2900 = vadd.f32 %v2864, %v2899
      %v2901 = vpop.f32.mrf.mxu0
      %v2902 = vadd.f32 %v2864, %v2901
      %2903 = vmatmul.bf16.gmra.mxu0 %v2882
      %v2904 = vpop.f32.mrf.mxu0
      %v2905 = vadd.f32 %v2864, %v2904
      %v2906 = vpop.f32.mrf.mxu0
      %v2907 = vadd.f32 %v2864, %v2906
      %2908 = vmatmul.bf16.gmra.mxu0 %v2885
      %v2909 = vpop.f32.mrf.mxu0
      %v2910 = vadd.f32 %v2864, %v2909
      %v2911 = vpop.f32.mrf.mxu0
      %v2912 = vadd.f32 %v2864, %v2911
      %2913 = vmatmul.bf16.gmra.mxu0 %v2888
      %v2914 = vpop.f32.mrf.mxu0
      %v2915 = vadd.f32 %v2864, %v2914
      %v2916 = vpop.f32.mrf.mxu0
      %v2917 = vadd.f32 %v2864, %v2916
      %2918 = vdwg.mxu0
      %v2919 = vmax.f32 %v2900, 0.0
      %v2920 = vmax.f32 %v2902, 0.0
      %v2921 = vmax.f32 %v2905, 0.0
      %v2922 = vmax.f32 %v2907, 0.0
      %v2923 = vmax.f32 %v2910, 0.0
      %v2924 = vmax.f32 %v2912, 0.0
      %v2925 = vmax.f32 %v2915, 0.0
      %v2926 = vmax.f32 %v2917, 0.0
      %v2927 = vadd.f32 %v2769, %v2919
      %v2928 = vadd.f32 %v2770, %v2920
      %v2929 = vadd.f32 %v2771, %v2921
      %v2930 = vadd.f32 %v2772, %v2922
      %v2931 = vadd.f32 %v2773, %v2923
      %v2932 = vadd.f32 %v2774, %v2924
      %v2933 = vadd.f32 %v2775, %v2925
      %v2934 = vadd.f32 %v2776, %v2926
      %v2935 = vld [vmem:[%s7] sm:$0xf]
      %v2936 = vld [vmem:[%s7 + $0x8] sm:$0xf]
      %v2937 = vld [vmem:[%s7 + $0x10] sm:$0xf]
      %v2938 = vld [vmem:[%s7 + $0x18] sm:$0xf]
      %v2939 = vpack.c.bf16 %v2928, %v2927
      %v2940 = vpack.c.bf16 %v2930, %v2929
      %v2941 = vpack.c.bf16 %v2932, %v2931
      %v2942 = vpack.c.bf16 %v2934, %v2933
      %v2947 = vunpack.c.l.b16 %v2935
      %v2948 = vunpack.c.l.b16 %v2936
      %v2949 = vunpack.c.l.b16 %v2937
      %v2950 = vunpack.c.l.b16 %v2938
      %v2951 = vpack.c.b16 %v2948, %v2947
      %v2952 = vpack.c.b16 %v2950, %v2949
      %vm2953 = vcmask 523264
      %v2955 = vsel %vm2953, %v2951, 0
      %v2958 = vsel %vm2953, %v2952, 0
      %2960 = vmatpush.bf16.msra.mxu0 0
      %2961 = vmatpush.bf16.msra.mxu0 0
      %2962 = vmatpush.bf16.msra.mxu0 0
      %2963 = vmatpush.bf16.msra.mxu0 0
      %2964 = vmatpush.bf16.msra.mxu0 %v2942
      %2965 = vmatpush.bf16.msra.mxu0 %v2941
      %2966 = vmatpush.bf16.msra.mxu0 %v2940
      %2967 = vmatpush.bf16.msra.mxu0 %v2939
      %2968 = vmatmul.bf16.gmra.mxu0 %v2955
      %v2969 = vpop.f32.mrf.mxu0
      %v2970 = vadd.f32 0.0, %v2969
      %v2971 = vpop.f32.mrf.mxu0
      %v2972 = vadd.f32 0.0, %v2971
      %2973 = vmatmul.bf16.gmra.mxu0 %v2958
      %v2974 = vpop.f32.mrf.mxu0
      %v2975 = vadd.f32 0.0, %v2974
      %v2976 = vpop.f32.mrf.mxu0
      %v2977 = vadd.f32 0.0, %v2976
      %2978 = vdwg.mxu0
      %v2979 = vpack.c.bf16 %v2972, %v2970
      %v2980 = vpack.c.bf16 %v2977, %v2975
      %s2981 = scalar_lea.vmem %s5, 192
      %v2982 = vld [vmem:[%s2981] sm:$0xf]
      %v2983 = vld [vmem:[%s2981 + $0x4] sm:$0xf]
      %v2984 = vld [vmem:[%s2981 + $0x8] sm:$0xf]
      %v2985 = vld [vmem:[%s2981 + $0xc] sm:$0xf]
      %s2986 = scalar_lea.vmem %s6, 12
      %v2987 = vld [vmem:[%s2986] sm:$0x1]
      %v2989 = vperm.slane %v2987, 0
      %v2995 = vunpack.c.l.b16 %v2982
      %v2996 = vunpack.c.l.b16 %v2983
      %v2997 = vunpack.c.l.b16 %v2984
      %v2998 = vunpack.c.l.b16 %v2985
      %v2999 = vpack.c.b16 %v2996, %v2995
      %v3000 = vpack.c.b16 %v2998, %v2997
      %v3004 = vsel %vm977, %v2979, 0
      %v3007 = vsel %vm977, %v2980, 0
      %3009 = vmatpush.bf16.msra.mxu0 0
      %3010 = vmatpush.bf16.msra.mxu0 0
      %3011 = vmatpush.bf16.msra.mxu0 0
      %3012 = vmatpush.bf16.msra.mxu0 0
      %3013 = vmatpush.bf16.msra.mxu0 0
      %3014 = vmatpush.bf16.msra.mxu0 0
      %3015 = vmatpush.bf16.msra.mxu0 %v3000
      %3016 = vmatpush.bf16.msra.mxu0 %v2999
      %3017 = vmatmul.bf16.gmra.mxu0 %v3004
      %v3018 = vpop.f32.mrf.mxu0
      %v3019 = vadd.f32 %v2989, %v3018
      %v3020 = vpop.f32.mrf.mxu0
      %v3021 = vadd.f32 %v2989, %v3020
      %3022 = vmatmul.bf16.gmra.mxu0 %v3007
      %v3023 = vpop.f32.mrf.mxu0
      %v3024 = vadd.f32 %v2989, %v3023
      %v3025 = vpop.f32.mrf.mxu0
      %v3026 = vadd.f32 %v2989, %v3025
      %3027 = vdwg.mxu0
      %v3028 = vmax.f32 %v3019, 0.0
      %v3029 = vmax.f32 %v3021, 0.0
      %v3030 = vmax.f32 %v3024, 0.0
      %v3031 = vmax.f32 %v3026, 0.0
      %v3032 = vpack.c.bf16 %v3029, %v3028
      %v3033 = vpack.c.bf16 %v3031, %v3030
      %s3034 = scalar_lea.vmem %s5, 208
      %v3035 = vld [vmem:[%s3034] sm:$0xf]
      %v3036 = vld [vmem:[%s3034 + $0x4] sm:$0xf]
      %v3037 = vld [vmem:[%s3034 + $0x8] sm:$0xf]
      %v3038 = vld [vmem:[%s3034 + $0xc] sm:$0xf]
      %s3039 = scalar_lea.vmem %s6, 13
      %v3040 = vld [vmem:[%s3039] sm:$0x1]
      %v3042 = vperm.slane %v3040, 0
      %v3048 = vunpack.c.l.b16 %v3035
      %v3049 = vunpack.c.l.b16 %v3036
      %v3050 = vunpack.c.l.b16 %v3037
      %v3051 = vunpack.c.l.b16 %v3038
      %v3052 = vpack.c.b16 %v3049, %v3048
      %v3053 = vpack.c.b16 %v3051, %v3050
      %v3057 = vsel %vm977, %v3032, 0
      %v3060 = vsel %vm977, %v3033, 0
      %3062 = vmatpush.bf16.msra.mxu0 0
      %3063 = vmatpush.bf16.msra.mxu0 0
      %3064 = vmatpush.bf16.msra.mxu0 0
      %3065 = vmatpush.bf16.msra.mxu0 0
      %3066 = vmatpush.bf16.msra.mxu0 0
      %3067 = vmatpush.bf16.msra.mxu0 0
      %3068 = vmatpush.bf16.msra.mxu0 %v3053
      %3069 = vmatpush.bf16.msra.mxu0 %v3052
      %3070 = vmatmul.bf16.gmra.mxu0 %v3057
      %v3071 = vpop.f32.mrf.mxu0
      %v3072 = vadd.f32 %v3042, %v3071
      %v3073 = vpop.f32.mrf.mxu0
      %v3074 = vadd.f32 %v3042, %v3073
      %3075 = vmatmul.bf16.gmra.mxu0 %v3060
      %v3076 = vpop.f32.mrf.mxu0
      %v3077 = vadd.f32 %v3042, %v3076
      %v3078 = vpop.f32.mrf.mxu0
      %v3079 = vadd.f32 %v3042, %v3078
      %3080 = vdwg.mxu0
      %v3081 = vmax.f32 %v3072, 0.0
      %v3082 = vmax.f32 %v3074, 0.0
      %v3083 = vmax.f32 %v3077, 0.0
      %v3084 = vmax.f32 %v3079, 0.0
      %v3085 = vadd.f32 %v2970, %v3081
      %v3086 = vadd.f32 %v2972, %v3082
      %v3087 = vadd.f32 %v2975, %v3083
      %v3088 = vadd.f32 %v2977, %v3084
      %v3089 = vpack.c.bf16 %v3086, %v3085
      %v3090 = vpack.c.bf16 %v3088, %v3087
      %s3091 = scalar_lea.vmem %s5, 224
      %v3092 = vld [vmem:[%s3091] sm:$0xf]
      %v3093 = vld [vmem:[%s3091 + $0x4] sm:$0xf]
      %v3094 = vld [vmem:[%s3091 + $0x8] sm:$0xf]
      %v3095 = vld [vmem:[%s3091 + $0xc] sm:$0xf]
      %s3096 = scalar_lea.vmem %s6, 14
      %v3097 = vld [vmem:[%s3096] sm:$0x1]
      %v3099 = vperm.slane %v3097, 0
      %v3105 = vunpack.c.l.b16 %v3092
      %v3106 = vunpack.c.l.b16 %v3093
      %v3107 = vunpack.c.l.b16 %v3094
      %v3108 = vunpack.c.l.b16 %v3095
      %v3109 = vpack.c.b16 %v3106, %v3105
      %v3110 = vpack.c.b16 %v3108, %v3107
      %v3114 = vsel %vm977, %v3089, 0
      %v3117 = vsel %vm977, %v3090, 0
      %3119 = vmatpush.bf16.msra.mxu0 0
      %3120 = vmatpush.bf16.msra.mxu0 0
      %3121 = vmatpush.bf16.msra.mxu0 0
      %3122 = vmatpush.bf16.msra.mxu0 0
      %3123 = vmatpush.bf16.msra.mxu0 0
      %3124 = vmatpush.bf16.msra.mxu0 0
      %3125 = vmatpush.bf16.msra.mxu0 %v3110
      %3126 = vmatpush.bf16.msra.mxu0 %v3109
      %3127 = vmatmul.bf16.gmra.mxu0 %v3114
      %v3128 = vpop.f32.mrf.mxu0
      %v3129 = vadd.f32 %v3099, %v3128
      %v3130 = vpop.f32.mrf.mxu0
      %v3131 = vadd.f32 %v3099, %v3130
      %3132 = vmatmul.bf16.gmra.mxu0 %v3117
      %v3133 = vpop.f32.mrf.mxu0
      %v3134 = vadd.f32 %v3099, %v3133
      %v3135 = vpop.f32.mrf.mxu0
      %v3136 = vadd.f32 %v3099, %v3135
      %3137 = vdwg.mxu0
      %v3138 = vmax.f32 %v3129, 0.0
      %v3139 = vmax.f32 %v3131, 0.0
      %v3140 = vmax.f32 %v3134, 0.0
      %v3141 = vmax.f32 %v3136, 0.0
      %v3142 = vpack.c.bf16 %v3139, %v3138
      %v3143 = vpack.c.bf16 %v3141, %v3140
      %s3144 = scalar_lea.vmem %s5, 240
      %v3145 = vld [vmem:[%s3144] sm:$0xf]
      %v3146 = vld [vmem:[%s3144 + $0x4] sm:$0xf]
      %v3147 = vld [vmem:[%s3144 + $0x8] sm:$0xf]
      %v3148 = vld [vmem:[%s3144 + $0xc] sm:$0xf]
      %s3149 = scalar_lea.vmem %s6, 15
      %v3150 = vld [vmem:[%s3149] sm:$0x1]
      %v3152 = vperm.slane %v3150, 0
      %v3158 = vunpack.c.l.b16 %v3145
      %v3159 = vunpack.c.l.b16 %v3146
      %v3160 = vunpack.c.l.b16 %v3147
      %v3161 = vunpack.c.l.b16 %v3148
      %v3162 = vpack.c.b16 %v3159, %v3158
      %v3163 = vpack.c.b16 %v3161, %v3160
      %v3167 = vsel %vm977, %v3142, 0
      %v3170 = vsel %vm977, %v3143, 0
      %3172 = vmatpush.bf16.msra.mxu0 0
      %3173 = vmatpush.bf16.msra.mxu0 0
      %3174 = vmatpush.bf16.msra.mxu0 0
      %3175 = vmatpush.bf16.msra.mxu0 0
      %3176 = vmatpush.bf16.msra.mxu0 0
      %3177 = vmatpush.bf16.msra.mxu0 0
      %3178 = vmatpush.bf16.msra.mxu0 %v3163
      %3179 = vmatpush.bf16.msra.mxu0 %v3162
      %3180 = vmatmul.bf16.gmra.mxu0 %v3167
      %v3181 = vpop.f32.mrf.mxu0
      %v3182 = vadd.f32 %v3152, %v3181
      %v3183 = vpop.f32.mrf.mxu0
      %v3184 = vadd.f32 %v3152, %v3183
      %3185 = vmatmul.bf16.gmra.mxu0 %v3170
      %v3186 = vpop.f32.mrf.mxu0
      %v3187 = vadd.f32 %v3152, %v3186
      %v3188 = vpop.f32.mrf.mxu0
      %v3189 = vadd.f32 %v3152, %v3188
      %3190 = vdwg.mxu0
      %v3191 = vmax.f32 %v3182, 0.0
      %v3192 = vmax.f32 %v3184, 0.0
      %v3193 = vmax.f32 %v3187, 0.0
      %v3194 = vmax.f32 %v3189, 0.0
      %v3195 = vadd.f32 %v3085, %v3191
      %v3196 = vadd.f32 %v3086, %v3192
      %v3197 = vadd.f32 %v3087, %v3193
      %v3198 = vadd.f32 %v3088, %v3194
      %v3199 = vld [vmem:[%s8] sm:$0x3]
      %v3200 = vpack.c.bf16 %v3196, %v3195
      %v3201 = vpack.c.bf16 %v3198, %v3197
      %v3203 = vsel %vm977, %v3199, 0
      %3205 = vmatpush.bf16.msra.mxu0 0
      %3206 = vmatpush.bf16.msra.mxu0 0
      %3207 = vmatpush.bf16.msra.mxu0 0
      %3208 = vmatpush.bf16.msra.mxu0 0
      %3209 = vmatpush.bf16.msra.mxu0 0
      %3210 = vmatpush.bf16.msra.mxu0 0
      %3211 = vmatpush.bf16.msra.mxu0 %v3201
      %3212 = vmatpush.bf16.msra.mxu0 %v3200
      %3213 = vmatmul.bf16.gmra.mxu0 %v3203
      %v3214 = vpop.f32.mrf.mxu0
      %v3215 = vadd.f32 0.0, %v3214
      %v3216 = vpop.f32.mrf.mxu0
      %3217 = vdwg.mxu0
      %v3218 = vmul.f32 %v3215, 0.125
      %v3219 = vpack.c.bf16 %v3218, %v3218
      %v3220 = vld [vmem:[%s9] sm:$0xf]
      %v3221 = vld [vmem:[%s9 + $0x4] sm:$0xf]
      %v3222 = vld [vmem:[%s9 + $0x8] sm:$0xf]
      %v3223 = vld [vmem:[%s9 + $0xc] sm:$0xf]
      %v3224 = vld [vmem:[%s10] sm:$0x1]
      %v3226 = vperm.slane %v3224, 0
      %v3232 = vunpack.c.l.b16 %v3220
      %v3233 = vunpack.c.l.b16 %v3221
      %v3234 = vunpack.c.l.b16 %v3222
      %v3235 = vunpack.c.l.b16 %v3223
      %v3236 = vpack.c.b16 %v3233, %v3232
      %v3237 = vpack.c.b16 %v3235, %v3234
      %v3241 = vsel %vm977, %v3219, 0
      %3243 = vmatpush.bf16.msra.mxu0 0
      %3244 = vmatpush.bf16.msra.mxu0 0
      %3245 = vmatpush.bf16.msra.mxu0 0
      %3246 = vmatpush.bf16.msra.mxu0 0
      %3247 = vmatpush.bf16.msra.mxu0 0
      %3248 = vmatpush.bf16.msra.mxu0 0
      %3249 = vmatpush.bf16.msra.mxu0 %v3237
      %3250 = vmatpush.bf16.msra.mxu0 %v3236
      %3251 = vmatmul.bf16.gmra.mxu0 %v3241
      %v3252 = vpop.f32.mrf.mxu0
      %v3253 = vadd.f32 %v3226, %v3252
      %v3254 = vpop.f32.mrf.mxu0
      %3255 = vdwg.mxu0
      %3256 = vst [vmem:[%s384] sm:$0xf] %v3253
      %p3257 = scmp.lt.s32.totalorder %s22, 1
      %s3258 = scalar_select %p3257, %s22, 1
      %s3259 = smul.addr %s3258, 4
      %s3260 = scalar_lea.vmem %s11, %s3259
      // Predicated region
      $region65: #{gtr_forward.1} parent=63 // pred_check
        %p3261 = pneg %p276
      $region66: #{gtr_forward.1} parent=63 // pred_check_branch
        %3263 = sbr.rel (%p3261) target = $region68
      $region67: #{gtr_forward.1} parent=63 // pred_region
        _
      $region68: #{gtr_forward.1} parent=63 // pred_fallthru
        _
    $region64: #{gtr_forward.1} parent=5 // pred_fallthru
      _
    %p3264 = scmp.le.s32.totalorder 2, %s17
    // Predicated region
    $region69: #{gtr_forward.1} parent=5 // pred_check
      %p3265 = pneg %p3264
    $region70: #{gtr_forward.1} parent=5 // pred_check_branch
      %3267 = sbr.rel (%p3265) target = $region72
    $region71: #{gtr_forward.1} parent=5 // pred_region
      %s3268 = ssub.s32 %s17, 2
      // Predicated region
      $region73: #{gtr_forward.1} parent=71 // pred_check
        %p3269 = pneg %p282
      $region74: #{gtr_forward.1} parent=71 // pred_check_branch
        %3271 = sbr.rel (%p3269) target = $region76
      $region75: #{gtr_forward.1} parent=71 // pred_region
        %p3272 = scmp.lt.s32.totalorder %s23, 1
        %s3273 = scalar_select %p3272, %s23, 1
        %s3274 = smul.addr %s3273, 4
        %s3275 = scalar_lea.vmem %s11, %s3274
      $region76: #{gtr_forward.1} parent=71 // pred_fallthru
        _
    $region72: #{gtr_forward.1} parent=5 // pred_fallthru
      _
  $region6: #{gtr_forward.1} parent=0 // loop_footer
    %s21 = sadd.s32 1, %s17
  $region7: #{gtr_forward.1} parent=0 // loop_footer_branch
    %16 = sbr.rel target = $region3
  $region8: #{gtr_forward.1} parent=0 // loop_exit
    _

</llo_original>
